<compile_context>
chip_gen: v6e
topology: v6e:2x2x1
jax: 0.10.0
libtpu: 0.0.40
codegen_flags: <defaults>
</compile_context>

<pallas_src>
import math

import jax
import jax.numpy as jnp
from jax import lax
from jax.experimental import pallas as pl
from jax.experimental.pallas import tpu as pltpu

# ---- small config consistent with the module's forward (orig: 72/6/64/8/10) ----
BATCH = 2
IMG = 16
PATCH = 4
CIN = 3
GRID_HW = IMG // PATCH                # 4
N_PATCH = GRID_HW * GRID_HW           # 16 patches
P_DIM = CIN * PATCH * PATCH           # 48 = flattened patch
EMB = 32                              # embedding_dims
HEADS = 4
HEAD_DIM = EMB // HEADS               # 8
ENC_BLOCKS = 2                        # orig 8
ENC_HIDDEN = 2 * EMB                  # transformer-encoder MLP hidden
MLP_FEATS = [N_PATCH * EMB, 128, 64]  # orig [patches*emb, 2048, 1024]
NUM_CLASSES = 10
EPS = 1e-5
TOKENS = BATCH * N_PATCH              # 32

# layout of the packed bias/vector slab (f32, 128 lanes wide)
VEC_WIDTH = 128
HEAD_ROW = TOKENS + 4 * ENC_BLOCKS    # 40  (rows 40..42 = head biases)
VEC_ROWS = 48                         # 43 used, padded to a sublane multiple


def _gelu(x):
    # TODO(synk): tanh-approx GELU; PyTorch nn.GELU default is erf-exact.
    return 0.5 * x * (1.0 + jnp.tanh(0.7978845608028654 * (x + 0.044715 * x * x * x)))


def _standardize(x):
    # LayerNorm without gamma/beta (those are folded into downstream weights).
    mu = jnp.mean(x, axis=-1, keepdims=True)
    xc = x - mu
    var = jnp.mean(xc * xc, axis=-1, keepdims=True)
    return xc * lax.rsqrt(var + EPS)


def _softmax_last(s):
    s = s - jnp.max(s, axis=-1, keepdims=True)
    e = jnp.exp(s)
    return e * pl.reciprocal(jnp.sum(e, axis=-1, keepdims=True), approx=True)


# ------------------------------ fused Pallas kernel ------------------------------
def vit_kernel(patch_ref, vec_ref, pw_ref, wqkv_ref, wo_ref, w1_ref, w2_ref,
               hw2_ref, wc_ref, hw1_hbm_ref, o_ref, hw1_vmem, dma_sem):
    f32 = jnp.float32
    bf16 = jnp.bfloat16

    # Kick off the largest weight transfer immediately; it overlaps with the
    # patch embedding and both encoder blocks and is waited on just before use.
    hw1_copy = pltpu.make_async_copy(hw1_hbm_ref, hw1_vmem, dma_sem)
    hw1_copy.start()

    pos = vec_ref[0:TOKENS, 0:EMB]                       # pos (+ folded patch bias)
    mask = vec_ref[0:TOKENS, EMB:EMB + TOKENS]           # -1e30 cross-batch mask

    # ---- patch embedding, batch folded: (TOKENS, P_DIM) @ (P_DIM, EMB) ----
    x = jnp.dot(patch_ref[...].astype(bf16), pw_ref[...],
                preferred_element_type=f32) + pos        # (TOKENS, EMB) f32

    scale = 1.0 / math.sqrt(HEAD_DIM)
    for l in range(ENC_BLOCKS):                          # static unroll (2 layers)
        brow = TOKENS + 4 * l
        # --- multi-head self-attention (LN1 gamma/beta folded into Wqkv/bqkv) ---
        x1 = _standardize(x)
        qkv = (jnp.dot(x1.astype(bf16), wqkv_ref[l], preferred_element_type=f32)
               + vec_ref[brow:brow + 1, 0:3 * EMB])      # (TOKENS, 96)
        wo = wo_ref[l]                                   # (EMB, EMB) f32
        attn = jnp.zeros((TOKENS, EMB), f32)
        for h in range(HEADS):                           # static unroll (4 heads)
            sl = slice(h * HEAD_DIM, (h + 1) * HEAD_DIM)
            qh = qkv[:, sl] * scale                                         # (32, 8)
            kh = qkv[:, EMB + h * HEAD_DIM:EMB + (h + 1) * HEAD_DIM]        # (32, 8)
            vh = qkv[:, 2 * EMB + h * HEAD_DIM:2 * EMB + (h + 1) * HEAD_DIM]
            # single (32,8)x(8,32) score matmul over all tokens; cross-batch
            # entries are killed by the precomputed additive -1e30 mask.
            s = lax.dot_general(qh, kh, (((1,), (1,)), ((), ())),
                                preferred_element_type=f32) + mask          # (32,32)
            p = _softmax_last(s)
            oh = jnp.dot(p, vh, preferred_element_type=f32)                 # (32, 8)
            # accumulate head outputs through W_o row-slices (no concat/relayout)
            attn = attn + jnp.dot(oh, wo[sl, :], preferred_element_type=f32)
        x = x + attn + vec_ref[brow + 1:brow + 2, 0:EMB]

        # --- MLP sub-block (LN2 gamma/beta folded into W1/b1) ---
        x3 = _standardize(x)
        hmid = _gelu(jnp.dot(x3.astype(bf16), w1_ref[l],
                             preferred_element_type=f32)
                     + vec_ref[brow + 2:brow + 3, 0:ENC_HIDDEN])
        x = (x + jnp.dot(hmid.astype(bf16), w2_ref[l], preferred_element_type=f32)
             + vec_ref[brow + 3:brow + 4, 0:EMB])

    # ---- final LayerNorm (gamma/beta folded into head.w1 / head.b1) ----
    xn3 = _standardize(x).reshape(BATCH, N_PATCH, EMB)   # (B, N, EMB)

    # ---- head MLP + classifier (dropouts identity in eval mode) ----
    # flat(B, N*EMB) @ W1  ==  sum_n  x[:, n, :] @ W1[n*EMB:(n+1)*EMB, :]
    # -> same total MXU weight pushes as one big matmul, no lane relayout.
    hw1_copy.wait()
    z1 = jnp.zeros((BATCH, MLP_FEATS[1]), f32)
    for n in range(N_PATCH):                             # static unroll (16)
        z1 = z1 + jnp.dot(xn3[:, n, :].astype(bf16),
                          hw1_vmem[n * EMB:(n + 1) * EMB, :],
                          preferred_element_type=f32)
    h1 = _gelu(z1 + vec_ref[HEAD_ROW:HEAD_ROW + 1, :])                       # (B,128)
    h2 = _gelu(jnp.dot(h1.astype(bf16), hw2_ref[...], preferred_element_type=f32)
               + vec_ref[HEAD_ROW + 1:HEAD_ROW + 2, 0:MLP_FEATS[2]])         # (B, 64)
    o_ref[...] = (jnp.dot(h2.astype(bf16), wc_ref[...], preferred_element_type=f32)
                  + vec_ref[HEAD_ROW + 2:HEAD_ROW + 3, 0:NUM_CLASSES])


# ------------------------------ wrapper ------------------------------
def vit_forward(x_nchw, packed):
    # TODO(synk): return_scores=True branch (mean attention map) not implemented.
    patches = extract_patches(x_nchw).reshape(TOKENS, P_DIM)     # glue
    vmem = pltpu.MemorySpace.VMEM
    return pl.pallas_call(
        vit_kernel,
        out_shape=jax.ShapeDtypeStruct((BATCH, NUM_CLASSES), jnp.float32),
        in_specs=[pl.BlockSpec(memory_space=vmem)] * 9
                 + [pl.BlockSpec(memory_space=pl.ANY)],          # head.w1: manual DMA
        out_specs=pl.BlockSpec(memory_space=vmem),
        scratch_shapes=[pltpu.VMEM((MLP_FEATS[0], MLP_FEATS[1]), jnp.bfloat16),
                        pltpu.SemaphoreType.DMA(())],
    )(patches, packed["vec"], packed["pw"], packed["wqkv"], packed["wo"],
      packed["w1"], packed["w2"], packed["hw2"], packed["wc"], packed["hw1"])


# ------------------------------ params & glue -----------------------------
def init_params(key):
    def nrm(k, shape, scale=0.02):
        return (scale * jax.random.normal(k, shape)).astype(jnp.float32)

    keys = iter(jax.random.split(key, 32))
    L = ENC_BLOCKS
    return {
        "patch": {"w": nrm(next(keys), (P_DIM, EMB)),
                  "b": jnp.zeros((1, EMB), jnp.float32),
                  "pos": nrm(next(keys), (N_PATCH, EMB))},
        "encoders": {
            "ln1_g": jnp.ones((L, 1, EMB), jnp.float32),
            "ln1_b": jnp.zeros((L, 1, EMB), jnp.float32),
            "wq": nrm(next(keys), (L, EMB, EMB)),
            "bq": jnp.zeros((L, 1, EMB), jnp.float32),
            "wk": nrm(next(keys), (L, EMB, EMB)),
            "bk": jnp.zeros((L, 1, EMB), jnp.float32),
            "wv": nrm(next(keys), (L, EMB, EMB)),
            "bv": jnp.zeros((L, 1, EMB), jnp.float32),
            "wo": nrm(next(keys), (L, EMB, EMB)),
            "bo": jnp.zeros((L, 1, EMB), jnp.float32),
            "ln2_g": jnp.ones((L, 1, EMB), jnp.float32),
            "ln2_b": jnp.zeros((L, 1, EMB), jnp.float32),
            "w1": nrm(next(keys), (L, EMB, ENC_HIDDEN)),
            "b1": jnp.zeros((L, 1, ENC_HIDDEN), jnp.float32),
            "w2": nrm(next(keys), (L, ENC_HIDDEN, EMB)),
            "b2": jnp.zeros((L, 1, EMB), jnp.float32),
        },
        "norm": {"g": jnp.ones((1, EMB), jnp.float32),
                 "b": jnp.zeros((1, EMB), jnp.float32)},
        "head": {
            "w1": nrm(next(keys), (MLP_FEATS[0], MLP_FEATS[1])),
            "b1": jnp.zeros((1, MLP_FEATS[1]), jnp.float32),
            "w2": nrm(next(keys), (MLP_FEATS[1], MLP_FEATS[2])),
            "b2": jnp.zeros((1, MLP_FEATS[2]), jnp.float32),
            "wc": nrm(next(keys), (MLP_FEATS[2], NUM_CLASSES)),
            "bc": jnp.zeros((1, NUM_CLASSES), jnp.float32),
        },
    }


def pack_params(p):
    """One-time param prep: fold LN gamma/beta into following weights, fuse
    q|k|v, pre-tile pos(+patch bias), pack all small vectors into one slab,
    and cast matmul weights to bf16."""
    f32, bf16 = jnp.float32, jnp.bfloat16
    enc = p["encoders"]
    L = ENC_BLOCKS

    # fuse q|k|v and fold LN1:  LN(x)@W = std(x)@(gamma*W) + (beta@W + b)
    wqkv = jnp.concatenate([enc["wq"], enc["wk"], enc["wv"]], axis=-1)     # (L,E,3E)
    bqkv = jnp.concatenate([enc["bq"], enc["bk"], enc["bv"]], axis=-1)     # (L,1,3E)
    wqkv_f = wqkv * jnp.swapaxes(enc["ln1_g"], 1, 2)
    bqkv_f = bqkv + jnp.einsum("lie,lef->lif", enc["ln1_b"], wqkv)

    # fold LN2 into the encoder MLP's first layer
    w1_f = enc["w1"] * jnp.swapaxes(enc["ln2_g"], 1, 2)
    b1_f = enc["b1"] + jnp.einsum("lie,lef->lif", enc["ln2_b"], enc["w1"])

    # fold the final LayerNorm into head.w1 / head.b1 (flatten order = (n, e))
    g_tiled = jnp.tile(p["norm"]["g"], (1, N_PATCH)).reshape(MLP_FEATS[0], 1)
    b_tiled = jnp.tile(p["norm"]["b"], (1, N_PATCH))                        # (1, N*E)
    hw1_f = p["head"]["w1"] * g_tiled
    hb1_f = p["head"]["b1"] + b_tiled @ p["head"]["w1"]

    # positional embedding (+ folded patch-embed bias), tiled over batch
    pos_t = jnp.tile(p["patch"]["pos"] + p["patch"]["b"], (BATCH, 1))       # (T, E)

    # cross-batch additive attention mask (finite, not -inf)
    tok = jnp.arange(TOKENS)
    same = (tok[:, None] // N_PATCH) == (tok[None, :] // N_PATCH)
    mask = jnp.where(same, 0.0, -1e30).astype(f32)                          # (T, T)

    # pack all small vectors into one (VEC_ROWS, 128) f32 slab
    slab = jnp.zeros((VEC_ROWS, VEC_WIDTH), f32)
    slab = slab.at[0:TOKENS, 0:EMB].set(pos_t)
    slab = slab.at[0:TOKENS, EMB:EMB + TOKENS].set(mask)
    for l in range(L):
        brow = TOKENS + 4 * l
        slab = slab.at[brow, 0:3 * EMB].set(bqkv_f[l, 0])
        slab = slab.at[brow + 1, 0:EMB].set(enc["bo"][l, 0])
        slab = slab.at[brow + 2, 0:ENC_HIDDEN].set(b1_f[l, 0])
        slab = slab.at[brow + 3, 0:EMB].set(enc["b2"][l, 0])
    slab = slab.at[HEAD_ROW, 0:MLP_FEATS[1]].set(hb1_f[0])
    slab = slab.at[HEAD_ROW + 1, 0:MLP_FEATS[2]].set(p["head"]["b2"][0])
    slab = slab.at[HEAD_ROW + 2, 0:NUM_CLASSES].set(p["head"]["bc"][0])

    return {
        "vec": slab,                               # f32 bias/pos/mask slab
        "pw": p["patch"]["w"].astype(bf16),
        "wqkv": wqkv_f.astype(bf16),               # (L, E, 3E)
        "wo": enc["wo"].astype(f32),               # keep f32: aligned 8-row slices
        "w1": w1_f.astype(bf16),
        "w2": enc["w2"].astype(bf16),
        "hw1": hw1_f.astype(bf16),                 # (512, 128), manual DMA
        "hw2": p["head"]["w2"].astype(bf16),
        "wc": p["head"]["wc"].astype(bf16),
    }


def extract_patches(x):
    # x: (B, 3, H, W) NCHW -> (B, N, 3*p*p) matching patch_shape=(N, 3, p, p)
    B, C, H, W = x.shape
    p = PATCH
    x = x.reshape(B, C, H // p, p, W // p, p)
    x = x.transpose(0, 2, 4, 1, 3, 5)
    return x.reshape(B, (H // p) * (W // p), C * p * p)


if __name__ == "__main__":
    key = jax.random.PRNGKey(0)
    pkey, xkey = jax.random.split(key)
    raw_params = init_params(pkey)
    packed = pack_params(raw_params)            # one-time param prep
    x = jax.random.normal(xkey, (BATCH, CIN, IMG, IMG), jnp.float32)
    logits = jax.jit(vit_forward)(x, packed)
    jax.block_until_ready(logits)
    assert logits.shape == (BATCH, NUM_CLASSES)
    assert bool(jnp.all(jnp.isfinite(logits)))
    print("KERNEL_OK")
</pallas_src>

<mosaic_0001>
module attributes {stable_mosaic.version = 11 : i64} {
  func.func @vit_kernel(%arg0: memref<32x48xf32, #tpu.memory_space<vmem>>, %arg1: memref<48x128xf32, #tpu.memory_space<vmem>>, %arg2: memref<48x32xbf16, #tpu.memory_space<vmem>>, %arg3: memref<2x32x96xbf16, #tpu.memory_space<vmem>>, %arg4: memref<2x32x32xf32, #tpu.memory_space<vmem>>, %arg5: memref<2x32x64xbf16, #tpu.memory_space<vmem>>, %arg6: memref<2x64x32xbf16, #tpu.memory_space<vmem>>, %arg7: memref<128x64xbf16, #tpu.memory_space<vmem>>, %arg8: memref<64x10xbf16, #tpu.memory_space<vmem>>, %arg9: memref<512x128xbf16, #tpu.memory_space<any>>, %arg10: memref<2x10xf32, #tpu.memory_space<vmem>>, %arg11: memref<512x128xbf16, #tpu.memory_space<vmem>>, %arg12: memref<!tpu.dma_semaphore, #tpu.memory_space<semaphore_mem>>) attributes {dimension_semantics = [], scalar_prefetch = 0 : i64, scratch_operands = 2 : i64, tpu.core_type = #tpu.core_type<tc>} {
    tpu.enqueue_dma source(%arg9 : memref<512x128xbf16, #tpu.memory_space<any>>) target(%arg11 : memref<512x128xbf16, #tpu.memory_space<vmem>>) target_semaphore(%arg12 : memref<!tpu.dma_semaphore, #tpu.memory_space<semaphore_mem>>)
    %c0 = arith.constant 0 : index
    %c0_0 = arith.constant 0 : index
    %0 = vector.load %arg1[%c0, %c0_0] : memref<48x128xf32, #tpu.memory_space<vmem>>, vector<32x32xf32>
    %c0_1 = arith.constant 0 : index
    %c32 = arith.constant 32 : index
    %1 = vector.load %arg1[%c0_1, %c32] : memref<48x128xf32, #tpu.memory_space<vmem>>, vector<32x32xf32>
    %c0_2 = arith.constant 0 : index
    %c0_3 = arith.constant 0 : index
    %2 = vector.load %arg0[%c0_2, %c0_3] : memref<32x48xf32, #tpu.memory_space<vmem>>, vector<32x48xf32>
    %3 = arith.truncf %2 : vector<32x48xf32> to vector<32x48xbf16>
    %c0_4 = arith.constant 0 : index
    %c0_5 = arith.constant 0 : index
    %4 = vector.load %arg2[%c0_4, %c0_5] : memref<48x32xbf16, #tpu.memory_space<vmem>>, vector<48x32xbf16>
    %cst = arith.constant dense<0.000000e+00> : vector<32x32xf32>
    %5 = tpu.matmul %3, %4, %cst {dimension_numbers = #tpu.dot_dimension_numbers<[1], [0], [0], [1], [0, 0, 1, 1], [], []>} : vector<32x48xbf16>, vector<48x32xbf16>, vector<32x32xf32> -> vector<32x32xf32>
    %6 = arith.addf %5, %0 : vector<32x32xf32>
    %cst_6 = arith.constant dense<0.000000e+00> : vector<32xf32>
    %7 = vector.multi_reduction <add>, %6, %cst_6 [1] : vector<32x32xf32> to vector<32xf32>
    %8 = vector.shape_cast %7 : vector<32xf32> to vector<32x1xf32>
    %cst_7 = arith.constant 3.200000e+01 : f32
    %9 = vector.broadcast %cst_7 : f32 to vector<32x1xf32>
    %10 = arith.divf %8, %9 : vector<32x1xf32>
    %11 = vector.broadcast %10 : vector<32x1xf32> to vector<32x32xf32>
    %12 = arith.subf %6, %11 : vector<32x32xf32>
    %13 = arith.mulf %12, %12 : vector<32x32xf32>
    %cst_8 = arith.constant dense<0.000000e+00> : vector<32xf32>
    %14 = vector.multi_reduction <add>, %13, %cst_8 [1] : vector<32x32xf32> to vector<32xf32>
    %15 = vector.shape_cast %14 : vector<32xf32> to vector<32x1xf32>
    %cst_9 = arith.constant 3.200000e+01 : f32
    %16 = vector.broadcast %cst_9 : f32 to vector<32x1xf32>
    %17 = arith.divf %15, %16 : vector<32x1xf32>
    %cst_10 = arith.constant 9.99999974E-6 : f32
    %18 = vector.broadcast %cst_10 : f32 to vector<32x1xf32>
    %19 = arith.addf %17, %18 : vector<32x1xf32>
    %20 = math.rsqrt %19 : vector<32x1xf32>
    %21 = vector.broadcast %20 : vector<32x1xf32> to vector<32x32xf32>
    %22 = arith.mulf %12, %21 : vector<32x32xf32>
    %23 = arith.truncf %22 : vector<32x32xf32> to vector<32x32xbf16>
    %c0_11 = arith.constant 0 : index
    %c0_12 = arith.constant 0 : index
    %c0_13 = arith.constant 0 : index
    %24 = vector.load %arg3[%c0_11, %c0_12, %c0_13] : memref<2x32x96xbf16, #tpu.memory_space<vmem>>, vector<1x32x96xbf16>
    %25 = vector.shape_cast %24 : vector<1x32x96xbf16> to vector<32x96xbf16>
    %cst_14 = arith.constant dense<0.000000e+00> : vector<32x96xf32>
    %26 = tpu.matmul %23, %25, %cst_14 {dimension_numbers = #tpu.dot_dimension_numbers<[1], [0], [0], [1], [0, 0, 1, 1], [], []>} : vector<32x32xbf16>, vector<32x96xbf16>, vector<32x96xf32> -> vector<32x96xf32>
    %c32_15 = arith.constant 32 : index
    %c0_16 = arith.constant 0 : index
    %27 = vector.load %arg1[%c32_15, %c0_16] : memref<48x128xf32, #tpu.memory_space<vmem>>, vector<1x96xf32>
    %28 = vector.broadcast %27 : vector<1x96xf32> to vector<32x96xf32>
    %29 = arith.addf %26, %28 : vector<32x96xf32>
    %c0_17 = arith.constant 0 : index
    %c0_18 = arith.constant 0 : index
    %c0_19 = arith.constant 0 : index
    %30 = vector.load %arg4[%c0_17, %c0_18, %c0_19] : memref<2x32x32xf32, #tpu.memory_space<vmem>>, vector<1x32x32xf32>
    %31 = vector.shape_cast %30 : vector<1x32x32xf32> to vector<32x32xf32>
    %cst_20 = arith.constant 0.000000e+00 : f32
    %32 = vector.broadcast %cst_20 : f32 to vector<32x32xf32>
    %33 = vector.extract_strided_slice %29 {offsets = [0, 0], sizes = [32, 8], strides = [1, 1]} : vector<32x96xf32> to vector<32x8xf32>
    %cst_21 = arith.constant 0.353553385 : f32
    %34 = vector.broadcast %cst_21 : f32 to vector<32x8xf32>
    %35 = arith.mulf %33, %34 : vector<32x8xf32>
    %36 = vector.extract_strided_slice %29 {offsets = [0, 32], sizes = [32, 8], strides = [1, 1]} : vector<32x96xf32> to vector<32x8xf32>
    %37 = vector.extract_strided_slice %29 {offsets = [0, 64], sizes = [32, 8], strides = [1, 1]} : vector<32x96xf32> to vector<32x8xf32>
    %cst_22 = arith.constant dense<0.000000e+00> : vector<32x32xf32>
    %38 = tpu.matmul %35, %36, %cst_22 {dimension_numbers = #tpu.dot_dimension_numbers<[1], [1], [0], [0], [0, 0, 1, 0], [], []>} : vector<32x8xf32>, vector<32x8xf32>, vector<32x32xf32> -> vector<32x32xf32>
    %39 = arith.addf %38, %1 : vector<32x32xf32>
    %cst_23 = arith.constant dense<0xFF800000> : vector<32xf32>
    %40 = vector.multi_reduction <maximumf>, %39, %cst_23 [1] : vector<32x32xf32> to vector<32xf32>
    %41 = vector.shape_cast %40 : vector<32xf32> to vector<32x1xf32>
    %42 = vector.broadcast %41 : vector<32x1xf32> to vector<32x32xf32>
    %43 = arith.subf %39, %42 : vector<32x32xf32>
    %44 = math.exp %43 : vector<32x32xf32>
    %cst_24 = arith.constant dense<0.000000e+00> : vector<32xf32>
    %45 = vector.multi_reduction <add>, %44, %cst_24 [1] : vector<32x32xf32> to vector<32xf32>
    %46 = vector.shape_cast %45 : vector<32xf32> to vector<32x1xf32>
    %47 = tpu.reciprocal %46 {approx = true} : vector<32x1xf32> -> vector<32x1xf32>
    %48 = vector.broadcast %47 : vector<32x1xf32> to vector<32x32xf32>
    %49 = arith.mulf %44, %48 : vector<32x32xf32>
    %cst_25 = arith.constant dense<0.000000e+00> : vector<32x8xf32>
    %50 = tpu.matmul %49, %37, %cst_25 {dimension_numbers = #tpu.dot_dimension_numbers<[1], [0], [0], [1], [0, 0, 1, 1], [], []>} : vector<32x32xf32>, vector<32x8xf32>, vector<32x8xf32> -> vector<32x8xf32>
    %51 = vector.extract_strided_slice %31 {offsets = [0, 0], sizes = [8, 32], strides = [1, 1]} : vector<32x32xf32> to vector<8x32xf32>
    %cst_26 = arith.constant dense<0.000000e+00> : vector<32x32xf32>
    %52 = tpu.matmul %50, %51, %cst_26 {dimension_numbers = #tpu.dot_dimension_numbers<[1], [0], [0], [1], [0, 0, 1, 1], [], []>} : vector<32x8xf32>, vector<8x32xf32>, vector<32x32xf32> -> vector<32x32xf32>
    %53 = arith.addf %32, %52 : vector<32x32xf32>
    %54 = vector.extract_strided_slice %29 {offsets = [0, 8], sizes = [32, 8], strides = [1, 1]} : vector<32x96xf32> to vector<32x8xf32>
    %cst_27 = arith.constant 0.353553385 : f32
    %55 = vector.broadcast %cst_27 : f32 to vector<32x8xf32>
    %56 = arith.mulf %54, %55 : vector<32x8xf32>
    %57 = vector.extract_strided_slice %29 {offsets = [0, 40], sizes = [32, 8], strides = [1, 1]} : vector<32x96xf32> to vector<32x8xf32>
    %58 = vector.extract_strided_slice %29 {offsets = [0, 72], sizes = [32, 8], strides = [1, 1]} : vector<32x96xf32> to vector<32x8xf32>
    %cst_28 = arith.constant dense<0.000000e+00> : vector<32x32xf32>
    %59 = tpu.matmul %56, %57, %cst_28 {dimension_numbers = #tpu.dot_dimension_numbers<[1], [1], [0], [0], [0, 0, 1, 0], [], []>} : vector<32x8xf32>, vector<32x8xf32>, vector<32x32xf32> -> vector<32x32xf32>
    %60 = arith.addf %59, %1 : vector<32x32xf32>
    %cst_29 = arith.constant dense<0xFF800000> : vector<32xf32>
    %61 = vector.multi_reduction <maximumf>, %60, %cst_29 [1] : vector<32x32xf32> to vector<32xf32>
    %62 = vector.shape_cast %61 : vector<32xf32> to vector<32x1xf32>
    %63 = vector.broadcast %62 : vector<32x1xf32> to vector<32x32xf32>
    %64 = arith.subf %60, %63 : vector<32x32xf32>
    %65 = math.exp %64 : vector<32x32xf32>
    %cst_30 = arith.constant dense<0.000000e+00> : vector<32xf32>
    %66 = vector.multi_reduction <add>, %65, %cst_30 [1] : vector<32x32xf32> to vector<32xf32>
    %67 = vector.shape_cast %66 : vector<32xf32> to vector<32x1xf32>
    %68 = tpu.reciprocal %67 {approx = true} : vector<32x1xf32> -> vector<32x1xf32>
    %69 = vector.broadcast %68 : vector<32x1xf32> to vector<32x32xf32>
    %70 = arith.mulf %65, %69 : vector<32x32xf32>
    %cst_31 = arith.constant dense<0.000000e+00> : vector<32x8xf32>
    %71 = tpu.matmul %70, %58, %cst_31 {dimension_numbers = #tpu.dot_dimension_numbers<[1], [0], [0], [1], [0, 0, 1, 1], [], []>} : vector<32x32xf32>, vector<32x8xf32>, vector<32x8xf32> -> vector<32x8xf32>
    %72 = vector.extract_strided_slice %31 {offsets = [8, 0], sizes = [8, 32], strides = [1, 1]} : vector<32x32xf32> to vector<8x32xf32>
    %cst_32 = arith.constant dense<0.000000e+00> : vector<32x32xf32>
    %73 = tpu.matmul %71, %72, %cst_32 {dimension_numbers = #tpu.dot_dimension_numbers<[1], [0], [0], [1], [0, 0, 1, 1], [], []>} : vector<32x8xf32>, vector<8x32xf32>, vector<32x32xf32> -> vector<32x32xf32>
    %74 = arith.addf %53, %73 : vector<32x32xf32>
    %75 = vector.extract_strided_slice %29 {offsets = [0, 16], sizes = [32, 8], strides = [1, 1]} : vector<32x96xf32> to vector<32x8xf32>
    %cst_33 = arith.constant 0.353553385 : f32
    %76 = vector.broadcast %cst_33 : f32 to vector<32x8xf32>
    %77 = arith.mulf %75, %76 : vector<32x8xf32>
    %78 = vector.extract_strided_slice %29 {offsets = [0, 48], sizes = [32, 8], strides = [1, 1]} : vector<32x96xf32> to vector<32x8xf32>
    %79 = vector.extract_strided_slice %29 {offsets = [0, 80], sizes = [32, 8], strides = [1, 1]} : vector<32x96xf32> to vector<32x8xf32>
    %cst_34 = arith.constant dense<0.000000e+00> : vector<32x32xf32>
    %80 = tpu.matmul %77, %78, %cst_34 {dimension_numbers = #tpu.dot_dimension_numbers<[1], [1], [0], [0], [0, 0, 1, 0], [], []>} : vector<32x8xf32>, vector<32x8xf32>, vector<32x32xf32> -> vector<32x32xf32>
    %81 = arith.addf %80, %1 : vector<32x32xf32>
    %cst_35 = arith.constant dense<0xFF800000> : vector<32xf32>
    %82 = vector.multi_reduction <maximumf>, %81, %cst_35 [1] : vector<32x32xf32> to vector<32xf32>
    %83 = vector.shape_cast %82 : vector<32xf32> to vector<32x1xf32>
    %84 = vector.broadcast %83 : vector<32x1xf32> to vector<32x32xf32>
    %85 = arith.subf %81, %84 : vector<32x32xf32>
    %86 = math.exp %85 : vector<32x32xf32>
    %cst_36 = arith.constant dense<0.000000e+00> : vector<32xf32>
    %87 = vector.multi_reduction <add>, %86, %cst_36 [1] : vector<32x32xf32> to vector<32xf32>
    %88 = vector.shape_cast %87 : vector<32xf32> to vector<32x1xf32>
    %89 = tpu.reciprocal %88 {approx = true} : vector<32x1xf32> -> vector<32x1xf32>
    %90 = vector.broadcast %89 : vector<32x1xf32> to vector<32x32xf32>
    %91 = arith.mulf %86, %90 : vector<32x32xf32>
    %cst_37 = arith.constant dense<0.000000e+00> : vector<32x8xf32>
    %92 = tpu.matmul %91, %79, %cst_37 {dimension_numbers = #tpu.dot_dimension_numbers<[1], [0], [0], [1], [0, 0, 1, 1], [], []>} : vector<32x32xf32>, vector<32x8xf32>, vector<32x8xf32> -> vector<32x8xf32>
    %93 = vector.extract_strided_slice %31 {offsets = [16, 0], sizes = [8, 32], strides = [1, 1]} : vector<32x32xf32> to vector<8x32xf32>
    %cst_38 = arith.constant dense<0.000000e+00> : vector<32x32xf32>
    %94 = tpu.matmul %92, %93, %cst_38 {dimension_numbers = #tpu.dot_dimension_numbers<[1], [0], [0], [1], [0, 0, 1, 1], [], []>} : vector<32x8xf32>, vector<8x32xf32>, vector<32x32xf32> -> vector<32x32xf32>
    %95 = arith.addf %74, %94 : vector<32x32xf32>
    %96 = vector.extract_strided_slice %29 {offsets = [0, 24], sizes = [32, 8], strides = [1, 1]} : vector<32x96xf32> to vector<32x8xf32>
    %cst_39 = arith.constant 0.353553385 : f32
    %97 = vector.broadcast %cst_39 : f32 to vector<32x8xf32>
    %98 = arith.mulf %96, %97 : vector<32x8xf32>
    %99 = vector.extract_strided_slice %29 {offsets = [0, 56], sizes = [32, 8], strides = [1, 1]} : vector<32x96xf32> to vector<32x8xf32>
    %100 = vector.extract_strided_slice %29 {offsets = [0, 88], sizes = [32, 8], strides = [1, 1]} : vector<32x96xf32> to vector<32x8xf32>
    %cst_40 = arith.constant dense<0.000000e+00> : vector<32x32xf32>
    %101 = tpu.matmul %98, %99, %cst_40 {dimension_numbers = #tpu.dot_dimension_numbers<[1], [1], [0], [0], [0, 0, 1, 0], [], []>} : vector<32x8xf32>, vector<32x8xf32>, vector<32x32xf32> -> vector<32x32xf32>
    %102 = arith.addf %101, %1 : vector<32x32xf32>
    %cst_41 = arith.constant dense<0xFF800000> : vector<32xf32>
    %103 = vector.multi_reduction <maximumf>, %102, %cst_41 [1] : vector<32x32xf32> to vector<32xf32>
    %104 = vector.shape_cast %103 : vector<32xf32> to vector<32x1xf32>
    %105 = vector.broadcast %104 : vector<32x1xf32> to vector<32x32xf32>
    %106 = arith.subf %102, %105 : vector<32x32xf32>
    %107 = math.exp %106 : vector<32x32xf32>
    %cst_42 = arith.constant dense<0.000000e+00> : vector<32xf32>
    %108 = vector.multi_reduction <add>, %107, %cst_42 [1] : vector<32x32xf32> to vector<32xf32>
    %109 = vector.shape_cast %108 : vector<32xf32> to vector<32x1xf32>
    %110 = tpu.reciprocal %109 {approx = true} : vector<32x1xf32> -> vector<32x1xf32>
    %111 = vector.broadcast %110 : vector<32x1xf32> to vector<32x32xf32>
    %112 = arith.mulf %107, %111 : vector<32x32xf32>
    %cst_43 = arith.constant dense<0.000000e+00> : vector<32x8xf32>
    %113 = tpu.matmul %112, %100, %cst_43 {dimension_numbers = #tpu.dot_dimension_numbers<[1], [0], [0], [1], [0, 0, 1, 1], [], []>} : vector<32x32xf32>, vector<32x8xf32>, vector<32x8xf32> -> vector<32x8xf32>
    %114 = vector.extract_strided_slice %31 {offsets = [24, 0], sizes = [8, 32], strides = [1, 1]} : vector<32x32xf32> to vector<8x32xf32>
    %cst_44 = arith.constant dense<0.000000e+00> : vector<32x32xf32>
    %115 = tpu.matmul %113, %114, %cst_44 {dimension_numbers = #tpu.dot_dimension_numbers<[1], [0], [0], [1], [0, 0, 1, 1], [], []>} : vector<32x8xf32>, vector<8x32xf32>, vector<32x32xf32> -> vector<32x32xf32>
    %116 = arith.addf %95, %115 : vector<32x32xf32>
    %117 = arith.addf %6, %116 : vector<32x32xf32>
    %c33 = arith.constant 33 : index
    %c0_45 = arith.constant 0 : index
    %118 = vector.load %arg1[%c33, %c0_45] : memref<48x128xf32, #tpu.memory_space<vmem>>, vector<1x32xf32>
    %119 = vector.broadcast %118 : vector<1x32xf32> to vector<32x32xf32>
    %120 = arith.addf %117, %119 : vector<32x32xf32>
    %cst_46 = arith.constant dense<0.000000e+00> : vector<32xf32>
    %121 = vector.multi_reduction <add>, %120, %cst_46 [1] : vector<32x32xf32> to vector<32xf32>
    %122 = vector.shape_cast %121 : vector<32xf32> to vector<32x1xf32>
    %cst_47 = arith.constant 3.200000e+01 : f32
    %123 = vector.broadcast %cst_47 : f32 to vector<32x1xf32>
    %124 = arith.divf %122, %123 : vector<32x1xf32>
    %125 = vector.broadcast %124 : vector<32x1xf32> to vector<32x32xf32>
    %126 = arith.subf %120, %125 : vector<32x32xf32>
    %127 = arith.mulf %126, %126 : vector<32x32xf32>
    %cst_48 = arith.constant dense<0.000000e+00> : vector<32xf32>
    %128 = vector.multi_reduction <add>, %127, %cst_48 [1] : vector<32x32xf32> to vector<32xf32>
    %129 = vector.shape_cast %128 : vector<32xf32> to vector<32x1xf32>
    %cst_49 = arith.constant 3.200000e+01 : f32
    %130 = vector.broadcast %cst_49 : f32 to vector<32x1xf32>
    %131 = arith.divf %129, %130 : vector<32x1xf32>
    %cst_50 = arith.constant 9.99999974E-6 : f32
    %132 = vector.broadcast %cst_50 : f32 to vector<32x1xf32>
    %133 = arith.addf %131, %132 : vector<32x1xf32>
    %134 = math.rsqrt %133 : vector<32x1xf32>
    %135 = vector.broadcast %134 : vector<32x1xf32> to vector<32x32xf32>
    %136 = arith.mulf %126, %135 : vector<32x32xf32>
    %137 = arith.truncf %136 : vector<32x32xf32> to vector<32x32xbf16>
    %c0_51 = arith.constant 0 : index
    %c0_52 = arith.constant 0 : index
    %c0_53 = arith.constant 0 : index
    %138 = vector.load %arg5[%c0_51, %c0_52, %c0_53] : memref<2x32x64xbf16, #tpu.memory_space<vmem>>, vector<1x32x64xbf16>
    %139 = vector.shape_cast %138 : vector<1x32x64xbf16> to vector<32x64xbf16>
    %cst_54 = arith.constant dense<0.000000e+00> : vector<32x64xf32>
    %140 = tpu.matmul %137, %139, %cst_54 {dimension_numbers = #tpu.dot_dimension_numbers<[1], [0], [0], [1], [0, 0, 1, 1], [], []>} : vector<32x32xbf16>, vector<32x64xbf16>, vector<32x64xf32> -> vector<32x64xf32>
    %c34 = arith.constant 34 : index
    %c0_55 = arith.constant 0 : index
    %141 = vector.load %arg1[%c34, %c0_55] : memref<48x128xf32, #tpu.memory_space<vmem>>, vector<1x64xf32>
    %142 = vector.broadcast %141 : vector<1x64xf32> to vector<32x64xf32>
    %143 = arith.addf %140, %142 : vector<32x64xf32>
    %cst_56 = arith.constant 5.000000e-01 : f32
    %144 = vector.broadcast %cst_56 : f32 to vector<32x64xf32>
    %145 = arith.mulf %144, %143 : vector<32x64xf32>
    %cst_57 = arith.constant 4.471500e-02 : f32
    %146 = vector.broadcast %cst_57 : f32 to vector<32x64xf32>
    %147 = arith.mulf %146, %143 : vector<32x64xf32>
    %148 = arith.mulf %147, %143 : vector<32x64xf32>
    %149 = arith.mulf %148, %143 : vector<32x64xf32>
    %150 = arith.addf %143, %149 : vector<32x64xf32>
    %cst_58 = arith.constant 0.797884583 : f32
    %151 = vector.broadcast %cst_58 : f32 to vector<32x64xf32>
    %152 = arith.mulf %151, %150 : vector<32x64xf32>
    %153 = math.tanh %152 : vector<32x64xf32>
    %cst_59 = arith.constant 1.000000e+00 : f32
    %154 = vector.broadcast %cst_59 : f32 to vector<32x64xf32>
    %155 = arith.addf %154, %153 : vector<32x64xf32>
    %156 = arith.mulf %145, %155 : vector<32x64xf32>
    %157 = arith.truncf %156 : vector<32x64xf32> to vector<32x64xbf16>
    %c0_60 = arith.constant 0 : index
    %c0_61 = arith.constant 0 : index
    %c0_62 = arith.constant 0 : index
    %158 = vector.load %arg6[%c0_60, %c0_61, %c0_62] : memref<2x64x32xbf16, #tpu.memory_space<vmem>>, vector<1x64x32xbf16>
    %159 = vector.shape_cast %158 : vector<1x64x32xbf16> to vector<64x32xbf16>
    %cst_63 = arith.constant dense<0.000000e+00> : vector<32x32xf32>
    %160 = tpu.matmul %157, %159, %cst_63 {dimension_numbers = #tpu.dot_dimension_numbers<[1], [0], [0], [1], [0, 0, 1, 1], [], []>} : vector<32x64xbf16>, vector<64x32xbf16>, vector<32x32xf32> -> vector<32x32xf32>
    %161 = arith.addf %120, %160 : vector<32x32xf32>
    %c35 = arith.constant 35 : index
    %c0_64 = arith.constant 0 : index
    %162 = vector.load %arg1[%c35, %c0_64] : memref<48x128xf32, #tpu.memory_space<vmem>>, vector<1x32xf32>
    %163 = vector.broadcast %162 : vector<1x32xf32> to vector<32x32xf32>
    %164 = arith.addf %161, %163 : vector<32x32xf32>
    %cst_65 = arith.constant dense<0.000000e+00> : vector<32xf32>
    %165 = vector.multi_reduction <add>, %164, %cst_65 [1] : vector<32x32xf32> to vector<32xf32>
    %166 = vector.shape_cast %165 : vector<32xf32> to vector<32x1xf32>
    %cst_66 = arith.constant 3.200000e+01 : f32
    %167 = vector.broadcast %cst_66 : f32 to vector<32x1xf32>
    %168 = arith.divf %166, %167 : vector<32x1xf32>
    %169 = vector.broadcast %168 : vector<32x1xf32> to vector<32x32xf32>
    %170 = arith.subf %164, %169 : vector<32x32xf32>
    %171 = arith.mulf %170, %170 : vector<32x32xf32>
    %cst_67 = arith.constant dense<0.000000e+00> : vector<32xf32>
    %172 = vector.multi_reduction <add>, %171, %cst_67 [1] : vector<32x32xf32> to vector<32xf32>
    %173 = vector.shape_cast %172 : vector<32xf32> to vector<32x1xf32>
    %cst_68 = arith.constant 3.200000e+01 : f32
    %174 = vector.broadcast %cst_68 : f32 to vector<32x1xf32>
    %175 = arith.divf %173, %174 : vector<32x1xf32>
    %cst_69 = arith.constant 9.99999974E-6 : f32
    %176 = vector.broadcast %cst_69 : f32 to vector<32x1xf32>
    %177 = arith.addf %175, %176 : vector<32x1xf32>
    %178 = math.rsqrt %177 : vector<32x1xf32>
    %179 = vector.broadcast %178 : vector<32x1xf32> to vector<32x32xf32>
    %180 = arith.mulf %170, %179 : vector<32x32xf32>
    %181 = arith.truncf %180 : vector<32x32xf32> to vector<32x32xbf16>
    %c1 = arith.constant 1 : index
    %c0_70 = arith.constant 0 : index
    %c0_71 = arith.constant 0 : index
    %182 = vector.load %arg3[%c1, %c0_70, %c0_71] : memref<2x32x96xbf16, #tpu.memory_space<vmem>>, vector<1x32x96xbf16>
    %183 = vector.shape_cast %182 : vector<1x32x96xbf16> to vector<32x96xbf16>
    %cst_72 = arith.constant dense<0.000000e+00> : vector<32x96xf32>
    %184 = tpu.matmul %181, %183, %cst_72 {dimension_numbers = #tpu.dot_dimension_numbers<[1], [0], [0], [1], [0, 0, 1, 1], [], []>} : vector<32x32xbf16>, vector<32x96xbf16>, vector<32x96xf32> -> vector<32x96xf32>
    %c36 = arith.constant 36 : index
    %c0_73 = arith.constant 0 : index
    %185 = vector.load %arg1[%c36, %c0_73] : memref<48x128xf32, #tpu.memory_space<vmem>>, vector<1x96xf32>
    %186 = vector.broadcast %185 : vector<1x96xf32> to vector<32x96xf32>
    %187 = arith.addf %184, %186 : vector<32x96xf32>
    %c1_74 = arith.constant 1 : index
    %c0_75 = arith.constant 0 : index
    %c0_76 = arith.constant 0 : index
    %188 = vector.load %arg4[%c1_74, %c0_75, %c0_76] : memref<2x32x32xf32, #tpu.memory_space<vmem>>, vector<1x32x32xf32>
    %189 = vector.shape_cast %188 : vector<1x32x32xf32> to vector<32x32xf32>
    %cst_77 = arith.constant 0.000000e+00 : f32
    %190 = vector.broadcast %cst_77 : f32 to vector<32x32xf32>
    %191 = vector.extract_strided_slice %187 {offsets = [0, 0], sizes = [32, 8], strides = [1, 1]} : vector<32x96xf32> to vector<32x8xf32>
    %cst_78 = arith.constant 0.353553385 : f32
    %192 = vector.broadcast %cst_78 : f32 to vector<32x8xf32>
    %193 = arith.mulf %191, %192 : vector<32x8xf32>
    %194 = vector.extract_strided_slice %187 {offsets = [0, 32], sizes = [32, 8], strides = [1, 1]} : vector<32x96xf32> to vector<32x8xf32>
    %195 = vector.extract_strided_slice %187 {offsets = [0, 64], sizes = [32, 8], strides = [1, 1]} : vector<32x96xf32> to vector<32x8xf32>
    %cst_79 = arith.constant dense<0.000000e+00> : vector<32x32xf32>
    %196 = tpu.matmul %193, %194, %cst_79 {dimension_numbers = #tpu.dot_dimension_numbers<[1], [1], [0], [0], [0, 0, 1, 0], [], []>} : vector<32x8xf32>, vector<32x8xf32>, vector<32x32xf32> -> vector<32x32xf32>
    %197 = arith.addf %196, %1 : vector<32x32xf32>
    %cst_80 = arith.constant dense<0xFF800000> : vector<32xf32>
    %198 = vector.multi_reduction <maximumf>, %197, %cst_80 [1] : vector<32x32xf32> to vector<32xf32>
    %199 = vector.shape_cast %198 : vector<32xf32> to vector<32x1xf32>
    %200 = vector.broadcast %199 : vector<32x1xf32> to vector<32x32xf32>
    %201 = arith.subf %197, %200 : vector<32x32xf32>
    %202 = math.exp %201 : vector<32x32xf32>
    %cst_81 = arith.constant dense<0.000000e+00> : vector<32xf32>
    %203 = vector.multi_reduction <add>, %202, %cst_81 [1] : vector<32x32xf32> to vector<32xf32>
    %204 = vector.shape_cast %203 : vector<32xf32> to vector<32x1xf32>
    %205 = tpu.reciprocal %204 {approx = true} : vector<32x1xf32> -> vector<32x1xf32>
    %206 = vector.broadcast %205 : vector<32x1xf32> to vector<32x32xf32>
    %207 = arith.mulf %202, %206 : vector<32x32xf32>
    %cst_82 = arith.constant dense<0.000000e+00> : vector<32x8xf32>
    %208 = tpu.matmul %207, %195, %cst_82 {dimension_numbers = #tpu.dot_dimension_numbers<[1], [0], [0], [1], [0, 0, 1, 1], [], []>} : vector<32x32xf32>, vector<32x8xf32>, vector<32x8xf32> -> vector<32x8xf32>
    %209 = vector.extract_strided_slice %189 {offsets = [0, 0], sizes = [8, 32], strides = [1, 1]} : vector<32x32xf32> to vector<8x32xf32>
    %cst_83 = arith.constant dense<0.000000e+00> : vector<32x32xf32>
    %210 = tpu.matmul %208, %209, %cst_83 {dimension_numbers = #tpu.dot_dimension_numbers<[1], [0], [0], [1], [0, 0, 1, 1], [], []>} : vector<32x8xf32>, vector<8x32xf32>, vector<32x32xf32> -> vector<32x32xf32>
    %211 = arith.addf %190, %210 : vector<32x32xf32>
    %212 = vector.extract_strided_slice %187 {offsets = [0, 8], sizes = [32, 8], strides = [1, 1]} : vector<32x96xf32> to vector<32x8xf32>
    %cst_84 = arith.constant 0.353553385 : f32
    %213 = vector.broadcast %cst_84 : f32 to vector<32x8xf32>
    %214 = arith.mulf %212, %213 : vector<32x8xf32>
    %215 = vector.extract_strided_slice %187 {offsets = [0, 40], sizes = [32, 8], strides = [1, 1]} : vector<32x96xf32> to vector<32x8xf32>
    %216 = vector.extract_strided_slice %187 {offsets = [0, 72], sizes = [32, 8], strides = [1, 1]} : vector<32x96xf32> to vector<32x8xf32>
    %cst_85 = arith.constant dense<0.000000e+00> : vector<32x32xf32>
    %217 = tpu.matmul %214, %215, %cst_85 {dimension_numbers = #tpu.dot_dimension_numbers<[1], [1], [0], [0], [0, 0, 1, 0], [], []>} : vector<32x8xf32>, vector<32x8xf32>, vector<32x32xf32> -> vector<32x32xf32>
    %218 = arith.addf %217, %1 : vector<32x32xf32>
    %cst_86 = arith.constant dense<0xFF800000> : vector<32xf32>
    %219 = vector.multi_reduction <maximumf>, %218, %cst_86 [1] : vector<32x32xf32> to vector<32xf32>
    %220 = vector.shape_cast %219 : vector<32xf32> to vector<32x1xf32>
    %221 = vector.broadcast %220 : vector<32x1xf32> to vector<32x32xf32>
    %222 = arith.subf %218, %221 : vector<32x32xf32>
    %223 = math.exp %222 : vector<32x32xf32>
    %cst_87 = arith.constant dense<0.000000e+00> : vector<32xf32>
    %224 = vector.multi_reduction <add>, %223, %cst_87 [1] : vector<32x32xf32> to vector<32xf32>
    %225 = vector.shape_cast %224 : vector<32xf32> to vector<32x1xf32>
    %226 = tpu.reciprocal %225 {approx = true} : vector<32x1xf32> -> vector<32x1xf32>
    %227 = vector.broadcast %226 : vector<32x1xf32> to vector<32x32xf32>
    %228 = arith.mulf %223, %227 : vector<32x32xf32>
    %cst_88 = arith.constant dense<0.000000e+00> : vector<32x8xf32>
    %229 = tpu.matmul %228, %216, %cst_88 {dimension_numbers = #tpu.dot_dimension_numbers<[1], [0], [0], [1], [0, 0, 1, 1], [], []>} : vector<32x32xf32>, vector<32x8xf32>, vector<32x8xf32> -> vector<32x8xf32>
    %230 = vector.extract_strided_slice %189 {offsets = [8, 0], sizes = [8, 32], strides = [1, 1]} : vector<32x32xf32> to vector<8x32xf32>
    %cst_89 = arith.constant dense<0.000000e+00> : vector<32x32xf32>
    %231 = tpu.matmul %229, %230, %cst_89 {dimension_numbers = #tpu.dot_dimension_numbers<[1], [0], [0], [1], [0, 0, 1, 1], [], []>} : vector<32x8xf32>, vector<8x32xf32>, vector<32x32xf32> -> vector<32x32xf32>
    %232 = arith.addf %211, %231 : vector<32x32xf32>
    %233 = vector.extract_strided_slice %187 {offsets = [0, 16], sizes = [32, 8], strides = [1, 1]} : vector<32x96xf32> to vector<32x8xf32>
    %cst_90 = arith.constant 0.353553385 : f32
    %234 = vector.broadcast %cst_90 : f32 to vector<32x8xf32>
    %235 = arith.mulf %233, %234 : vector<32x8xf32>
    %236 = vector.extract_strided_slice %187 {offsets = [0, 48], sizes = [32, 8], strides = [1, 1]} : vector<32x96xf32> to vector<32x8xf32>
    %237 = vector.extract_strided_slice %187 {offsets = [0, 80], sizes = [32, 8], strides = [1, 1]} : vector<32x96xf32> to vector<32x8xf32>
    %cst_91 = arith.constant dense<0.000000e+00> : vector<32x32xf32>
    %238 = tpu.matmul %235, %236, %cst_91 {dimension_numbers = #tpu.dot_dimension_numbers<[1], [1], [0], [0], [0, 0, 1, 0], [], []>} : vector<32x8xf32>, vector<32x8xf32>, vector<32x32xf32> -> vector<32x32xf32>
    %239 = arith.addf %238, %1 : vector<32x32xf32>
    %cst_92 = arith.constant dense<0xFF800000> : vector<32xf32>
    %240 = vector.multi_reduction <maximumf>, %239, %cst_92 [1] : vector<32x32xf32> to vector<32xf32>
    %241 = vector.shape_cast %240 : vector<32xf32> to vector<32x1xf32>
    %242 = vector.broadcast %241 : vector<32x1xf32> to vector<32x32xf32>
    %243 = arith.subf %239, %242 : vector<32x32xf32>
    %244 = math.exp %243 : vector<32x32xf32>
    %cst_93 = arith.constant dense<0.000000e+00> : vector<32xf32>
    %245 = vector.multi_reduction <add>, %244, %cst_93 [1] : vector<32x32xf32> to vector<32xf32>
    %246 = vector.shape_cast %245 : vector<32xf32> to vector<32x1xf32>
    %247 = tpu.reciprocal %246 {approx = true} : vector<32x1xf32> -> vector<32x1xf32>
    %248 = vector.broadcast %247 : vector<32x1xf32> to vector<32x32xf32>
    %249 = arith.mulf %244, %248 : vector<32x32xf32>
    %cst_94 = arith.constant dense<0.000000e+00> : vector<32x8xf32>
    %250 = tpu.matmul %249, %237, %cst_94 {dimension_numbers = #tpu.dot_dimension_numbers<[1], [0], [0], [1], [0, 0, 1, 1], [], []>} : vector<32x32xf32>, vector<32x8xf32>, vector<32x8xf32> -> vector<32x8xf32>
    %251 = vector.extract_strided_slice %189 {offsets = [16, 0], sizes = [8, 32], strides = [1, 1]} : vector<32x32xf32> to vector<8x32xf32>
    %cst_95 = arith.constant dense<0.000000e+00> : vector<32x32xf32>
    %252 = tpu.matmul %250, %251, %cst_95 {dimension_numbers = #tpu.dot_dimension_numbers<[1], [0], [0], [1], [0, 0, 1, 1], [], []>} : vector<32x8xf32>, vector<8x32xf32>, vector<32x32xf32> -> vector<32x32xf32>
    %253 = arith.addf %232, %252 : vector<32x32xf32>
    %254 = vector.extract_strided_slice %187 {offsets = [0, 24], sizes = [32, 8], strides = [1, 1]} : vector<32x96xf32> to vector<32x8xf32>
    %cst_96 = arith.constant 0.353553385 : f32
    %255 = vector.broadcast %cst_96 : f32 to vector<32x8xf32>
    %256 = arith.mulf %254, %255 : vector<32x8xf32>
    %257 = vector.extract_strided_slice %187 {offsets = [0, 56], sizes = [32, 8], strides = [1, 1]} : vector<32x96xf32> to vector<32x8xf32>
    %258 = vector.extract_strided_slice %187 {offsets = [0, 88], sizes = [32, 8], strides = [1, 1]} : vector<32x96xf32> to vector<32x8xf32>
    %cst_97 = arith.constant dense<0.000000e+00> : vector<32x32xf32>
    %259 = tpu.matmul %256, %257, %cst_97 {dimension_numbers = #tpu.dot_dimension_numbers<[1], [1], [0], [0], [0, 0, 1, 0], [], []>} : vector<32x8xf32>, vector<32x8xf32>, vector<32x32xf32> -> vector<32x32xf32>
    %260 = arith.addf %259, %1 : vector<32x32xf32>
    %cst_98 = arith.constant dense<0xFF800000> : vector<32xf32>
    %261 = vector.multi_reduction <maximumf>, %260, %cst_98 [1] : vector<32x32xf32> to vector<32xf32>
    %262 = vector.shape_cast %261 : vector<32xf32> to vector<32x1xf32>
    %263 = vector.broadcast %262 : vector<32x1xf32> to vector<32x32xf32>
    %264 = arith.subf %260, %263 : vector<32x32xf32>
    %265 = math.exp %264 : vector<32x32xf32>
    %cst_99 = arith.constant dense<0.000000e+00> : vector<32xf32>
    %266 = vector.multi_reduction <add>, %265, %cst_99 [1] : vector<32x32xf32> to vector<32xf32>
    %267 = vector.shape_cast %266 : vector<32xf32> to vector<32x1xf32>
    %268 = tpu.reciprocal %267 {approx = true} : vector<32x1xf32> -> vector<32x1xf32>
    %269 = vector.broadcast %268 : vector<32x1xf32> to vector<32x32xf32>
    %270 = arith.mulf %265, %269 : vector<32x32xf32>
    %cst_100 = arith.constant dense<0.000000e+00> : vector<32x8xf32>
    %271 = tpu.matmul %270, %258, %cst_100 {dimension_numbers = #tpu.dot_dimension_numbers<[1], [0], [0], [1], [0, 0, 1, 1], [], []>} : vector<32x32xf32>, vector<32x8xf32>, vector<32x8xf32> -> vector<32x8xf32>
    %272 = vector.extract_strided_slice %189 {offsets = [24, 0], sizes = [8, 32], strides = [1, 1]} : vector<32x32xf32> to vector<8x32xf32>
    %cst_101 = arith.constant dense<0.000000e+00> : vector<32x32xf32>
    %273 = tpu.matmul %271, %272, %cst_101 {dimension_numbers = #tpu.dot_dimension_numbers<[1], [0], [0], [1], [0, 0, 1, 1], [], []>} : vector<32x8xf32>, vector<8x32xf32>, vector<32x32xf32> -> vector<32x32xf32>
    %274 = arith.addf %253, %273 : vector<32x32xf32>
    %275 = arith.addf %164, %274 : vector<32x32xf32>
    %c37 = arith.constant 37 : index
    %c0_102 = arith.constant 0 : index
    %276 = vector.load %arg1[%c37, %c0_102] : memref<48x128xf32, #tpu.memory_space<vmem>>, vector<1x32xf32>
    %277 = vector.broadcast %276 : vector<1x32xf32> to vector<32x32xf32>
    %278 = arith.addf %275, %277 : vector<32x32xf32>
    %cst_103 = arith.constant dense<0.000000e+00> : vector<32xf32>
    %279 = vector.multi_reduction <add>, %278, %cst_103 [1] : vector<32x32xf32> to vector<32xf32>
    %280 = vector.shape_cast %279 : vector<32xf32> to vector<32x1xf32>
    %cst_104 = arith.constant 3.200000e+01 : f32
    %281 = vector.broadcast %cst_104 : f32 to vector<32x1xf32>
    %282 = arith.divf %280, %281 : vector<32x1xf32>
    %283 = vector.broadcast %282 : vector<32x1xf32> to vector<32x32xf32>
    %284 = arith.subf %278, %283 : vector<32x32xf32>
    %285 = arith.mulf %284, %284 : vector<32x32xf32>
    %cst_105 = arith.constant dense<0.000000e+00> : vector<32xf32>
    %286 = vector.multi_reduction <add>, %285, %cst_105 [1] : vector<32x32xf32> to vector<32xf32>
    %287 = vector.shape_cast %286 : vector<32xf32> to vector<32x1xf32>
    %cst_106 = arith.constant 3.200000e+01 : f32
    %288 = vector.broadcast %cst_106 : f32 to vector<32x1xf32>
    %289 = arith.divf %287, %288 : vector<32x1xf32>
    %cst_107 = arith.constant 9.99999974E-6 : f32
    %290 = vector.broadcast %cst_107 : f32 to vector<32x1xf32>
    %291 = arith.addf %289, %290 : vector<32x1xf32>
    %292 = math.rsqrt %291 : vector<32x1xf32>
    %293 = vector.broadcast %292 : vector<32x1xf32> to vector<32x32xf32>
    %294 = arith.mulf %284, %293 : vector<32x32xf32>
    %295 = arith.truncf %294 : vector<32x32xf32> to vector<32x32xbf16>
    %c1_108 = arith.constant 1 : index
    %c0_109 = arith.constant 0 : index
    %c0_110 = arith.constant 0 : index
    %296 = vector.load %arg5[%c1_108, %c0_109, %c0_110] : memref<2x32x64xbf16, #tpu.memory_space<vmem>>, vector<1x32x64xbf16>
    %297 = vector.shape_cast %296 : vector<1x32x64xbf16> to vector<32x64xbf16>
    %cst_111 = arith.constant dense<0.000000e+00> : vector<32x64xf32>
    %298 = tpu.matmul %295, %297, %cst_111 {dimension_numbers = #tpu.dot_dimension_numbers<[1], [0], [0], [1], [0, 0, 1, 1], [], []>} : vector<32x32xbf16>, vector<32x64xbf16>, vector<32x64xf32> -> vector<32x64xf32>
    %c38 = arith.constant 38 : index
    %c0_112 = arith.constant 0 : index
    %299 = vector.load %arg1[%c38, %c0_112] : memref<48x128xf32, #tpu.memory_space<vmem>>, vector<1x64xf32>
    %300 = vector.broadcast %299 : vector<1x64xf32> to vector<32x64xf32>
    %301 = arith.addf %298, %300 : vector<32x64xf32>
    %cst_113 = arith.constant 5.000000e-01 : f32
    %302 = vector.broadcast %cst_113 : f32 to vector<32x64xf32>
    %303 = arith.mulf %302, %301 : vector<32x64xf32>
    %cst_114 = arith.constant 4.471500e-02 : f32
    %304 = vector.broadcast %cst_114 : f32 to vector<32x64xf32>
    %305 = arith.mulf %304, %301 : vector<32x64xf32>
    %306 = arith.mulf %305, %301 : vector<32x64xf32>
    %307 = arith.mulf %306, %301 : vector<32x64xf32>
    %308 = arith.addf %301, %307 : vector<32x64xf32>
    %cst_115 = arith.constant 0.797884583 : f32
    %309 = vector.broadcast %cst_115 : f32 to vector<32x64xf32>
    %310 = arith.mulf %309, %308 : vector<32x64xf32>
    %311 = math.tanh %310 : vector<32x64xf32>
    %cst_116 = arith.constant 1.000000e+00 : f32
    %312 = vector.broadcast %cst_116 : f32 to vector<32x64xf32>
    %313 = arith.addf %312, %311 : vector<32x64xf32>
    %314 = arith.mulf %303, %313 : vector<32x64xf32>
    %315 = arith.truncf %314 : vector<32x64xf32> to vector<32x64xbf16>
    %c1_117 = arith.constant 1 : index
    %c0_118 = arith.constant 0 : index
    %c0_119 = arith.constant 0 : index
    %316 = vector.load %arg6[%c1_117, %c0_118, %c0_119] : memref<2x64x32xbf16, #tpu.memory_space<vmem>>, vector<1x64x32xbf16>
    %317 = vector.shape_cast %316 : vector<1x64x32xbf16> to vector<64x32xbf16>
    %cst_120 = arith.constant dense<0.000000e+00> : vector<32x32xf32>
    %318 = tpu.matmul %315, %317, %cst_120 {dimension_numbers = #tpu.dot_dimension_numbers<[1], [0], [0], [1], [0, 0, 1, 1], [], []>} : vector<32x64xbf16>, vector<64x32xbf16>, vector<32x32xf32> -> vector<32x32xf32>
    %319 = arith.addf %278, %318 : vector<32x32xf32>
    %c39 = arith.constant 39 : index
    %c0_121 = arith.constant 0 : index
    %320 = vector.load %arg1[%c39, %c0_121] : memref<48x128xf32, #tpu.memory_space<vmem>>, vector<1x32xf32>
    %321 = vector.broadcast %320 : vector<1x32xf32> to vector<32x32xf32>
    %322 = arith.addf %319, %321 : vector<32x32xf32>
    %cst_122 = arith.constant dense<0.000000e+00> : vector<32xf32>
    %323 = vector.multi_reduction <add>, %322, %cst_122 [1] : vector<32x32xf32> to vector<32xf32>
    %324 = vector.shape_cast %323 : vector<32xf32> to vector<32x1xf32>
    %cst_123 = arith.constant 3.200000e+01 : f32
    %325 = vector.broadcast %cst_123 : f32 to vector<32x1xf32>
    %326 = arith.divf %324, %325 : vector<32x1xf32>
    %327 = vector.broadcast %326 : vector<32x1xf32> to vector<32x32xf32>
    %328 = arith.subf %322, %327 : vector<32x32xf32>
    %329 = arith.mulf %328, %328 : vector<32x32xf32>
    %cst_124 = arith.constant dense<0.000000e+00> : vector<32xf32>
    %330 = vector.multi_reduction <add>, %329, %cst_124 [1] : vector<32x32xf32> to vector<32xf32>
    %331 = vector.shape_cast %330 : vector<32xf32> to vector<32x1xf32>
    %cst_125 = arith.constant 3.200000e+01 : f32
    %332 = vector.broadcast %cst_125 : f32 to vector<32x1xf32>
    %333 = arith.divf %331, %332 : vector<32x1xf32>
    %cst_126 = arith.constant 9.99999974E-6 : f32
    %334 = vector.broadcast %cst_126 : f32 to vector<32x1xf32>
    %335 = arith.addf %333, %334 : vector<32x1xf32>
    %336 = math.rsqrt %335 : vector<32x1xf32>
    %337 = vector.broadcast %336 : vector<32x1xf32> to vector<32x32xf32>
    %338 = arith.mulf %328, %337 : vector<32x32xf32>
    %339 = vector.shape_cast %338 : vector<32x32xf32> to vector<2x16x32xf32>
    tpu.wait_dma2 semaphore(%arg12 : memref<!tpu.dma_semaphore, #tpu.memory_space<semaphore_mem>>) src(%arg9 : memref<512x128xbf16, #tpu.memory_space<any>>) dst(%arg11 : memref<512x128xbf16, #tpu.memory_space<vmem>>)
    %cst_127 = arith.constant 0.000000e+00 : f32
    %340 = vector.broadcast %cst_127 : f32 to vector<2x128xf32>
    %341 = vector.extract_strided_slice %339 {offsets = [0, 0, 0], sizes = [2, 1, 32], strides = [1, 1, 1]} : vector<2x16x32xf32> to vector<2x1x32xf32>
    %342 = vector.shape_cast %341 : vector<2x1x32xf32> to vector<2x32xf32>
    %343 = arith.truncf %342 : vector<2x32xf32> to vector<2x32xbf16>
    %c0_128 = arith.constant 0 : index
    %c0_129 = arith.constant 0 : index
    %344 = vector.load %arg11[%c0_128, %c0_129] : memref<512x128xbf16, #tpu.memory_space<vmem>>, vector<32x128xbf16>
    %cst_130 = arith.constant dense<0.000000e+00> : vector<2x128xf32>
    %345 = tpu.matmul %343, %344, %cst_130 {dimension_numbers = #tpu.dot_dimension_numbers<[1], [0], [0], [1], [0, 0, 1, 1], [], []>} : vector<2x32xbf16>, vector<32x128xbf16>, vector<2x128xf32> -> vector<2x128xf32>
    %346 = arith.addf %340, %345 : vector<2x128xf32>
    %347 = vector.extract_strided_slice %339 {offsets = [0, 1, 0], sizes = [2, 1, 32], strides = [1, 1, 1]} : vector<2x16x32xf32> to vector<2x1x32xf32>
    %348 = vector.shape_cast %347 : vector<2x1x32xf32> to vector<2x32xf32>
    %349 = arith.truncf %348 : vector<2x32xf32> to vector<2x32xbf16>
    %c32_131 = arith.constant 32 : index
    %c0_132 = arith.constant 0 : index
    %350 = vector.load %arg11[%c32_131, %c0_132] : memref<512x128xbf16, #tpu.memory_space<vmem>>, vector<32x128xbf16>
    %cst_133 = arith.constant dense<0.000000e+00> : vector<2x128xf32>
    %351 = tpu.matmul %349, %350, %cst_133 {dimension_numbers = #tpu.dot_dimension_numbers<[1], [0], [0], [1], [0, 0, 1, 1], [], []>} : vector<2x32xbf16>, vector<32x128xbf16>, vector<2x128xf32> -> vector<2x128xf32>
    %352 = arith.addf %346, %351 : vector<2x128xf32>
    %353 = vector.extract_strided_slice %339 {offsets = [0, 2, 0], sizes = [2, 1, 32], strides = [1, 1, 1]} : vector<2x16x32xf32> to vector<2x1x32xf32>
    %354 = vector.shape_cast %353 : vector<2x1x32xf32> to vector<2x32xf32>
    %355 = arith.truncf %354 : vector<2x32xf32> to vector<2x32xbf16>
    %c64 = arith.constant 64 : index
    %c0_134 = arith.constant 0 : index
    %356 = vector.load %arg11[%c64, %c0_134] : memref<512x128xbf16, #tpu.memory_space<vmem>>, vector<32x128xbf16>
    %cst_135 = arith.constant dense<0.000000e+00> : vector<2x128xf32>
    %357 = tpu.matmul %355, %356, %cst_135 {dimension_numbers = #tpu.dot_dimension_numbers<[1], [0], [0], [1], [0, 0, 1, 1], [], []>} : vector<2x32xbf16>, vector<32x128xbf16>, vector<2x128xf32> -> vector<2x128xf32>
    %358 = arith.addf %352, %357 : vector<2x128xf32>
    %359 = vector.extract_strided_slice %339 {offsets = [0, 3, 0], sizes = [2, 1, 32], strides = [1, 1, 1]} : vector<2x16x32xf32> to vector<2x1x32xf32>
    %360 = vector.shape_cast %359 : vector<2x1x32xf32> to vector<2x32xf32>
    %361 = arith.truncf %360 : vector<2x32xf32> to vector<2x32xbf16>
    %c96 = arith.constant 96 : index
    %c0_136 = arith.constant 0 : index
    %362 = vector.load %arg11[%c96, %c0_136] : memref<512x128xbf16, #tpu.memory_space<vmem>>, vector<32x128xbf16>
    %cst_137 = arith.constant dense<0.000000e+00> : vector<2x128xf32>
    %363 = tpu.matmul %361, %362, %cst_137 {dimension_numbers = #tpu.dot_dimension_numbers<[1], [0], [0], [1], [0, 0, 1, 1], [], []>} : vector<2x32xbf16>, vector<32x128xbf16>, vector<2x128xf32> -> vector<2x128xf32>
    %364 = arith.addf %358, %363 : vector<2x128xf32>
    %365 = vector.extract_strided_slice %339 {offsets = [0, 4, 0], sizes = [2, 1, 32], strides = [1, 1, 1]} : vector<2x16x32xf32> to vector<2x1x32xf32>
    %366 = vector.shape_cast %365 : vector<2x1x32xf32> to vector<2x32xf32>
    %367 = arith.truncf %366 : vector<2x32xf32> to vector<2x32xbf16>
    %c128 = arith.constant 128 : index
    %c0_138 = arith.constant 0 : index
    %368 = vector.load %arg11[%c128, %c0_138] : memref<512x128xbf16, #tpu.memory_space<vmem>>, vector<32x128xbf16>
    %cst_139 = arith.constant dense<0.000000e+00> : vector<2x128xf32>
    %369 = tpu.matmul %367, %368, %cst_139 {dimension_numbers = #tpu.dot_dimension_numbers<[1], [0], [0], [1], [0, 0, 1, 1], [], []>} : vector<2x32xbf16>, vector<32x128xbf16>, vector<2x128xf32> -> vector<2x128xf32>
    %370 = arith.addf %364, %369 : vector<2x128xf32>
    %371 = vector.extract_strided_slice %339 {offsets = [0, 5, 0], sizes = [2, 1, 32], strides = [1, 1, 1]} : vector<2x16x32xf32> to vector<2x1x32xf32>
    %372 = vector.shape_cast %371 : vector<2x1x32xf32> to vector<2x32xf32>
    %373 = arith.truncf %372 : vector<2x32xf32> to vector<2x32xbf16>
    %c160 = arith.constant 160 : index
    %c0_140 = arith.constant 0 : index
    %374 = vector.load %arg11[%c160, %c0_140] : memref<512x128xbf16, #tpu.memory_space<vmem>>, vector<32x128xbf16>
    %cst_141 = arith.constant dense<0.000000e+00> : vector<2x128xf32>
    %375 = tpu.matmul %373, %374, %cst_141 {dimension_numbers = #tpu.dot_dimension_numbers<[1], [0], [0], [1], [0, 0, 1, 1], [], []>} : vector<2x32xbf16>, vector<32x128xbf16>, vector<2x128xf32> -> vector<2x128xf32>
    %376 = arith.addf %370, %375 : vector<2x128xf32>
    %377 = vector.extract_strided_slice %339 {offsets = [0, 6, 0], sizes = [2, 1, 32], strides = [1, 1, 1]} : vector<2x16x32xf32> to vector<2x1x32xf32>
    %378 = vector.shape_cast %377 : vector<2x1x32xf32> to vector<2x32xf32>
    %379 = arith.truncf %378 : vector<2x32xf32> to vector<2x32xbf16>
    %c192 = arith.constant 192 : index
    %c0_142 = arith.constant 0 : index
    %380 = vector.load %arg11[%c192, %c0_142] : memref<512x128xbf16, #tpu.memory_space<vmem>>, vector<32x128xbf16>
    %cst_143 = arith.constant dense<0.000000e+00> : vector<2x128xf32>
    %381 = tpu.matmul %379, %380, %cst_143 {dimension_numbers = #tpu.dot_dimension_numbers<[1], [0], [0], [1], [0, 0, 1, 1], [], []>} : vector<2x32xbf16>, vector<32x128xbf16>, vector<2x128xf32> -> vector<2x128xf32>
    %382 = arith.addf %376, %381 : vector<2x128xf32>
    %383 = vector.extract_strided_slice %339 {offsets = [0, 7, 0], sizes = [2, 1, 32], strides = [1, 1, 1]} : vector<2x16x32xf32> to vector<2x1x32xf32>
    %384 = vector.shape_cast %383 : vector<2x1x32xf32> to vector<2x32xf32>
    %385 = arith.truncf %384 : vector<2x32xf32> to vector<2x32xbf16>
    %c224 = arith.constant 224 : index
    %c0_144 = arith.constant 0 : index
    %386 = vector.load %arg11[%c224, %c0_144] : memref<512x128xbf16, #tpu.memory_space<vmem>>, vector<32x128xbf16>
    %cst_145 = arith.constant dense<0.000000e+00> : vector<2x128xf32>
    %387 = tpu.matmul %385, %386, %cst_145 {dimension_numbers = #tpu.dot_dimension_numbers<[1], [0], [0], [1], [0, 0, 1, 1], [], []>} : vector<2x32xbf16>, vector<32x128xbf16>, vector<2x128xf32> -> vector<2x128xf32>
    %388 = arith.addf %382, %387 : vector<2x128xf32>
    %389 = vector.extract_strided_slice %339 {offsets = [0, 8, 0], sizes = [2, 1, 32], strides = [1, 1, 1]} : vector<2x16x32xf32> to vector<2x1x32xf32>
    %390 = vector.shape_cast %389 : vector<2x1x32xf32> to vector<2x32xf32>
    %391 = arith.truncf %390 : vector<2x32xf32> to vector<2x32xbf16>
    %c256 = arith.constant 256 : index
    %c0_146 = arith.constant 0 : index
    %392 = vector.load %arg11[%c256, %c0_146] : memref<512x128xbf16, #tpu.memory_space<vmem>>, vector<32x128xbf16>
    %cst_147 = arith.constant dense<0.000000e+00> : vector<2x128xf32>
    %393 = tpu.matmul %391, %392, %cst_147 {dimension_numbers = #tpu.dot_dimension_numbers<[1], [0], [0], [1], [0, 0, 1, 1], [], []>} : vector<2x32xbf16>, vector<32x128xbf16>, vector<2x128xf32> -> vector<2x128xf32>
    %394 = arith.addf %388, %393 : vector<2x128xf32>
    %395 = vector.extract_strided_slice %339 {offsets = [0, 9, 0], sizes = [2, 1, 32], strides = [1, 1, 1]} : vector<2x16x32xf32> to vector<2x1x32xf32>
    %396 = vector.shape_cast %395 : vector<2x1x32xf32> to vector<2x32xf32>
    %397 = arith.truncf %396 : vector<2x32xf32> to vector<2x32xbf16>
    %c288 = arith.constant 288 : index
    %c0_148 = arith.constant 0 : index
    %398 = vector.load %arg11[%c288, %c0_148] : memref<512x128xbf16, #tpu.memory_space<vmem>>, vector<32x128xbf16>
    %cst_149 = arith.constant dense<0.000000e+00> : vector<2x128xf32>
    %399 = tpu.matmul %397, %398, %cst_149 {dimension_numbers = #tpu.dot_dimension_numbers<[1], [0], [0], [1], [0, 0, 1, 1], [], []>} : vector<2x32xbf16>, vector<32x128xbf16>, vector<2x128xf32> -> vector<2x128xf32>
    %400 = arith.addf %394, %399 : vector<2x128xf32>
    %401 = vector.extract_strided_slice %339 {offsets = [0, 10, 0], sizes = [2, 1, 32], strides = [1, 1, 1]} : vector<2x16x32xf32> to vector<2x1x32xf32>
    %402 = vector.shape_cast %401 : vector<2x1x32xf32> to vector<2x32xf32>
    %403 = arith.truncf %402 : vector<2x32xf32> to vector<2x32xbf16>
    %c320 = arith.constant 320 : index
    %c0_150 = arith.constant 0 : index
    %404 = vector.load %arg11[%c320, %c0_150] : memref<512x128xbf16, #tpu.memory_space<vmem>>, vector<32x128xbf16>
    %cst_151 = arith.constant dense<0.000000e+00> : vector<2x128xf32>
    %405 = tpu.matmul %403, %404, %cst_151 {dimension_numbers = #tpu.dot_dimension_numbers<[1], [0], [0], [1], [0, 0, 1, 1], [], []>} : vector<2x32xbf16>, vector<32x128xbf16>, vector<2x128xf32> -> vector<2x128xf32>
    %406 = arith.addf %400, %405 : vector<2x128xf32>
    %407 = vector.extract_strided_slice %339 {offsets = [0, 11, 0], sizes = [2, 1, 32], strides = [1, 1, 1]} : vector<2x16x32xf32> to vector<2x1x32xf32>
    %408 = vector.shape_cast %407 : vector<2x1x32xf32> to vector<2x32xf32>
    %409 = arith.truncf %408 : vector<2x32xf32> to vector<2x32xbf16>
    %c352 = arith.constant 352 : index
    %c0_152 = arith.constant 0 : index
    %410 = vector.load %arg11[%c352, %c0_152] : memref<512x128xbf16, #tpu.memory_space<vmem>>, vector<32x128xbf16>
    %cst_153 = arith.constant dense<0.000000e+00> : vector<2x128xf32>
    %411 = tpu.matmul %409, %410, %cst_153 {dimension_numbers = #tpu.dot_dimension_numbers<[1], [0], [0], [1], [0, 0, 1, 1], [], []>} : vector<2x32xbf16>, vector<32x128xbf16>, vector<2x128xf32> -> vector<2x128xf32>
    %412 = arith.addf %406, %411 : vector<2x128xf32>
    %413 = vector.extract_strided_slice %339 {offsets = [0, 12, 0], sizes = [2, 1, 32], strides = [1, 1, 1]} : vector<2x16x32xf32> to vector<2x1x32xf32>
    %414 = vector.shape_cast %413 : vector<2x1x32xf32> to vector<2x32xf32>
    %415 = arith.truncf %414 : vector<2x32xf32> to vector<2x32xbf16>
    %c384 = arith.constant 384 : index
    %c0_154 = arith.constant 0 : index
    %416 = vector.load %arg11[%c384, %c0_154] : memref<512x128xbf16, #tpu.memory_space<vmem>>, vector<32x128xbf16>
    %cst_155 = arith.constant dense<0.000000e+00> : vector<2x128xf32>
    %417 = tpu.matmul %415, %416, %cst_155 {dimension_numbers = #tpu.dot_dimension_numbers<[1], [0], [0], [1], [0, 0, 1, 1], [], []>} : vector<2x32xbf16>, vector<32x128xbf16>, vector<2x128xf32> -> vector<2x128xf32>
    %418 = arith.addf %412, %417 : vector<2x128xf32>
    %419 = vector.extract_strided_slice %339 {offsets = [0, 13, 0], sizes = [2, 1, 32], strides = [1, 1, 1]} : vector<2x16x32xf32> to vector<2x1x32xf32>
    %420 = vector.shape_cast %419 : vector<2x1x32xf32> to vector<2x32xf32>
    %421 = arith.truncf %420 : vector<2x32xf32> to vector<2x32xbf16>
    %c416 = arith.constant 416 : index
    %c0_156 = arith.constant 0 : index
    %422 = vector.load %arg11[%c416, %c0_156] : memref<512x128xbf16, #tpu.memory_space<vmem>>, vector<32x128xbf16>
    %cst_157 = arith.constant dense<0.000000e+00> : vector<2x128xf32>
    %423 = tpu.matmul %421, %422, %cst_157 {dimension_numbers = #tpu.dot_dimension_numbers<[1], [0], [0], [1], [0, 0, 1, 1], [], []>} : vector<2x32xbf16>, vector<32x128xbf16>, vector<2x128xf32> -> vector<2x128xf32>
    %424 = arith.addf %418, %423 : vector<2x128xf32>
    %425 = vector.extract_strided_slice %339 {offsets = [0, 14, 0], sizes = [2, 1, 32], strides = [1, 1, 1]} : vector<2x16x32xf32> to vector<2x1x32xf32>
    %426 = vector.shape_cast %425 : vector<2x1x32xf32> to vector<2x32xf32>
    %427 = arith.truncf %426 : vector<2x32xf32> to vector<2x32xbf16>
    %c448 = arith.constant 448 : index
    %c0_158 = arith.constant 0 : index
    %428 = vector.load %arg11[%c448, %c0_158] : memref<512x128xbf16, #tpu.memory_space<vmem>>, vector<32x128xbf16>
    %cst_159 = arith.constant dense<0.000000e+00> : vector<2x128xf32>
    %429 = tpu.matmul %427, %428, %cst_159 {dimension_numbers = #tpu.dot_dimension_numbers<[1], [0], [0], [1], [0, 0, 1, 1], [], []>} : vector<2x32xbf16>, vector<32x128xbf16>, vector<2x128xf32> -> vector<2x128xf32>
    %430 = arith.addf %424, %429 : vector<2x128xf32>
    %431 = vector.extract_strided_slice %339 {offsets = [0, 15, 0], sizes = [2, 1, 32], strides = [1, 1, 1]} : vector<2x16x32xf32> to vector<2x1x32xf32>
    %432 = vector.shape_cast %431 : vector<2x1x32xf32> to vector<2x32xf32>
    %433 = arith.truncf %432 : vector<2x32xf32> to vector<2x32xbf16>
    %c480 = arith.constant 480 : index
    %c0_160 = arith.constant 0 : index
    %434 = vector.load %arg11[%c480, %c0_160] : memref<512x128xbf16, #tpu.memory_space<vmem>>, vector<32x128xbf16>
    %cst_161 = arith.constant dense<0.000000e+00> : vector<2x128xf32>
    %435 = tpu.matmul %433, %434, %cst_161 {dimension_numbers = #tpu.dot_dimension_numbers<[1], [0], [0], [1], [0, 0, 1, 1], [], []>} : vector<2x32xbf16>, vector<32x128xbf16>, vector<2x128xf32> -> vector<2x128xf32>
    %436 = arith.addf %430, %435 : vector<2x128xf32>
    %c40 = arith.constant 40 : index
    %c0_162 = arith.constant 0 : index
    %437 = vector.load %arg1[%c40, %c0_162] : memref<48x128xf32, #tpu.memory_space<vmem>>, vector<1x128xf32>
    %438 = vector.broadcast %437 : vector<1x128xf32> to vector<2x128xf32>
    %439 = arith.addf %436, %438 : vector<2x128xf32>
    %cst_163 = arith.constant 5.000000e-01 : f32
    %440 = vector.broadcast %cst_163 : f32 to vector<2x128xf32>
    %441 = arith.mulf %440, %439 : vector<2x128xf32>
    %cst_164 = arith.constant 4.471500e-02 : f32
    %442 = vector.broadcast %cst_164 : f32 to vector<2x128xf32>
    %443 = arith.mulf %442, %439 : vector<2x128xf32>
    %444 = arith.mulf %443, %439 : vector<2x128xf32>
    %445 = arith.mulf %444, %439 : vector<2x128xf32>
    %446 = arith.addf %439, %445 : vector<2x128xf32>
    %cst_165 = arith.constant 0.797884583 : f32
    %447 = vector.broadcast %cst_165 : f32 to vector<2x128xf32>
    %448 = arith.mulf %447, %446 : vector<2x128xf32>
    %449 = math.tanh %448 : vector<2x128xf32>
    %cst_166 = arith.constant 1.000000e+00 : f32
    %450 = vector.broadcast %cst_166 : f32 to vector<2x128xf32>
    %451 = arith.addf %450, %449 : vector<2x128xf32>
    %452 = arith.mulf %441, %451 : vector<2x128xf32>
    %453 = arith.truncf %452 : vector<2x128xf32> to vector<2x128xbf16>
    %c0_167 = arith.constant 0 : index
    %c0_168 = arith.constant 0 : index
    %454 = vector.load %arg7[%c0_167, %c0_168] : memref<128x64xbf16, #tpu.memory_space<vmem>>, vector<128x64xbf16>
    %cst_169 = arith.constant dense<0.000000e+00> : vector<2x64xf32>
    %455 = tpu.matmul %453, %454, %cst_169 {dimension_numbers = #tpu.dot_dimension_numbers<[1], [0], [0], [1], [0, 0, 1, 1], [], []>} : vector<2x128xbf16>, vector<128x64xbf16>, vector<2x64xf32> -> vector<2x64xf32>
    %c41 = arith.constant 41 : index
    %c0_170 = arith.constant 0 : index
    %456 = vector.load %arg1[%c41, %c0_170] : memref<48x128xf32, #tpu.memory_space<vmem>>, vector<1x64xf32>
    %457 = vector.broadcast %456 : vector<1x64xf32> to vector<2x64xf32>
    %458 = arith.addf %455, %457 : vector<2x64xf32>
    %cst_171 = arith.constant 5.000000e-01 : f32
    %459 = vector.broadcast %cst_171 : f32 to vector<2x64xf32>
    %460 = arith.mulf %459, %458 : vector<2x64xf32>
    %cst_172 = arith.constant 4.471500e-02 : f32
    %461 = vector.broadcast %cst_172 : f32 to vector<2x64xf32>
    %462 = arith.mulf %461, %458 : vector<2x64xf32>
    %463 = arith.mulf %462, %458 : vector<2x64xf32>
    %464 = arith.mulf %463, %458 : vector<2x64xf32>
    %465 = arith.addf %458, %464 : vector<2x64xf32>
    %cst_173 = arith.constant 0.797884583 : f32
    %466 = vector.broadcast %cst_173 : f32 to vector<2x64xf32>
    %467 = arith.mulf %466, %465 : vector<2x64xf32>
    %468 = math.tanh %467 : vector<2x64xf32>
    %cst_174 = arith.constant 1.000000e+00 : f32
    %469 = vector.broadcast %cst_174 : f32 to vector<2x64xf32>
    %470 = arith.addf %469, %468 : vector<2x64xf32>
    %471 = arith.mulf %460, %470 : vector<2x64xf32>
    %472 = arith.truncf %471 : vector<2x64xf32> to vector<2x64xbf16>
    %c0_175 = arith.constant 0 : index
    %c0_176 = arith.constant 0 : index
    %473 = vector.load %arg8[%c0_175, %c0_176] : memref<64x10xbf16, #tpu.memory_space<vmem>>, vector<64x10xbf16>
    %cst_177 = arith.constant dense<0.000000e+00> : vector<2x10xf32>
    %474 = tpu.matmul %472, %473, %cst_177 {dimension_numbers = #tpu.dot_dimension_numbers<[1], [0], [0], [1], [0, 0, 1, 1], [], []>} : vector<2x64xbf16>, vector<64x10xbf16>, vector<2x10xf32> -> vector<2x10xf32>
    %c42 = arith.constant 42 : index
    %c0_178 = arith.constant 0 : index
    %475 = vector.load %arg1[%c42, %c0_178] : memref<48x128xf32, #tpu.memory_space<vmem>>, vector<1x10xf32>
    %476 = vector.broadcast %475 : vector<1x10xf32> to vector<2x10xf32>
    %477 = arith.addf %474, %476 : vector<2x10xf32>
    %c0_179 = arith.constant 0 : index
    %c0_180 = arith.constant 0 : index
    %478 = vector.load %arg10[%c0_179, %c0_180] : memref<2x10xf32, #tpu.memory_space<vmem>>, vector<2x10xf32>
    tpu.vector_store %arg10[%c0_179, %c0_180], %477 {strides = array<i32>} : memref<2x10xf32, #tpu.memory_space<vmem>>, vector<2x10xf32>,
    return
  }
}

</mosaic_0001>

<llo_original>
// kernel: vit_forward.1
$region0: #{vit_forward.1}
  #allocation0 [shape = 'u32[]', space=smem, size = 0x4, offset = 0x4, fixed_abs, tag = 'smem constant byte address 0x4 - core index']
  #allocation1 [shape = 'u32[144,128]{1,0:T(1,128)}', space=vmem, size = 0x12000, scoped, tag = 'internal scratch']
  #allocation2 [shape = 'bf16[512,128]{1,0:T(8,128)(2,1)}', space=vmem, size = 0x20000, scoped, tag = 'scratch operand']
  #allocation3 [shape = 's32[1]{0}', space=sflag, size = 0x4, scoped, tag = 'scratch operand']
  #allocation6 [shape = 's32[]', space=sflag, size = 0x4, offset = 0, fixed_abs, tag = 'sflag constant byte address 0x0 - dummy sync flag']
  %s0 = inlined_call_operand.vmem [shape: f32[32,48], index: 0, kind: input, shape index: {}]
  %s1 = inlined_call_operand.vmem [shape: f32[48,128], index: 1, kind: input, shape index: {}]
  %s2 = inlined_call_operand.vmem [shape: bf16[48,32], index: 2, kind: input, shape index: {}]
  %s3 = inlined_call_operand.vmem [shape: bf16[2,32,96], index: 3, kind: input, shape index: {}]
  %s4 = inlined_call_operand.vmem [shape: f32[2,32,32], index: 4, kind: input, shape index: {}]
  %s5 = inlined_call_operand.vmem [shape: bf16[2,32,64], index: 5, kind: input, shape index: {}]
  %s6 = inlined_call_operand.vmem [shape: bf16[2,64,32], index: 6, kind: input, shape index: {}]
  %s7 = inlined_call_operand.vmem [shape: bf16[128,64], index: 7, kind: input, shape index: {}]
  %s8 = inlined_call_operand.vmem [shape: bf16[64,10], index: 8, kind: input, shape index: {}]
  %s9 = inlined_call_operand.vmem [shape: bf16[512,128], index: 9, kind: input, shape index: {}]
  %s10 = inlined_call_operand.hbm [shape: f32[2,10], index: 10, kind: output, shape index: {}]
  %s11 = sld [smem:[#allocation0]]
  $region80: #{vit_forward.1} parent=0
    _
  %s13 = ssub.s32 1, %s11
  %s14 = scalar_select 0, %s13, %s11
  $region1: #{vit_forward.1} parent=0
    #allocation4 [shape = 'u8[1024]{0}', space=vmem, size = 0x400, scoped, tag = 'output window, operand 0, single buffered']
    #allocation5 [shape = 's32[1]{0}', space=sflag, size = 0x4, scoped, tag = 'scoped memory for vit_forward.1']
    %15 = vsyncpa [#allocation5], 0
    // Predicated region
    $region2: #{vit_forward.1} parent=1 // pred_check
      _
    $region3: #{vit_forward.1} parent=1 // pred_check_branch
      %17 = sbr.rel (0) target = $region5
    $region4: #{vit_forward.1} parent=1 // pred_region
      _
    $region5: #{vit_forward.1} parent=1 // pred_fallthru
      _
    // Predicated region
    $region6: #{vit_forward.1} parent=1 // pred_check
      _
    $region7: #{vit_forward.1} parent=1 // pred_check_branch
      %19 = sbr.rel (0) target = $region9
    $region8: #{vit_forward.1} parent=1 // pred_region
      _
    $region9: #{vit_forward.1} parent=1 // pred_fallthru
      _
    // Predicated region
    $region10: #{vit_forward.1} parent=1 // pred_check
      _
    $region11: #{vit_forward.1} parent=1 // pred_check_branch
      %21 = sbr.rel (0) target = $region13
    $region12: #{vit_forward.1} parent=1 // pred_region
      _
    $region13: #{vit_forward.1} parent=1 // pred_fallthru
      _
    // Predicated region
    $region14: #{vit_forward.1} parent=1 // pred_check
      _
    $region15: #{vit_forward.1} parent=1 // pred_check_branch
      %23 = sbr.rel (0) target = $region17
    $region16: #{vit_forward.1} parent=1 // pred_region
      _
    $region17: #{vit_forward.1} parent=1 // pred_fallthru
      _
    // Predicated region
    $region18: #{vit_forward.1} parent=1 // pred_check
      _
    $region19: #{vit_forward.1} parent=1 // pred_check_branch
      %25 = sbr.rel (0) target = $region21
    $region20: #{vit_forward.1} parent=1 // pred_region
      _
    $region21: #{vit_forward.1} parent=1 // pred_fallthru
      _
    // Predicated region
    $region22: #{vit_forward.1} parent=1 // pred_check
      _
    $region23: #{vit_forward.1} parent=1 // pred_check_branch
      %27 = sbr.rel (0) target = $region25
    $region24: #{vit_forward.1} parent=1 // pred_region
      _
    $region25: #{vit_forward.1} parent=1 // pred_fallthru
      _
    // Predicated region
    $region26: #{vit_forward.1} parent=1 // pred_check
      _
    $region27: #{vit_forward.1} parent=1 // pred_check_branch
      %29 = sbr.rel (0) target = $region29
    $region28: #{vit_forward.1} parent=1 // pred_region
      _
    $region29: #{vit_forward.1} parent=1 // pred_fallthru
      _
    // Predicated region
    $region30: #{vit_forward.1} parent=1 // pred_check
      _
    $region31: #{vit_forward.1} parent=1 // pred_check_branch
      %31 = sbr.rel (0) target = $region33
    $region32: #{vit_forward.1} parent=1 // pred_region
      _
    $region33: #{vit_forward.1} parent=1 // pred_fallthru
      _
    // Predicated region
    $region34: #{vit_forward.1} parent=1 // pred_check
      _
    $region35: #{vit_forward.1} parent=1 // pred_check_branch
      %33 = sbr.rel (0) target = $region37
    $region36: #{vit_forward.1} parent=1 // pred_region
      _
    $region37: #{vit_forward.1} parent=1 // pred_fallthru
      _
    %p36 = scmp.lt.u32.totalorder 256, 8
    %p37 = pneg %p36
    // Predicated region
    $region38: #{vit_forward.1} parent=1 // pred_check
      _
    $region39: #{vit_forward.1} parent=1 // pred_check_branch
      %39 = sbr.rel (%p36) target = $region41
    $region40: #{vit_forward.1} parent=1 // pred_region
      %s55 = sand.u32 256, 7
      %p56 = scmp.eq.s32.totalorder %s55, 0
      // Predicated region
      $region53: #{vit_forward.1} parent=40 // pred_check
        %p57 = pneg %p56
      $region54: #{vit_forward.1} parent=40 // pred_check_branch
        %59 = sbr.rel (%p57) target = $region56
      $region55: #{vit_forward.1} parent=40 // pred_region
        loop: start=0, step=1, limit=1
        $region57: #{vit_forward.1} parent=55 // loop_pre_header
          _
        $region58: #{vit_forward.1} parent=55 // loop_header
          %s61 = sphi 0, %s65
          %p62 = scmp.ge.s32.totalorder %s61, 1
          %s66 = sphi %s9, %s9
          %s67 = sphi [#allocation2], [#allocation2]
        $region59: #{vit_forward.1} parent=55 // loop_header_branch
          %64 = sbr.rel (%p62) target = $region63
        $region60: #{vit_forward.1} parent=55 // loop_body
          %v68 = vld [vmem:[%s66] sm:$0xff]
          %69 = vst [vmem:[%s67] sm:$0xff] %v68
          %v70 = vld [vmem:[%s66 + $0x8] sm:$0xff]
          %71 = vst [vmem:[%s67 + $0x8] sm:$0xff] %v70
          %v72 = vld [vmem:[%s66 + $0x10] sm:$0xff]
          %73 = vst [vmem:[%s67 + $0x10] sm:$0xff] %v72
          %v74 = vld [vmem:[%s66 + $0x18] sm:$0xff]
          %75 = vst [vmem:[%s67 + $0x18] sm:$0xff] %v74
          %v76 = vld [vmem:[%s66 + $0x20] sm:$0xff]
          %77 = vst [vmem:[%s67 + $0x20] sm:$0xff] %v76
          %v78 = vld [vmem:[%s66 + $0x28] sm:$0xff]
          %79 = vst [vmem:[%s67 + $0x28] sm:$0xff] %v78
          %v80 = vld [vmem:[%s66 + $0x30] sm:$0xff]
          %81 = vst [vmem:[%s67 + $0x30] sm:$0xff] %v80
          %v82 = vld [vmem:[%s66 + $0x38] sm:$0xff]
          %83 = vst [vmem:[%s67 + $0x38] sm:$0xff] %v82
          %v84 = vld [vmem:[%s66 + $0x40] sm:$0xff]
          %85 = vst [vmem:[%s67 + $0x40] sm:$0xff] %v84
          %v86 = vld [vmem:[%s66 + $0x48] sm:$0xff]
          %87 = vst [vmem:[%s67 + $0x48] sm:$0xff] %v86
          %v88 = vld [vmem:[%s66 + $0x50] sm:$0xff]
          %89 = vst [vmem:[%s67 + $0x50] sm:$0xff] %v88
          %v90 = vld [vmem:[%s66 + $0x58] sm:$0xff]
          %91 = vst [vmem:[%s67 + $0x58] sm:$0xff] %v90
          %v92 = vld [vmem:[%s66 + $0x60] sm:$0xff]
          %93 = vst [vmem:[%s67 + $0x60] sm:$0xff] %v92
          %v94 = vld [vmem:[%s66 + $0x68] sm:$0xff]
          %95 = vst [vmem:[%s67 + $0x68] sm:$0xff] %v94
          %v96 = vld [vmem:[%s66 + $0x70] sm:$0xff]
          %97 = vst [vmem:[%s67 + $0x70] sm:$0xff] %v96
          %v98 = vld [vmem:[%s66 + $0x78] sm:$0xff]
          %99 = vst [vmem:[%s67 + $0x78] sm:$0xff] %v98
          %v100 = vld [vmem:[%s66 + $0x80] sm:$0xff]
          %101 = vst [vmem:[%s67 + $0x80] sm:$0xff] %v100
          %v102 = vld [vmem:[%s66 + $0x88] sm:$0xff]
          %103 = vst [vmem:[%s67 + $0x88] sm:$0xff] %v102
          %v104 = vld [vmem:[%s66 + $0x90] sm:$0xff]
          %105 = vst [vmem:[%s67 + $0x90] sm:$0xff] %v104
          %v106 = vld [vmem:[%s66 + $0x98] sm:$0xff]
          %107 = vst [vmem:[%s67 + $0x98] sm:$0xff] %v106
          %v108 = vld [vmem:[%s66 + $0xa0] sm:$0xff]
          %109 = vst [vmem:[%s67 + $0xa0] sm:$0xff] %v108
          %v110 = vld [vmem:[%s66 + $0xa8] sm:$0xff]
          %111 = vst [vmem:[%s67 + $0xa8] sm:$0xff] %v110
          %v112 = vld [vmem:[%s66 + $0xb0] sm:$0xff]
          %113 = vst [vmem:[%s67 + $0xb0] sm:$0xff] %v112
          %v114 = vld [vmem:[%s66 + $0xb8] sm:$0xff]
          %115 = vst [vmem:[%s67 + $0xb8] sm:$0xff] %v114
          %v116 = vld [vmem:[%s66 + $0xc0] sm:$0xff]
          %117 = vst [vmem:[%s67 + $0xc0] sm:$0xff] %v116
          %v118 = vld [vmem:[%s66 + $0xc8] sm:$0xff]
          %119 = vst [vmem:[%s67 + $0xc8] sm:$0xff] %v118
          %v120 = vld [vmem:[%s66 + $0xd0] sm:$0xff]
          %121 = vst [vmem:[%s67 + $0xd0] sm:$0xff] %v120
          %v122 = vld [vmem:[%s66 + $0xd8] sm:$0xff]
          %123 = vst [vmem:[%s67 + $0xd8] sm:$0xff] %v122
          %v124 = vld [vmem:[%s66 + $0xe0] sm:$0xff]
          %125 = vst [vmem:[%s67 + $0xe0] sm:$0xff] %v124
          %v126 = vld [vmem:[%s66 + $0xe8] sm:$0xff]
          %127 = vst [vmem:[%s67 + $0xe8] sm:$0xff] %v126
          %v128 = vld [vmem:[%s66 + $0xf0] sm:$0xff]
          %129 = vst [vmem:[%s67 + $0xf0] sm:$0xff] %v128
          %v130 = vld [vmem:[%s66 + $0xf8] sm:$0xff]
          %131 = vst [vmem:[%s67 + $0xf8] sm:$0xff] %v130
        $region61: #{vit_forward.1} parent=55 // loop_footer
          %s65 = sadd.s32 1, %s61
        $region62: #{vit_forward.1} parent=55 // loop_footer_branch
          %60 = sbr.rel target = $region58
        $region63: #{vit_forward.1} parent=55 // loop_exit
          _
      $region56: #{vit_forward.1} parent=40 // pred_fallthru
        _
      %p132 = pneg %p56
      // Predicated region
      $region64: #{vit_forward.1} parent=40 // pred_check
        _
      $region65: #{vit_forward.1} parent=40 // pred_check_branch
        %134 = sbr.rel (%p56) target = $region67
      $region66: #{vit_forward.1} parent=40 // pred_region
        %s135 = sand.u32 256, 7
      $region67: #{vit_forward.1} parent=40 // pred_fallthru
        _
    $region41: #{vit_forward.1} parent=1 // pred_fallthru
      _
    // Predicated region
    $region42: #{vit_forward.1} parent=1 // pred_check
      %p40 = pneg %p36
    $region43: #{vit_forward.1} parent=1 // pred_check_branch
      %42 = sbr.rel (%p40) target = $region45
    $region44: #{vit_forward.1} parent=1 // pred_region
      %s43 = sshll.u32 1, 256
      %s44 = ssub.s32 %s43, 1
      loop: start=0, step=1, limit=1
      $region46: #{vit_forward.1} parent=44 // loop_pre_header
        _
      $region47: #{vit_forward.1} parent=44 // loop_header
        %s46 = sphi 0, %s50
        %p47 = scmp.ge.s32.totalorder %s46, 1
        %s51 = sphi %s9, %s9
        %s52 = sphi [#allocation2], [#allocation2]
      $region48: #{vit_forward.1} parent=44 // loop_header_branch
        %49 = sbr.rel (%p47) target = $region52
      $region49: #{vit_forward.1} parent=44 // loop_body
        %v53 = vld [vmem:[%s51] sm:%s44]
        %54 = vst [vmem:[%s52] sm:%s44] %v53
      $region50: #{vit_forward.1} parent=44 // loop_footer
        %s50 = sadd.s32 1, %s46
      $region51: #{vit_forward.1} parent=44 // loop_footer_branch
        %45 = sbr.rel target = $region47
      $region52: #{vit_forward.1} parent=44 // loop_exit
        _
    $region45: #{vit_forward.1} parent=1 // pred_fallthru
      _
    // Predicated region
    $region68: #{vit_forward.1} parent=1 // pred_check
      _
    $region69: #{vit_forward.1} parent=1 // pred_check_branch
      %138 = sbr.rel (0) target = $region71
    $region70: #{vit_forward.1} parent=1 // pred_region
      %139 = vsyncadd [#allocation3], 4096
    $region71: #{vit_forward.1} parent=1 // pred_fallthru
      _
    %v140 = vld [vmem:[%s1] sm:$0xff]
    %v141 = vld [vmem:[%s1 + $0x8] sm:$0xff]
    %v142 = vld [vmem:[%s1 + $0x10] sm:$0xff]
    %v143 = vld [vmem:[%s1 + $0x18] sm:$0xff]
    %v144 = vld [vmem:[%s0] sm:$0xff]
    %v145 = vld [vmem:[%s0 + $0x8] sm:$0xff]
    %v146 = vld [vmem:[%s0 + $0x10] sm:$0xff]
    %v147 = vld [vmem:[%s0 + $0x18] sm:$0xff]
    %v148 = vpack.c.bf16 %v145, %v144
    %v149 = vpack.c.bf16 %v147, %v146
    %v150 = vld [vmem:[%s2] sm:$0xf]
    %v151 = vld [vmem:[%s2 + $0x4] sm:$0xf]
    %v152 = vld [vmem:[%s2 + $0x8] sm:$0xf]
    %v153 = vld [vmem:[%s2 + $0xc] sm:$0xf]
    %v154 = vld [vmem:[%s2 + $0x10] sm:$0xf]
    %v155 = vld [vmem:[%s2 + $0x14] sm:$0xf]
    %v162 = vunpack.c.l.b16 %v150
    %v163 = vunpack.c.l.b16 %v151
    %v164 = vunpack.c.l.b16 %v152
    %v165 = vunpack.c.l.b16 %v153
    %v166 = vunpack.c.l.b16 %v154
    %v167 = vunpack.c.l.b16 %v155
    %v168 = vpack.c.b16 %v163, %v162
    %v169 = vpack.c.b16 %v165, %v164
    %v170 = vpack.c.b16 %v167, %v166
    %vm174 = vcmask 392192
    %v176 = vsel %vm174, %v148, 0
    %v179 = vsel %vm174, %v149, 0
    %181 = vmatprep.subr.bf16.mxu0 0
    %182 = vmatpush1.bf16.msra.mxu0 0
    %183 = vmatprep.subr.bf16.mxu0 0
    %184 = vmatpush1.bf16.msra.mxu0 0
    %185 = vmatprep.subr.bf16.mxu0 0
    %186 = vmatpush1.bf16.msra.mxu0 0
    %187 = vmatprep.subr.bf16.mxu0 0
    %188 = vmatpush1.bf16.msra.mxu0 0
    %189 = vmatprep.subr.bf16.mxu0 0
    %190 = vmatpush1.bf16.msra.mxu0 0
    %191 = vmatprep.subr.bf16.mxu0 0
    %192 = vmatpush1.bf16.msra.mxu0 %v170
    %193 = vmatprep.subr.bf16.mxu0 0
    %194 = vmatpush1.bf16.msra.mxu0 %v169
    %195 = vmatprep.subr.bf16.mxu0 0
    %196 = vmatpush1.bf16.msra.mxu0 %v168
    %197 = vmatprep.subr.bf16.mxu0 0
    %198 = vmatpush2.bf16.msra.mxu0 0
    %199 = vmatprep.subr.bf16.mxu0 0
    %200 = vmatpush2.bf16.msra.mxu0 0
    %201 = vmatprep.subr.bf16.mxu0 0
    %202 = vmatpush2.bf16.msra.mxu0 0
    %203 = vmatprep.subr.bf16.mxu0 0
    %204 = vmatpush2.bf16.msra.mxu0 0
    %205 = vmatprep.subr.bf16.mxu0 0
    %206 = vmatpush2.bf16.msra.mxu0 0
    %207 = vmatprep.subr.bf16.mxu0 0
    %208 = vmatpush2.bf16.msra.mxu0 0
    %209 = vmatprep.subr.bf16.mxu0 0
    %210 = vmatpush2.bf16.msra.mxu0 0
    %211 = vmatprep.subr.bf16.mxu0 0
    %212 = vmatpush2.bf16.msra.mxu0 0
    %213 = vmatprep.mubr.bf16.mxu0 0
    %214 = vmatmul.mubr.bf16.gmra.mxu0 %v176
    %v215 = vpop.f32.mrf.mxu0
    %v216 = vadd.f32 %v140, %v215
    %v217 = vpop.f32.mrf.mxu0
    %v218 = vpop.f32.mrf.mxu0
    %v219 = vadd.f32 %v141, %v218
    %v220 = vpop.f32.mrf.mxu0
    %221 = vmatprep.mubr.bf16.mxu0 0
    %222 = vmatmul.mubr.bf16.gmra.mxu0 %v179
    %v223 = vpop.f32.mrf.mxu0
    %v224 = vadd.f32 %v142, %v223
    %v225 = vpop.f32.mrf.mxu0
    %v226 = vpop.f32.mrf.mxu0
    %v227 = vadd.f32 %v143, %v226
    %v228 = vpop.f32.mrf.mxu0
    %229 = vdwg.mxu0
    %vm230 = vcmask 261120
    %v231 = vsel %vm230, %v216, 0.0
    %232 = vadd.xlane.f32.xlu0 %v231
    %v233 = vpop.xlane.xlu0 %232
    %v234 = vsel %vm230, %v219, 0.0
    %235 = vadd.xlane.f32.xlu0 %v234
    %v236 = vpop.xlane.xlu0 %235
    %v237 = vsel %vm230, %v224, 0.0
    %238 = vadd.xlane.f32.xlu0 %v237
    %v239 = vpop.xlane.xlu0 %238
    %v240 = vsel %vm230, %v227, 0.0
    %241 = vadd.xlane.f32.xlu0 %v240
    %v242 = vpop.xlane.xlu0 %241
    %v243 = vrcp.pop 32.0
    %v244 = vmul.f32 %v233, %v243
    %v245 = vmul.f32 %v236, %v243
    %v246 = vmul.f32 %v239, %v243
    %v247 = vmul.f32 %v242, %v243
    %v248 = vsub.f32 %v216, %v244
    %v249 = vsub.f32 %v219, %v245
    %v250 = vsub.f32 %v224, %v246
    %v251 = vsub.f32 %v227, %v247
    %v252 = vmul.f32 %v248, %v248
    %v253 = vmul.f32 %v249, %v249
    %v254 = vmul.f32 %v250, %v250
    %v255 = vmul.f32 %v251, %v251
    %v256 = vsel %vm230, %v252, 0.0
    %257 = vadd.xlane.f32.xlu0 %v256
    %v258 = vpop.xlane.xlu0 %257
    %v259 = vsel %vm230, %v253, 0.0
    %260 = vadd.xlane.f32.xlu0 %v259
    %v261 = vpop.xlane.xlu0 %260
    %v262 = vsel %vm230, %v254, 0.0
    %263 = vadd.xlane.f32.xlu0 %v262
    %v264 = vpop.xlane.xlu0 %263
    %v265 = vsel %vm230, %v255, 0.0
    %266 = vadd.xlane.f32.xlu0 %v265
    %v267 = vpop.xlane.xlu0 %266
    %v268 = vmul.f32 %v258, %v243
    %v269 = vmul.f32 %v261, %v243
    %v270 = vmul.f32 %v264, %v243
    %v271 = vmul.f32 %v267, %v243
    %v272 = vadd.f32 %v268, 1e-05
    %v273 = vadd.f32 %v269, 1e-05
    %v274 = vadd.f32 %v270, 1e-05
    %v275 = vadd.f32 %v271, 1e-05
    %v276 = vrsqrt.pop %v272
    %v277 = vrsqrt.pop %v273
    %v278 = vrsqrt.pop %v274
    %v279 = vrsqrt.pop %v275
    %v280 = vmul.f32 %v248, %v276
    %v281 = vmul.f32 %v249, %v277
    %v282 = vmul.f32 %v250, %v278
    %v283 = vmul.f32 %v251, %v279
    %v284 = vpack.c.bf16 %v281, %v280
    %v285 = vpack.c.bf16 %v283, %v282
    %v286 = vld [vmem:[%s3] sm:$0xf]
    %v287 = vld [vmem:[%s3 + $0x4] sm:$0xf]
    %v288 = vld [vmem:[%s3 + $0x8] sm:$0xf]
    %v289 = vld [vmem:[%s3 + $0xc] sm:$0xf]
    %v290 = vld [vmem:[%s1 + $0x20] sm:$0x1]
    %v291 = vlaneseq
    %v292 = vshrl.u32 %v291, 7
    %v293 = vsub.s32 0, %v292
    %v294 = vrot.slane %v290, %v293
    %v299 = vunpack.c.l.b16 %v286
    %v300 = vunpack.c.l.b16 %v287
    %v301 = vunpack.c.l.b16 %v288
    %v302 = vunpack.c.l.b16 %v289
    %v303 = vpack.c.b16 %v300, %v299
    %v304 = vpack.c.b16 %v302, %v301
    %v308 = vsel %vm230, %v284, 0
    %v311 = vsel %vm230, %v285, 0
    %313 = vmatprep.subr.bf16.mxu0 0
    %314 = vmatpush1.bf16.msra.mxu0 0
    %315 = vmatprep.subr.bf16.mxu0 0
    %316 = vmatpush1.bf16.msra.mxu0 0
    %317 = vmatprep.subr.bf16.mxu0 0
    %318 = vmatpush1.bf16.msra.mxu0 0
    %319 = vmatprep.subr.bf16.mxu0 0
    %320 = vmatpush1.bf16.msra.mxu0 0
    %321 = vmatprep.subr.bf16.mxu0 0
    %322 = vmatpush1.bf16.msra.mxu0 0
    %323 = vmatprep.subr.bf16.mxu0 0
    %324 = vmatpush1.bf16.msra.mxu0 0
    %325 = vmatprep.subr.bf16.mxu0 0
    %326 = vmatpush1.bf16.msra.mxu0 %v304
    %327 = vmatprep.subr.bf16.mxu0 0
    %328 = vmatpush1.bf16.msra.mxu0 %v303
    %329 = vmatprep.subr.bf16.mxu0 0
    %330 = vmatpush2.bf16.msra.mxu0 0
    %331 = vmatprep.subr.bf16.mxu0 0
    %332 = vmatpush2.bf16.msra.mxu0 0
    %333 = vmatprep.subr.bf16.mxu0 0
    %334 = vmatpush2.bf16.msra.mxu0 0
    %335 = vmatprep.subr.bf16.mxu0 0
    %336 = vmatpush2.bf16.msra.mxu0 0
    %337 = vmatprep.subr.bf16.mxu0 0
    %338 = vmatpush2.bf16.msra.mxu0 0
    %339 = vmatprep.subr.bf16.mxu0 0
    %340 = vmatpush2.bf16.msra.mxu0 0
    %341 = vmatprep.subr.bf16.mxu0 0
    %342 = vmatpush2.bf16.msra.mxu0 0
    %343 = vmatprep.subr.bf16.mxu0 0
    %344 = vmatpush2.bf16.msra.mxu0 0
    %345 = vmatprep.mubr.bf16.mxu0 0
    %346 = vmatmul.mubr.bf16.gmra.mxu0 %v308
    %v347 = vpop.f32.mrf.mxu0
    %v348 = vadd.f32 %v294, %v347
    %v349 = vpop.f32.mrf.mxu0
    %v350 = vpop.f32.mrf.mxu0
    %v351 = vadd.f32 %v294, %v350
    %v352 = vpop.f32.mrf.mxu0
    %353 = vmatprep.mubr.bf16.mxu0 0
    %354 = vmatmul.mubr.bf16.gmra.mxu0 %v311
    %v355 = vpop.f32.mrf.mxu0
    %v356 = vadd.f32 %v294, %v355
    %v357 = vpop.f32.mrf.mxu0
    %v358 = vpop.f32.mrf.mxu0
    %v359 = vadd.f32 %v294, %v358
    %v360 = vpop.f32.mrf.mxu0
    %361 = vdwg.mxu0
    %v362 = vld [vmem:[%s4] sm:$0xff]
    %v363 = vld [vmem:[%s4 + $0x8] sm:$0xff]
    %v364 = vld [vmem:[%s4 + $0x10] sm:$0xff]
    %v365 = vld [vmem:[%s4 + $0x18] sm:$0xff]
    %v366 = vmul.f32 %v348, 0.35355338
    %v367 = vmul.f32 %v351, 0.35355338
    %v368 = vmul.f32 %v356, 0.35355338
    %v369 = vmul.f32 %v359, 0.35355338
    %374 = vrot.lane.b32.xlu0 %v348, 96
    %v375 = vpop.permute.xlu0 %374
    %376 = vrot.lane.b32.xlu0 %v351, 96
    %v377 = vpop.permute.xlu0 %376
    %378 = vrot.lane.b32.xlu0 %v356, 96
    %v379 = vpop.permute.xlu0 %378
    %380 = vrot.lane.b32.xlu0 %v359, 96
    %v381 = vpop.permute.xlu0 %380
    %386 = vrot.lane.b32.xlu0 %v140, 96
    %v387 = vpop.permute.xlu0 %386
    %388 = vrot.lane.b32.xlu0 %v141, 96
    %v389 = vpop.permute.xlu0 %388
    %390 = vrot.lane.b32.xlu0 %v142, 96
    %v391 = vpop.permute.xlu0 %390
    %392 = vrot.lane.b32.xlu0 %v143, 96
    %v393 = vpop.permute.xlu0 %392
    %vm398 = vcmask 64512
    %v400 = vsel %vm398, %v366, 0
    %v403 = vsel %vm398, %v367, 0
    %v406 = vsel %vm398, %v368, 0
    %v409 = vsel %vm398, %v369, 0
    %v411 = vsel %vm398, %v375, 0
    %v413 = vsel %vm398, %v377, 0
    %v415 = vsel %vm398, %v379, 0
    %v417 = vsel %vm398, %v381, 0
    %419 = vmatprep.subr.mxu0 0.0
    %420 = vmatpush1.xpose.msra.mxu0 0.0
    %421 = vmatprep.subr.mxu0 0.0
    %422 = vmatpush1.xpose.msra.mxu0 0.0
    %423 = vmatprep.subr.mxu0 0.0
    %424 = vmatpush1.xpose.msra.mxu0 0.0
    %425 = vmatprep.subr.mxu0 0.0
    %426 = vmatpush1.xpose.msra.mxu0 0.0
    %427 = vmatprep.subr.mxu0 0.0
    %428 = vmatpush1.xpose.msra.mxu0 0.0
    %429 = vmatprep.subr.mxu0 0.0
    %430 = vmatpush1.xpose.msra.mxu0 0.0
    %431 = vmatprep.subr.mxu0 0.0
    %432 = vmatpush1.xpose.msra.mxu0 0.0
    %433 = vmatprep.subr.mxu0 0.0
    %434 = vmatpush1.xpose.msra.mxu0 0.0
    %435 = vmatprep.subr.mxu0 0.0
    %436 = vmatpush1.xpose.msra.mxu0 0.0
    %437 = vmatprep.subr.mxu0 0.0
    %438 = vmatpush1.xpose.msra.mxu0 0.0
    %439 = vmatprep.subr.mxu0 0.0
    %440 = vmatpush1.xpose.msra.mxu0 0.0
    %441 = vmatprep.subr.mxu0 0.0
    %442 = vmatpush1.xpose.msra.mxu0 0.0
    %443 = vmatprep.subr.mxu0 0.0
    %444 = vmatpush1.xpose.msra.mxu0 %v417
    %445 = vmatprep.subr.mxu0 0.0
    %446 = vmatpush1.xpose.msra.mxu0 %v415
    %447 = vmatprep.subr.mxu0 0.0
    %448 = vmatpush1.xpose.msra.mxu0 %v413
    %449 = vmatprep.subr.mxu0 0.0
    %450 = vmatpush1.xpose.msra.mxu0 %v411
    %451 = vmatprep.subr.mxu0 0.0
    %452 = vmatpush2.xpose.msra.mxu0 0.0
    %453 = vmatprep.subr.mxu0 0.0
    %454 = vmatpush2.xpose.msra.mxu0 0.0
    %455 = vmatprep.subr.mxu0 0.0
    %456 = vmatpush2.xpose.msra.mxu0 0.0
    %457 = vmatprep.subr.mxu0 0.0
    %458 = vmatpush2.xpose.msra.mxu0 0.0
    %459 = vmatprep.subr.mxu0 0.0
    %460 = vmatpush2.xpose.msra.mxu0 0.0
    %461 = vmatprep.subr.mxu0 0.0
    %462 = vmatpush2.xpose.msra.mxu0 0.0
    %463 = vmatprep.subr.mxu0 0.0
    %464 = vmatpush2.xpose.msra.mxu0 0.0
    %465 = vmatprep.subr.mxu0 0.0
    %466 = vmatpush2.xpose.msra.mxu0 0.0
    %467 = vmatprep.subr.mxu0 0.0
    %468 = vmatpush2.xpose.msra.mxu0 0.0
    %469 = vmatprep.subr.mxu0 0.0
    %470 = vmatpush2.xpose.msra.mxu0 0.0
    %471 = vmatprep.subr.mxu0 0.0
    %472 = vmatpush2.xpose.msra.mxu0 0.0
    %473 = vmatprep.subr.mxu0 0.0
    %474 = vmatpush2.xpose.msra.mxu0 0.0
    %475 = vmatprep.subr.mxu0 0.0
    %476 = vmatpush2.xpose.msra.mxu0 0.0
    %477 = vmatprep.subr.mxu0 0.0
    %478 = vmatpush2.xpose.msra.mxu0 0.0
    %479 = vmatprep.subr.mxu0 0.0
    %480 = vmatpush2.xpose.msra.mxu0 0.0
    %481 = vmatprep.subr.mxu0 0.0
    %482 = vmatpush2.xpose.msra.mxu0 0.0
    %483 = vmatprep.mubr.f32.mxu0 0.0
    %484 = vmatmul.mubr.f32.gmra.mxu0 %v400
    %v485 = vpop.f32.mrf.mxu0
    %v486 = vadd.f32 %v387, %v485
    %v487 = vpop.f32.mrf.mxu0
    %488 = vmatprep.mubr.f32.mxu0 0.0
    %489 = vmatmul.mubr.f32.gmra.mxu0 %v403
    %v490 = vpop.f32.mrf.mxu0
    %v491 = vadd.f32 %v389, %v490
    %v492 = vpop.f32.mrf.mxu0
    %493 = vmatprep.mubr.f32.mxu0 0.0
    %494 = vmatmul.mubr.f32.gmra.mxu0 %v406
    %v495 = vpop.f32.mrf.mxu0
    %v496 = vadd.f32 %v391, %v495
    %v497 = vpop.f32.mrf.mxu0
    %498 = vmatprep.mubr.f32.mxu0 0.0
    %499 = vmatmul.mubr.f32.gmra.mxu0 %v409
    %v500 = vpop.f32.mrf.mxu0
    %v501 = vadd.f32 %v393, %v500
    %v502 = vpop.f32.mrf.mxu0
    %503 = vdwg.mxu0
    %v504 = vsel %vm230, %v486, -inf
    %505 = vmax.xlane.f32.xlu0 %v504
    %v506 = vpop.xlane.xlu0 %505
    %v507 = vsel %vm230, %v491, -inf
    %508 = vmax.xlane.f32.xlu0 %v507
    %v509 = vpop.xlane.xlu0 %508
    %v510 = vsel %vm230, %v496, -inf
    %511 = vmax.xlane.f32.xlu0 %v510
    %v512 = vpop.xlane.xlu0 %511
    %v513 = vsel %vm230, %v501, -inf
    %514 = vmax.xlane.f32.xlu0 %v513
    %v515 = vpop.xlane.xlu0 %514
    %v516 = vsub.f32 %v486, %v506
    %v517 = vsub.f32 %v491, %v509
    %v518 = vsub.f32 %v496, %v512
    %v519 = vsub.f32 %v501, %v515
    %v520 = vmul.f32 %v516, 1.442695
    %v521 = vpow.pop %v520
    %v522 = vmul.f32 %v517, 1.442695
    %v523 = vpow.pop %v522
    %v524 = vmul.f32 %v518, 1.442695
    %v525 = vpow.pop %v524
    %v526 = vmul.f32 %v519, 1.442695
    %v527 = vpow.pop %v526
    %v528 = vsel %vm230, %v521, 0.0
    %529 = vadd.xlane.f32.xlu0 %v528
    %v530 = vpop.xlane.xlu0 %529
    %v531 = vsel %vm230, %v523, 0.0
    %532 = vadd.xlane.f32.xlu0 %v531
    %v533 = vpop.xlane.xlu0 %532
    %v534 = vsel %vm230, %v525, 0.0
    %535 = vadd.xlane.f32.xlu0 %v534
    %v536 = vpop.xlane.xlu0 %535
    %v537 = vsel %vm230, %v527, 0.0
    %538 = vadd.xlane.f32.xlu0 %v537
    %v539 = vpop.xlane.xlu0 %538
    %v540 = vrcp.pop %v530
    %v541 = vrcp.pop %v533
    %v542 = vrcp.pop %v536
    %v543 = vrcp.pop %v539
    %v544 = vmul.f32 %v521, %v540
    %v545 = vmul.f32 %v523, %v541
    %v546 = vmul.f32 %v525, %v542
    %v547 = vmul.f32 %v527, %v543
    %548 = vrot.lane.b32.xlu0 %v348, 64
    %v549 = vpop.permute.xlu0 %548
    %550 = vrot.lane.b32.xlu0 %v351, 64
    %v551 = vpop.permute.xlu0 %550
    %552 = vrot.lane.b32.xlu0 %v356, 64
    %v553 = vpop.permute.xlu0 %552
    %554 = vrot.lane.b32.xlu0 %v359, 64
    %v555 = vpop.permute.xlu0 %554
    %v561 = vsel %vm230, %v544, 0
    %v564 = vsel %vm230, %v545, 0
    %v567 = vsel %vm230, %v546, 0
    %v570 = vsel %vm230, %v547, 0
    %572 = vmatprep.subr.mxu0 0.0
    %573 = vmatpush1.msra.mxu0 0.0
    %574 = vmatprep.subr.mxu0 0.0
    %575 = vmatpush1.msra.mxu0 0.0
    %576 = vmatprep.subr.mxu0 0.0
    %577 = vmatpush1.msra.mxu0 0.0
    %578 = vmatprep.subr.mxu0 0.0
    %579 = vmatpush1.msra.mxu0 0.0
    %580 = vmatprep.subr.mxu0 0.0
    %581 = vmatpush1.msra.mxu0 0.0
    %582 = vmatprep.subr.mxu0 0.0
    %583 = vmatpush1.msra.mxu0 0.0
    %584 = vmatprep.subr.mxu0 0.0
    %585 = vmatpush1.msra.mxu0 0.0
    %586 = vmatprep.subr.mxu0 0.0
    %587 = vmatpush1.msra.mxu0 0.0
    %588 = vmatprep.subr.mxu0 0.0
    %589 = vmatpush1.msra.mxu0 0.0
    %590 = vmatprep.subr.mxu0 0.0
    %591 = vmatpush1.msra.mxu0 0.0
    %592 = vmatprep.subr.mxu0 0.0
    %593 = vmatpush1.msra.mxu0 0.0
    %594 = vmatprep.subr.mxu0 0.0
    %595 = vmatpush1.msra.mxu0 0.0
    %596 = vmatprep.subr.mxu0 0.0
    %597 = vmatpush1.msra.mxu0 %v555
    %598 = vmatprep.subr.mxu0 0.0
    %599 = vmatpush1.msra.mxu0 %v553
    %600 = vmatprep.subr.mxu0 0.0
    %601 = vmatpush1.msra.mxu0 %v551
    %602 = vmatprep.subr.mxu0 0.0
    %603 = vmatpush1.msra.mxu0 %v549
    %604 = vmatprep.subr.mxu0 0.0
    %605 = vmatpush2.msra.mxu0 0.0
    %606 = vmatprep.subr.mxu0 0.0
    %607 = vmatpush2.msra.mxu0 0.0
    %608 = vmatprep.subr.mxu0 0.0
    %609 = vmatpush2.msra.mxu0 0.0
    %610 = vmatprep.subr.mxu0 0.0
    %611 = vmatpush2.msra.mxu0 0.0
    %612 = vmatprep.subr.mxu0 0.0
    %613 = vmatpush2.msra.mxu0 0.0
    %614 = vmatprep.subr.mxu0 0.0
    %615 = vmatpush2.msra.mxu0 0.0
    %616 = vmatprep.subr.mxu0 0.0
    %617 = vmatpush2.msra.mxu0 0.0
    %618 = vmatprep.subr.mxu0 0.0
    %619 = vmatpush2.msra.mxu0 0.0
    %620 = vmatprep.subr.mxu0 0.0
    %621 = vmatpush2.msra.mxu0 0.0
    %622 = vmatprep.subr.mxu0 0.0
    %623 = vmatpush2.msra.mxu0 0.0
    %624 = vmatprep.subr.mxu0 0.0
    %625 = vmatpush2.msra.mxu0 0.0
    %626 = vmatprep.subr.mxu0 0.0
    %627 = vmatpush2.msra.mxu0 0.0
    %628 = vmatprep.subr.mxu0 0.0
    %629 = vmatpush2.msra.mxu0 0.0
    %630 = vmatprep.subr.mxu0 0.0
    %631 = vmatpush2.msra.mxu0 0.0
    %632 = vmatprep.subr.mxu0 0.0
    %633 = vmatpush2.msra.mxu0 0.0
    %634 = vmatprep.subr.mxu0 0.0
    %635 = vmatpush2.msra.mxu0 0.0
    %636 = vmatprep.mubr.f32.mxu0 0.0
    %637 = vmatmul.mubr.f32.gmra.mxu0 %v561
    %v638 = vpop.f32.mrf.mxu0
    %v639 = vadd.f32 0.0, %v638
    %v640 = vpop.f32.mrf.mxu0
    %641 = vmatprep.mubr.f32.mxu0 0.0
    %642 = vmatmul.mubr.f32.gmra.mxu0 %v564
    %v643 = vpop.f32.mrf.mxu0
    %v644 = vadd.f32 0.0, %v643
    %v645 = vpop.f32.mrf.mxu0
    %646 = vmatprep.mubr.f32.mxu0 0.0
    %647 = vmatmul.mubr.f32.gmra.mxu0 %v567
    %v648 = vpop.f32.mrf.mxu0
    %v649 = vadd.f32 0.0, %v648
    %v650 = vpop.f32.mrf.mxu0
    %651 = vmatprep.mubr.f32.mxu0 0.0
    %652 = vmatmul.mubr.f32.gmra.mxu0 %v570
    %v653 = vpop.f32.mrf.mxu0
    %v654 = vadd.f32 0.0, %v653
    %v655 = vpop.f32.mrf.mxu0
    %656 = vdwg.mxu0
    %657 = vrot.lane.b32.xlu0 %v366, 120
    %v658 = vpop.permute.xlu0 %657
    %659 = vrot.lane.b32.xlu0 %v367, 120
    %v660 = vpop.permute.xlu0 %659
    %661 = vrot.lane.b32.xlu0 %v368, 120
    %v662 = vpop.permute.xlu0 %661
    %663 = vrot.lane.b32.xlu0 %v369, 120
    %v664 = vpop.permute.xlu0 %663
    %665 = vrot.lane.b32.xlu0 %v348, 88
    %v666 = vpop.permute.xlu0 %665
    %667 = vrot.lane.b32.xlu0 %v351, 88
    %v668 = vpop.permute.xlu0 %667
    %669 = vrot.lane.b32.xlu0 %v356, 88
    %v670 = vpop.permute.xlu0 %669
    %671 = vrot.lane.b32.xlu0 %v359, 88
    %v672 = vpop.permute.xlu0 %671
    %v673 = vsel %vm398, %v658, 0
    %v675 = vsel %vm398, %v660, 0
    %v677 = vsel %vm398, %v662, 0
    %v679 = vsel %vm398, %v664, 0
    %v681 = vsel %vm398, %v666, 0
    %v683 = vsel %vm398, %v668, 0
    %v685 = vsel %vm398, %v670, 0
    %v687 = vsel %vm398, %v672, 0
    %689 = vmatprep.subr.mxu0 0.0
    %690 = vmatpush1.xpose.msra.mxu0 0.0
    %691 = vmatprep.subr.mxu0 0.0
    %692 = vmatpush1.xpose.msra.mxu0 0.0
    %693 = vmatprep.subr.mxu0 0.0
    %694 = vmatpush1.xpose.msra.mxu0 0.0
    %695 = vmatprep.subr.mxu0 0.0
    %696 = vmatpush1.xpose.msra.mxu0 0.0
    %697 = vmatprep.subr.mxu0 0.0
    %698 = vmatpush1.xpose.msra.mxu0 0.0
    %699 = vmatprep.subr.mxu0 0.0
    %700 = vmatpush1.xpose.msra.mxu0 0.0
    %701 = vmatprep.subr.mxu0 0.0
    %702 = vmatpush1.xpose.msra.mxu0 0.0
    %703 = vmatprep.subr.mxu0 0.0
    %704 = vmatpush1.xpose.msra.mxu0 0.0
    %705 = vmatprep.subr.mxu0 0.0
    %706 = vmatpush1.xpose.msra.mxu0 0.0
    %707 = vmatprep.subr.mxu0 0.0
    %708 = vmatpush1.xpose.msra.mxu0 0.0
    %709 = vmatprep.subr.mxu0 0.0
    %710 = vmatpush1.xpose.msra.mxu0 0.0
    %711 = vmatprep.subr.mxu0 0.0
    %712 = vmatpush1.xpose.msra.mxu0 0.0
    %713 = vmatprep.subr.mxu0 0.0
    %714 = vmatpush1.xpose.msra.mxu0 %v687
    %715 = vmatprep.subr.mxu0 0.0
    %716 = vmatpush1.xpose.msra.mxu0 %v685
    %717 = vmatprep.subr.mxu0 0.0
    %718 = vmatpush1.xpose.msra.mxu0 %v683
    %719 = vmatprep.subr.mxu0 0.0
    %720 = vmatpush1.xpose.msra.mxu0 %v681
    %721 = vmatprep.subr.mxu0 0.0
    %722 = vmatpush2.xpose.msra.mxu0 0.0
    %723 = vmatprep.subr.mxu0 0.0
    %724 = vmatpush2.xpose.msra.mxu0 0.0
    %725 = vmatprep.subr.mxu0 0.0
    %726 = vmatpush2.xpose.msra.mxu0 0.0
    %727 = vmatprep.subr.mxu0 0.0
    %728 = vmatpush2.xpose.msra.mxu0 0.0
    %729 = vmatprep.subr.mxu0 0.0
    %730 = vmatpush2.xpose.msra.mxu0 0.0
    %731 = vmatprep.subr.mxu0 0.0
    %732 = vmatpush2.xpose.msra.mxu0 0.0
    %733 = vmatprep.subr.mxu0 0.0
    %734 = vmatpush2.xpose.msra.mxu0 0.0
    %735 = vmatprep.subr.mxu0 0.0
    %736 = vmatpush2.xpose.msra.mxu0 0.0
    %737 = vmatprep.subr.mxu0 0.0
    %738 = vmatpush2.xpose.msra.mxu0 0.0
    %739 = vmatprep.subr.mxu0 0.0
    %740 = vmatpush2.xpose.msra.mxu0 0.0
    %741 = vmatprep.subr.mxu0 0.0
    %742 = vmatpush2.xpose.msra.mxu0 0.0
    %743 = vmatprep.subr.mxu0 0.0
    %744 = vmatpush2.xpose.msra.mxu0 0.0
    %745 = vmatprep.subr.mxu0 0.0
    %746 = vmatpush2.xpose.msra.mxu0 0.0
    %747 = vmatprep.subr.mxu0 0.0
    %748 = vmatpush2.xpose.msra.mxu0 0.0
    %749 = vmatprep.subr.mxu0 0.0
    %750 = vmatpush2.xpose.msra.mxu0 0.0
    %751 = vmatprep.subr.mxu0 0.0
    %752 = vmatpush2.xpose.msra.mxu0 0.0
    %753 = vmatprep.mubr.f32.mxu0 0.0
    %754 = vmatmul.mubr.f32.gmra.mxu0 %v673
    %v755 = vpop.f32.mrf.mxu0
    %v756 = vadd.f32 %v387, %v755
    %v757 = vpop.f32.mrf.mxu0
    %758 = vmatprep.mubr.f32.mxu0 0.0
    %759 = vmatmul.mubr.f32.gmra.mxu0 %v675
    %v760 = vpop.f32.mrf.mxu0
    %v761 = vadd.f32 %v389, %v760
    %v762 = vpop.f32.mrf.mxu0
    %763 = vmatprep.mubr.f32.mxu0 0.0
    %764 = vmatmul.mubr.f32.gmra.mxu0 %v677
    %v765 = vpop.f32.mrf.mxu0
    %v766 = vadd.f32 %v391, %v765
    %v767 = vpop.f32.mrf.mxu0
    %768 = vmatprep.mubr.f32.mxu0 0.0
    %769 = vmatmul.mubr.f32.gmra.mxu0 %v679
    %v770 = vpop.f32.mrf.mxu0
    %v771 = vadd.f32 %v393, %v770
    %v772 = vpop.f32.mrf.mxu0
    %773 = vdwg.mxu0
    %v774 = vsel %vm230, %v756, -inf
    %775 = vmax.xlane.f32.xlu0 %v774
    %v776 = vpop.xlane.xlu0 %775
    %v777 = vsel %vm230, %v761, -inf
    %778 = vmax.xlane.f32.xlu0 %v777
    %v779 = vpop.xlane.xlu0 %778
    %v780 = vsel %vm230, %v766, -inf
    %781 = vmax.xlane.f32.xlu0 %v780
    %v782 = vpop.xlane.xlu0 %781
    %v783 = vsel %vm230, %v771, -inf
    %784 = vmax.xlane.f32.xlu0 %v783
    %v785 = vpop.xlane.xlu0 %784
    %v786 = vsub.f32 %v756, %v776
    %v787 = vsub.f32 %v761, %v779
    %v788 = vsub.f32 %v766, %v782
    %v789 = vsub.f32 %v771, %v785
    %v790 = vmul.f32 %v786, 1.442695
    %v791 = vpow.pop %v790
    %v792 = vmul.f32 %v787, 1.442695
    %v793 = vpow.pop %v792
    %v794 = vmul.f32 %v788, 1.442695
    %v795 = vpow.pop %v794
    %v796 = vmul.f32 %v789, 1.442695
    %v797 = vpow.pop %v796
    %v798 = vsel %vm230, %v791, 0.0
    %799 = vadd.xlane.f32.xlu0 %v798
    %v800 = vpop.xlane.xlu0 %799
    %v801 = vsel %vm230, %v793, 0.0
    %802 = vadd.xlane.f32.xlu0 %v801
    %v803 = vpop.xlane.xlu0 %802
    %v804 = vsel %vm230, %v795, 0.0
    %805 = vadd.xlane.f32.xlu0 %v804
    %v806 = vpop.xlane.xlu0 %805
    %v807 = vsel %vm230, %v797, 0.0
    %808 = vadd.xlane.f32.xlu0 %v807
    %v809 = vpop.xlane.xlu0 %808
    %v810 = vrcp.pop %v800
    %v811 = vrcp.pop %v803
    %v812 = vrcp.pop %v806
    %v813 = vrcp.pop %v809
    %v814 = vmul.f32 %v791, %v810
    %v815 = vmul.f32 %v793, %v811
    %v816 = vmul.f32 %v795, %v812
    %v817 = vmul.f32 %v797, %v813
    %818 = vrot.lane.b32.xlu0 %v348, 56
    %v819 = vpop.permute.xlu0 %818
    %820 = vrot.lane.b32.xlu0 %v351, 56
    %v821 = vpop.permute.xlu0 %820
    %822 = vrot.lane.b32.xlu0 %v356, 56
    %v823 = vpop.permute.xlu0 %822
    %824 = vrot.lane.b32.xlu0 %v359, 56
    %v825 = vpop.permute.xlu0 %824
    %v831 = vsel %vm230, %v814, 0
    %v834 = vsel %vm230, %v815, 0
    %v837 = vsel %vm230, %v816, 0
    %v840 = vsel %vm230, %v817, 0
    %842 = vmatprep.subr.mxu0 0.0
    %843 = vmatpush1.msra.mxu0 0.0
    %844 = vmatprep.subr.mxu0 0.0
    %845 = vmatpush1.msra.mxu0 0.0
    %846 = vmatprep.subr.mxu0 0.0
    %847 = vmatpush1.msra.mxu0 0.0
    %848 = vmatprep.subr.mxu0 0.0
    %849 = vmatpush1.msra.mxu0 0.0
    %850 = vmatprep.subr.mxu0 0.0
    %851 = vmatpush1.msra.mxu0 0.0
    %852 = vmatprep.subr.mxu0 0.0
    %853 = vmatpush1.msra.mxu0 0.0
    %854 = vmatprep.subr.mxu0 0.0
    %855 = vmatpush1.msra.mxu0 0.0
    %856 = vmatprep.subr.mxu0 0.0
    %857 = vmatpush1.msra.mxu0 0.0
    %858 = vmatprep.subr.mxu0 0.0
    %859 = vmatpush1.msra.mxu0 0.0
    %860 = vmatprep.subr.mxu0 0.0
    %861 = vmatpush1.msra.mxu0 0.0
    %862 = vmatprep.subr.mxu0 0.0
    %863 = vmatpush1.msra.mxu0 0.0
    %864 = vmatprep.subr.mxu0 0.0
    %865 = vmatpush1.msra.mxu0 0.0
    %866 = vmatprep.subr.mxu0 0.0
    %867 = vmatpush1.msra.mxu0 %v825
    %868 = vmatprep.subr.mxu0 0.0
    %869 = vmatpush1.msra.mxu0 %v823
    %870 = vmatprep.subr.mxu0 0.0
    %871 = vmatpush1.msra.mxu0 %v821
    %872 = vmatprep.subr.mxu0 0.0
    %873 = vmatpush1.msra.mxu0 %v819
    %874 = vmatprep.subr.mxu0 0.0
    %875 = vmatpush2.msra.mxu0 0.0
    %876 = vmatprep.subr.mxu0 0.0
    %877 = vmatpush2.msra.mxu0 0.0
    %878 = vmatprep.subr.mxu0 0.0
    %879 = vmatpush2.msra.mxu0 0.0
    %880 = vmatprep.subr.mxu0 0.0
    %881 = vmatpush2.msra.mxu0 0.0
    %882 = vmatprep.subr.mxu0 0.0
    %883 = vmatpush2.msra.mxu0 0.0
    %884 = vmatprep.subr.mxu0 0.0
    %885 = vmatpush2.msra.mxu0 0.0
    %886 = vmatprep.subr.mxu0 0.0
    %887 = vmatpush2.msra.mxu0 0.0
    %888 = vmatprep.subr.mxu0 0.0
    %889 = vmatpush2.msra.mxu0 0.0
    %890 = vmatprep.subr.mxu0 0.0
    %891 = vmatpush2.msra.mxu0 0.0
    %892 = vmatprep.subr.mxu0 0.0
    %893 = vmatpush2.msra.mxu0 0.0
    %894 = vmatprep.subr.mxu0 0.0
    %895 = vmatpush2.msra.mxu0 0.0
    %896 = vmatprep.subr.mxu0 0.0
    %897 = vmatpush2.msra.mxu0 0.0
    %898 = vmatprep.subr.mxu0 0.0
    %899 = vmatpush2.msra.mxu0 0.0
    %900 = vmatprep.subr.mxu0 0.0
    %901 = vmatpush2.msra.mxu0 0.0
    %902 = vmatprep.subr.mxu0 0.0
    %903 = vmatpush2.msra.mxu0 0.0
    %904 = vmatprep.subr.mxu0 0.0
    %905 = vmatpush2.msra.mxu0 0.0
    %906 = vmatprep.mubr.f32.mxu0 0.0
    %907 = vmatmul.mubr.f32.gmra.mxu0 %v831
    %v908 = vpop.f32.mrf.mxu0
    %v909 = vadd.f32 0.0, %v908
    %v910 = vpop.f32.mrf.mxu0
    %911 = vmatprep.mubr.f32.mxu0 0.0
    %912 = vmatmul.mubr.f32.gmra.mxu0 %v834
    %v913 = vpop.f32.mrf.mxu0
    %v914 = vadd.f32 0.0, %v913
    %v915 = vpop.f32.mrf.mxu0
    %916 = vmatprep.mubr.f32.mxu0 0.0
    %917 = vmatmul.mubr.f32.gmra.mxu0 %v837
    %v918 = vpop.f32.mrf.mxu0
    %v919 = vadd.f32 0.0, %v918
    %v920 = vpop.f32.mrf.mxu0
    %921 = vmatprep.mubr.f32.mxu0 0.0
    %922 = vmatmul.mubr.f32.gmra.mxu0 %v840
    %v923 = vpop.f32.mrf.mxu0
    %v924 = vadd.f32 0.0, %v923
    %v925 = vpop.f32.mrf.mxu0
    %926 = vdwg.mxu0
    %v928 = vsel %vm398, %v909, 0
    %v931 = vsel %vm398, %v914, 0
    %v934 = vsel %vm398, %v919, 0
    %v937 = vsel %vm398, %v924, 0
    %939 = vmatprep.subr.mxu0 0.0
    %940 = vmatpush1.msra.mxu0 0.0
    %941 = vmatprep.subr.mxu0 0.0
    %942 = vmatpush1.msra.mxu0 0.0
    %943 = vmatprep.subr.mxu0 0.0
    %944 = vmatpush1.msra.mxu0 0.0
    %945 = vmatprep.subr.mxu0 0.0
    %946 = vmatpush1.msra.mxu0 0.0
    %947 = vmatprep.subr.mxu0 0.0
    %948 = vmatpush1.msra.mxu0 0.0
    %949 = vmatprep.subr.mxu0 0.0
    %950 = vmatpush1.msra.mxu0 0.0
    %951 = vmatprep.subr.mxu0 0.0
    %952 = vmatpush1.msra.mxu0 0.0
    %953 = vmatprep.subr.mxu0 0.0
    %954 = vmatpush1.msra.mxu0 0.0
    %955 = vmatprep.subr.mxu0 0.0
    %956 = vmatpush1.msra.mxu0 0.0
    %957 = vmatprep.subr.mxu0 0.0
    %958 = vmatpush1.msra.mxu0 0.0
    %959 = vmatprep.subr.mxu0 0.0
    %960 = vmatpush1.msra.mxu0 0.0
    %961 = vmatprep.subr.mxu0 0.0
    %962 = vmatpush1.msra.mxu0 0.0
    %963 = vmatprep.subr.mxu0 0.0
    %964 = vmatpush1.msra.mxu0 0.0
    %965 = vmatprep.subr.mxu0 0.0
    %966 = vmatpush1.msra.mxu0 0.0
    %967 = vmatprep.subr.mxu0 0.0
    %968 = vmatpush1.msra.mxu0 0.0
    %969 = vmatprep.subr.mxu0 0.0
    %970 = vmatpush1.msra.mxu0 %v363
    %971 = vmatprep.subr.mxu0 0.0
    %972 = vmatpush2.msra.mxu0 0.0
    %973 = vmatprep.subr.mxu0 0.0
    %974 = vmatpush2.msra.mxu0 0.0
    %975 = vmatprep.subr.mxu0 0.0
    %976 = vmatpush2.msra.mxu0 0.0
    %977 = vmatprep.subr.mxu0 0.0
    %978 = vmatpush2.msra.mxu0 0.0
    %979 = vmatprep.subr.mxu0 0.0
    %980 = vmatpush2.msra.mxu0 0.0
    %981 = vmatprep.subr.mxu0 0.0
    %982 = vmatpush2.msra.mxu0 0.0
    %983 = vmatprep.subr.mxu0 0.0
    %984 = vmatpush2.msra.mxu0 0.0
    %985 = vmatprep.subr.mxu0 0.0
    %986 = vmatpush2.msra.mxu0 0.0
    %987 = vmatprep.subr.mxu0 0.0
    %988 = vmatpush2.msra.mxu0 0.0
    %989 = vmatprep.subr.mxu0 0.0
    %990 = vmatpush2.msra.mxu0 0.0
    %991 = vmatprep.subr.mxu0 0.0
    %992 = vmatpush2.msra.mxu0 0.0
    %993 = vmatprep.subr.mxu0 0.0
    %994 = vmatpush2.msra.mxu0 0.0
    %995 = vmatprep.subr.mxu0 0.0
    %996 = vmatpush2.msra.mxu0 0.0
    %997 = vmatprep.subr.mxu0 0.0
    %998 = vmatpush2.msra.mxu0 0.0
    %999 = vmatprep.subr.mxu0 0.0
    %1000 = vmatpush2.msra.mxu0 0.0
    %1001 = vmatprep.subr.mxu0 0.0
    %1002 = vmatpush2.msra.mxu0 0.0
    %1003 = vmatprep.mubr.f32.mxu0 0.0
    %1004 = vmatmul.mubr.f32.gmra.mxu0 %v928
    %v1005 = vpop.f32.mrf.mxu0
    %v1006 = vadd.f32 0.0, %v1005
    %v1007 = vpop.f32.mrf.mxu0
    %1008 = vmatprep.mubr.f32.mxu0 0.0
    %1009 = vmatmul.mubr.f32.gmra.mxu0 %v931
    %v1010 = vpop.f32.mrf.mxu0
    %v1011 = vadd.f32 0.0, %v1010
    %v1012 = vpop.f32.mrf.mxu0
    %1013 = vmatprep.mubr.f32.mxu0 0.0
    %1014 = vmatmul.mubr.f32.gmra.mxu0 %v934
    %v1015 = vpop.f32.mrf.mxu0
    %v1016 = vadd.f32 0.0, %v1015
    %v1017 = vpop.f32.mrf.mxu0
    %1018 = vmatprep.mubr.f32.mxu0 0.0
    %1019 = vmatmul.mubr.f32.gmra.mxu0 %v937
    %v1020 = vpop.f32.mrf.mxu0
    %v1021 = vadd.f32 0.0, %v1020
    %v1022 = vpop.f32.mrf.mxu0
    %1023 = vdwg.mxu0
    %v1025 = vsel %vm398, %v639, 0
    %v1028 = vsel %vm398, %v644, 0
    %v1031 = vsel %vm398, %v649, 0
    %v1034 = vsel %vm398, %v654, 0
    %1036 = vmatprep.subr.mxu0 0.0
    %1037 = vmatpush1.msra.mxu0 0.0
    %1038 = vmatprep.subr.mxu0 0.0
    %1039 = vmatpush1.msra.mxu0 0.0
    %1040 = vmatprep.subr.mxu0 0.0
    %1041 = vmatpush1.msra.mxu0 0.0
    %1042 = vmatprep.subr.mxu0 0.0
    %1043 = vmatpush1.msra.mxu0 0.0
    %1044 = vmatprep.subr.mxu0 0.0
    %1045 = vmatpush1.msra.mxu0 0.0
    %1046 = vmatprep.subr.mxu0 0.0
    %1047 = vmatpush1.msra.mxu0 0.0
    %1048 = vmatprep.subr.mxu0 0.0
    %1049 = vmatpush1.msra.mxu0 0.0
    %1050 = vmatprep.subr.mxu0 0.0
    %1051 = vmatpush1.msra.mxu0 0.0
    %1052 = vmatprep.subr.mxu0 0.0
    %1053 = vmatpush1.msra.mxu0 0.0
    %1054 = vmatprep.subr.mxu0 0.0
    %1055 = vmatpush1.msra.mxu0 0.0
    %1056 = vmatprep.subr.mxu0 0.0
    %1057 = vmatpush1.msra.mxu0 0.0
    %1058 = vmatprep.subr.mxu0 0.0
    %1059 = vmatpush1.msra.mxu0 0.0
    %1060 = vmatprep.subr.mxu0 0.0
    %1061 = vmatpush1.msra.mxu0 0.0
    %1062 = vmatprep.subr.mxu0 0.0
    %1063 = vmatpush1.msra.mxu0 0.0
    %1064 = vmatprep.subr.mxu0 0.0
    %1065 = vmatpush1.msra.mxu0 0.0
    %1066 = vmatprep.subr.mxu0 0.0
    %1067 = vmatpush1.msra.mxu0 %v362
    %1068 = vmatprep.subr.mxu0 0.0
    %1069 = vmatpush2.msra.mxu0 0.0
    %1070 = vmatprep.subr.mxu0 0.0
    %1071 = vmatpush2.msra.mxu0 0.0
    %1072 = vmatprep.subr.mxu0 0.0
    %1073 = vmatpush2.msra.mxu0 0.0
    %1074 = vmatprep.subr.mxu0 0.0
    %1075 = vmatpush2.msra.mxu0 0.0
    %1076 = vmatprep.subr.mxu0 0.0
    %1077 = vmatpush2.msra.mxu0 0.0
    %1078 = vmatprep.subr.mxu0 0.0
    %1079 = vmatpush2.msra.mxu0 0.0
    %1080 = vmatprep.subr.mxu0 0.0
    %1081 = vmatpush2.msra.mxu0 0.0
    %1082 = vmatprep.subr.mxu0 0.0
    %1083 = vmatpush2.msra.mxu0 0.0
    %1084 = vmatprep.subr.mxu0 0.0
    %1085 = vmatpush2.msra.mxu0 0.0
    %1086 = vmatprep.subr.mxu0 0.0
    %1087 = vmatpush2.msra.mxu0 0.0
    %1088 = vmatprep.subr.mxu0 0.0
    %1089 = vmatpush2.msra.mxu0 0.0
    %1090 = vmatprep.subr.mxu0 0.0
    %1091 = vmatpush2.msra.mxu0 0.0
    %1092 = vmatprep.subr.mxu0 0.0
    %1093 = vmatpush2.msra.mxu0 0.0
    %1094 = vmatprep.subr.mxu0 0.0
    %1095 = vmatpush2.msra.mxu0 0.0
    %1096 = vmatprep.subr.mxu0 0.0
    %1097 = vmatpush2.msra.mxu0 0.0
    %1098 = vmatprep.subr.mxu0 0.0
    %1099 = vmatpush2.msra.mxu0 0.0
    %1100 = vmatprep.mubr.f32.mxu0 0.0
    %1101 = vmatmul.mubr.f32.gmra.mxu0 %v1025
    %v1102 = vpop.f32.mrf.mxu0
    %v1103 = vadd.f32 %v1006, %v1102
    %v1104 = vpop.f32.mrf.mxu0
    %1105 = vmatprep.mubr.f32.mxu0 0.0
    %1106 = vmatmul.mubr.f32.gmra.mxu0 %v1028
    %v1107 = vpop.f32.mrf.mxu0
    %v1108 = vadd.f32 %v1011, %v1107
    %v1109 = vpop.f32.mrf.mxu0
    %1110 = vmatprep.mubr.f32.mxu0 0.0
    %1111 = vmatmul.mubr.f32.gmra.mxu0 %v1031
    %v1112 = vpop.f32.mrf.mxu0
    %v1113 = vadd.f32 %v1016, %v1112
    %v1114 = vpop.f32.mrf.mxu0
    %1115 = vmatprep.mubr.f32.mxu0 0.0
    %1116 = vmatmul.mubr.f32.gmra.mxu0 %v1034
    %v1117 = vpop.f32.mrf.mxu0
    %v1118 = vadd.f32 %v1021, %v1117
    %v1119 = vpop.f32.mrf.mxu0
    %1120 = vdwg.mxu0
    %1121 = vrot.lane.b32.xlu0 %v366, 112
    %v1122 = vpop.permute.xlu0 %1121
    %1123 = vrot.lane.b32.xlu0 %v367, 112
    %v1124 = vpop.permute.xlu0 %1123
    %1125 = vrot.lane.b32.xlu0 %v368, 112
    %v1126 = vpop.permute.xlu0 %1125
    %1127 = vrot.lane.b32.xlu0 %v369, 112
    %v1128 = vpop.permute.xlu0 %1127
    %1129 = vrot.lane.b32.xlu0 %v348, 80
    %v1130 = vpop.permute.xlu0 %1129
    %1131 = vrot.lane.b32.xlu0 %v351, 80
    %v1132 = vpop.permute.xlu0 %1131
    %1133 = vrot.lane.b32.xlu0 %v356, 80
    %v1134 = vpop.permute.xlu0 %1133
    %1135 = vrot.lane.b32.xlu0 %v359, 80
    %v1136 = vpop.permute.xlu0 %1135
    %v1137 = vsel %vm398, %v1122, 0
    %v1139 = vsel %vm398, %v1124, 0
    %v1141 = vsel %vm398, %v1126, 0
    %v1143 = vsel %vm398, %v1128, 0
    %v1145 = vsel %vm398, %v1130, 0
    %v1147 = vsel %vm398, %v1132, 0
    %v1149 = vsel %vm398, %v1134, 0
    %v1151 = vsel %vm398, %v1136, 0
    %1153 = vmatprep.subr.mxu0 0.0
    %1154 = vmatpush1.xpose.msra.mxu0 0.0
    %1155 = vmatprep.subr.mxu0 0.0
    %1156 = vmatpush1.xpose.msra.mxu0 0.0
    %1157 = vmatprep.subr.mxu0 0.0
    %1158 = vmatpush1.xpose.msra.mxu0 0.0
    %1159 = vmatprep.subr.mxu0 0.0
    %1160 = vmatpush1.xpose.msra.mxu0 0.0
    %1161 = vmatprep.subr.mxu0 0.0
    %1162 = vmatpush1.xpose.msra.mxu0 0.0
    %1163 = vmatprep.subr.mxu0 0.0
    %1164 = vmatpush1.xpose.msra.mxu0 0.0
    %1165 = vmatprep.subr.mxu0 0.0
    %1166 = vmatpush1.xpose.msra.mxu0 0.0
    %1167 = vmatprep.subr.mxu0 0.0
    %1168 = vmatpush1.xpose.msra.mxu0 0.0
    %1169 = vmatprep.subr.mxu0 0.0
    %1170 = vmatpush1.xpose.msra.mxu0 0.0
    %1171 = vmatprep.subr.mxu0 0.0
    %1172 = vmatpush1.xpose.msra.mxu0 0.0
    %1173 = vmatprep.subr.mxu0 0.0
    %1174 = vmatpush1.xpose.msra.mxu0 0.0
    %1175 = vmatprep.subr.mxu0 0.0
    %1176 = vmatpush1.xpose.msra.mxu0 0.0
    %1177 = vmatprep.subr.mxu0 0.0
    %1178 = vmatpush1.xpose.msra.mxu0 %v1151
    %1179 = vmatprep.subr.mxu0 0.0
    %1180 = vmatpush1.xpose.msra.mxu0 %v1149
    %1181 = vmatprep.subr.mxu0 0.0
    %1182 = vmatpush1.xpose.msra.mxu0 %v1147
    %1183 = vmatprep.subr.mxu0 0.0
    %1184 = vmatpush1.xpose.msra.mxu0 %v1145
    %1185 = vmatprep.subr.mxu0 0.0
    %1186 = vmatpush2.xpose.msra.mxu0 0.0
    %1187 = vmatprep.subr.mxu0 0.0
    %1188 = vmatpush2.xpose.msra.mxu0 0.0
    %1189 = vmatprep.subr.mxu0 0.0
    %1190 = vmatpush2.xpose.msra.mxu0 0.0
    %1191 = vmatprep.subr.mxu0 0.0
    %1192 = vmatpush2.xpose.msra.mxu0 0.0
    %1193 = vmatprep.subr.mxu0 0.0
    %1194 = vmatpush2.xpose.msra.mxu0 0.0
    %1195 = vmatprep.subr.mxu0 0.0
    %1196 = vmatpush2.xpose.msra.mxu0 0.0
    %1197 = vmatprep.subr.mxu0 0.0
    %1198 = vmatpush2.xpose.msra.mxu0 0.0
    %1199 = vmatprep.subr.mxu0 0.0
    %1200 = vmatpush2.xpose.msra.mxu0 0.0
    %1201 = vmatprep.subr.mxu0 0.0
    %1202 = vmatpush2.xpose.msra.mxu0 0.0
    %1203 = vmatprep.subr.mxu0 0.0
    %1204 = vmatpush2.xpose.msra.mxu0 0.0
    %1205 = vmatprep.subr.mxu0 0.0
    %1206 = vmatpush2.xpose.msra.mxu0 0.0
    %1207 = vmatprep.subr.mxu0 0.0
    %1208 = vmatpush2.xpose.msra.mxu0 0.0
    %1209 = vmatprep.subr.mxu0 0.0
    %1210 = vmatpush2.xpose.msra.mxu0 0.0
    %1211 = vmatprep.subr.mxu0 0.0
    %1212 = vmatpush2.xpose.msra.mxu0 0.0
    %1213 = vmatprep.subr.mxu0 0.0
    %1214 = vmatpush2.xpose.msra.mxu0 0.0
    %1215 = vmatprep.subr.mxu0 0.0
    %1216 = vmatpush2.xpose.msra.mxu0 0.0
    %1217 = vmatprep.mubr.f32.mxu0 0.0
    %1218 = vmatmul.mubr.f32.gmra.mxu0 %v1137
    %v1219 = vpop.f32.mrf.mxu0
    %v1220 = vadd.f32 %v387, %v1219
    %v1221 = vpop.f32.mrf.mxu0
    %1222 = vmatprep.mubr.f32.mxu0 0.0
    %1223 = vmatmul.mubr.f32.gmra.mxu0 %v1139
    %v1224 = vpop.f32.mrf.mxu0
    %v1225 = vadd.f32 %v389, %v1224
    %v1226 = vpop.f32.mrf.mxu0
    %1227 = vmatprep.mubr.f32.mxu0 0.0
    %1228 = vmatmul.mubr.f32.gmra.mxu0 %v1141
    %v1229 = vpop.f32.mrf.mxu0
    %v1230 = vadd.f32 %v391, %v1229
    %v1231 = vpop.f32.mrf.mxu0
    %1232 = vmatprep.mubr.f32.mxu0 0.0
    %1233 = vmatmul.mubr.f32.gmra.mxu0 %v1143
    %v1234 = vpop.f32.mrf.mxu0
    %v1235 = vadd.f32 %v393, %v1234
    %v1236 = vpop.f32.mrf.mxu0
    %1237 = vdwg.mxu0
    %v1238 = vsel %vm230, %v1220, -inf
    %1239 = vmax.xlane.f32.xlu0 %v1238
    %v1240 = vpop.xlane.xlu0 %1239
    %v1241 = vsel %vm230, %v1225, -inf
    %1242 = vmax.xlane.f32.xlu0 %v1241
    %v1243 = vpop.xlane.xlu0 %1242
    %v1244 = vsel %vm230, %v1230, -inf
    %1245 = vmax.xlane.f32.xlu0 %v1244
    %v1246 = vpop.xlane.xlu0 %1245
    %v1247 = vsel %vm230, %v1235, -inf
    %1248 = vmax.xlane.f32.xlu0 %v1247
    %v1249 = vpop.xlane.xlu0 %1248
    %v1250 = vsub.f32 %v1220, %v1240
    %v1251 = vsub.f32 %v1225, %v1243
    %v1252 = vsub.f32 %v1230, %v1246
    %v1253 = vsub.f32 %v1235, %v1249
    %v1254 = vmul.f32 %v1250, 1.442695
    %v1255 = vpow.pop %v1254
    %v1256 = vmul.f32 %v1251, 1.442695
    %v1257 = vpow.pop %v1256
    %v1258 = vmul.f32 %v1252, 1.442695
    %v1259 = vpow.pop %v1258
    %v1260 = vmul.f32 %v1253, 1.442695
    %v1261 = vpow.pop %v1260
    %v1262 = vsel %vm230, %v1255, 0.0
    %1263 = vadd.xlane.f32.xlu0 %v1262
    %v1264 = vpop.xlane.xlu0 %1263
    %v1265 = vsel %vm230, %v1257, 0.0
    %1266 = vadd.xlane.f32.xlu0 %v1265
    %v1267 = vpop.xlane.xlu0 %1266
    %v1268 = vsel %vm230, %v1259, 0.0
    %1269 = vadd.xlane.f32.xlu0 %v1268
    %v1270 = vpop.xlane.xlu0 %1269
    %v1271 = vsel %vm230, %v1261, 0.0
    %1272 = vadd.xlane.f32.xlu0 %v1271
    %v1273 = vpop.xlane.xlu0 %1272
    %v1274 = vrcp.pop %v1264
    %v1275 = vrcp.pop %v1267
    %v1276 = vrcp.pop %v1270
    %v1277 = vrcp.pop %v1273
    %v1278 = vmul.f32 %v1255, %v1274
    %v1279 = vmul.f32 %v1257, %v1275
    %v1280 = vmul.f32 %v1259, %v1276
    %v1281 = vmul.f32 %v1261, %v1277
    %1282 = vrot.lane.b32.xlu0 %v348, 48
    %v1283 = vpop.permute.xlu0 %1282
    %1284 = vrot.lane.b32.xlu0 %v351, 48
    %v1285 = vpop.permute.xlu0 %1284
    %1286 = vrot.lane.b32.xlu0 %v356, 48
    %v1287 = vpop.permute.xlu0 %1286
    %1288 = vrot.lane.b32.xlu0 %v359, 48
    %v1289 = vpop.permute.xlu0 %1288
    %v1295 = vsel %vm230, %v1278, 0
    %v1298 = vsel %vm230, %v1279, 0
    %v1301 = vsel %vm230, %v1280, 0
    %v1304 = vsel %vm230, %v1281, 0
    %1306 = vmatprep.subr.mxu0 0.0
    %1307 = vmatpush1.msra.mxu0 0.0
    %1308 = vmatprep.subr.mxu0 0.0
    %1309 = vmatpush1.msra.mxu0 0.0
    %1310 = vmatprep.subr.mxu0 0.0
    %1311 = vmatpush1.msra.mxu0 0.0
    %1312 = vmatprep.subr.mxu0 0.0
    %1313 = vmatpush1.msra.mxu0 0.0
    %1314 = vmatprep.subr.mxu0 0.0
    %1315 = vmatpush1.msra.mxu0 0.0
    %1316 = vmatprep.subr.mxu0 0.0
    %1317 = vmatpush1.msra.mxu0 0.0
    %1318 = vmatprep.subr.mxu0 0.0
    %1319 = vmatpush1.msra.mxu0 0.0
    %1320 = vmatprep.subr.mxu0 0.0
    %1321 = vmatpush1.msra.mxu0 0.0
    %1322 = vmatprep.subr.mxu0 0.0
    %1323 = vmatpush1.msra.mxu0 0.0
    %1324 = vmatprep.subr.mxu0 0.0
    %1325 = vmatpush1.msra.mxu0 0.0
    %1326 = vmatprep.subr.mxu0 0.0
    %1327 = vmatpush1.msra.mxu0 0.0
    %1328 = vmatprep.subr.mxu0 0.0
    %1329 = vmatpush1.msra.mxu0 0.0
    %1330 = vmatprep.subr.mxu0 0.0
    %1331 = vmatpush1.msra.mxu0 %v1289
    %1332 = vmatprep.subr.mxu0 0.0
    %1333 = vmatpush1.msra.mxu0 %v1287
    %1334 = vmatprep.subr.mxu0 0.0
    %1335 = vmatpush1.msra.mxu0 %v1285
    %1336 = vmatprep.subr.mxu0 0.0
    %1337 = vmatpush1.msra.mxu0 %v1283
    %1338 = vmatprep.subr.mxu0 0.0
    %1339 = vmatpush2.msra.mxu0 0.0
    %1340 = vmatprep.subr.mxu0 0.0
    %1341 = vmatpush2.msra.mxu0 0.0
    %1342 = vmatprep.subr.mxu0 0.0
    %1343 = vmatpush2.msra.mxu0 0.0
    %1344 = vmatprep.subr.mxu0 0.0
    %1345 = vmatpush2.msra.mxu0 0.0
    %1346 = vmatprep.subr.mxu0 0.0
    %1347 = vmatpush2.msra.mxu0 0.0
    %1348 = vmatprep.subr.mxu0 0.0
    %1349 = vmatpush2.msra.mxu0 0.0
    %1350 = vmatprep.subr.mxu0 0.0
    %1351 = vmatpush2.msra.mxu0 0.0
    %1352 = vmatprep.subr.mxu0 0.0
    %1353 = vmatpush2.msra.mxu0 0.0
    %1354 = vmatprep.subr.mxu0 0.0
    %1355 = vmatpush2.msra.mxu0 0.0
    %1356 = vmatprep.subr.mxu0 0.0
    %1357 = vmatpush2.msra.mxu0 0.0
    %1358 = vmatprep.subr.mxu0 0.0
    %1359 = vmatpush2.msra.mxu0 0.0
    %1360 = vmatprep.subr.mxu0 0.0
    %1361 = vmatpush2.msra.mxu0 0.0
    %1362 = vmatprep.subr.mxu0 0.0
    %1363 = vmatpush2.msra.mxu0 0.0
    %1364 = vmatprep.subr.mxu0 0.0
    %1365 = vmatpush2.msra.mxu0 0.0
    %1366 = vmatprep.subr.mxu0 0.0
    %1367 = vmatpush2.msra.mxu0 0.0
    %1368 = vmatprep.subr.mxu0 0.0
    %1369 = vmatpush2.msra.mxu0 0.0
    %1370 = vmatprep.mubr.f32.mxu0 0.0
    %1371 = vmatmul.mubr.f32.gmra.mxu0 %v1295
    %v1372 = vpop.f32.mrf.mxu0
    %v1373 = vadd.f32 0.0, %v1372
    %v1374 = vpop.f32.mrf.mxu0
    %1375 = vmatprep.mubr.f32.mxu0 0.0
    %1376 = vmatmul.mubr.f32.gmra.mxu0 %v1298
    %v1377 = vpop.f32.mrf.mxu0
    %v1378 = vadd.f32 0.0, %v1377
    %v1379 = vpop.f32.mrf.mxu0
    %1380 = vmatprep.mubr.f32.mxu0 0.0
    %1381 = vmatmul.mubr.f32.gmra.mxu0 %v1301
    %v1382 = vpop.f32.mrf.mxu0
    %v1383 = vadd.f32 0.0, %v1382
    %v1384 = vpop.f32.mrf.mxu0
    %1385 = vmatprep.mubr.f32.mxu0 0.0
    %1386 = vmatmul.mubr.f32.gmra.mxu0 %v1304
    %v1387 = vpop.f32.mrf.mxu0
    %v1388 = vadd.f32 0.0, %v1387
    %v1389 = vpop.f32.mrf.mxu0
    %1390 = vdwg.mxu0
    %v1392 = vsel %vm398, %v1373, 0
    %v1395 = vsel %vm398, %v1378, 0
    %v1398 = vsel %vm398, %v1383, 0
    %v1401 = vsel %vm398, %v1388, 0
    %1403 = vmatprep.subr.mxu0 0.0
    %1404 = vmatpush1.msra.mxu0 0.0
    %1405 = vmatprep.subr.mxu0 0.0
    %1406 = vmatpush1.msra.mxu0 0.0
    %1407 = vmatprep.subr.mxu0 0.0
    %1408 = vmatpush1.msra.mxu0 0.0
    %1409 = vmatprep.subr.mxu0 0.0
    %1410 = vmatpush1.msra.mxu0 0.0
    %1411 = vmatprep.subr.mxu0 0.0
    %1412 = vmatpush1.msra.mxu0 0.0
    %1413 = vmatprep.subr.mxu0 0.0
    %1414 = vmatpush1.msra.mxu0 0.0
    %1415 = vmatprep.subr.mxu0 0.0
    %1416 = vmatpush1.msra.mxu0 0.0
    %1417 = vmatprep.subr.mxu0 0.0
    %1418 = vmatpush1.msra.mxu0 0.0
    %1419 = vmatprep.subr.mxu0 0.0
    %1420 = vmatpush1.msra.mxu0 0.0
    %1421 = vmatprep.subr.mxu0 0.0
    %1422 = vmatpush1.msra.mxu0 0.0
    %1423 = vmatprep.subr.mxu0 0.0
    %1424 = vmatpush1.msra.mxu0 0.0
    %1425 = vmatprep.subr.mxu0 0.0
    %1426 = vmatpush1.msra.mxu0 0.0
    %1427 = vmatprep.subr.mxu0 0.0
    %1428 = vmatpush1.msra.mxu0 0.0
    %1429 = vmatprep.subr.mxu0 0.0
    %1430 = vmatpush1.msra.mxu0 0.0
    %1431 = vmatprep.subr.mxu0 0.0
    %1432 = vmatpush1.msra.mxu0 0.0
    %1433 = vmatprep.subr.mxu0 0.0
    %1434 = vmatpush1.msra.mxu0 %v364
    %1435 = vmatprep.subr.mxu0 0.0
    %1436 = vmatpush2.msra.mxu0 0.0
    %1437 = vmatprep.subr.mxu0 0.0
    %1438 = vmatpush2.msra.mxu0 0.0
    %1439 = vmatprep.subr.mxu0 0.0
    %1440 = vmatpush2.msra.mxu0 0.0
    %1441 = vmatprep.subr.mxu0 0.0
    %1442 = vmatpush2.msra.mxu0 0.0
    %1443 = vmatprep.subr.mxu0 0.0
    %1444 = vmatpush2.msra.mxu0 0.0
    %1445 = vmatprep.subr.mxu0 0.0
    %1446 = vmatpush2.msra.mxu0 0.0
    %1447 = vmatprep.subr.mxu0 0.0
    %1448 = vmatpush2.msra.mxu0 0.0
    %1449 = vmatprep.subr.mxu0 0.0
    %1450 = vmatpush2.msra.mxu0 0.0
    %1451 = vmatprep.subr.mxu0 0.0
    %1452 = vmatpush2.msra.mxu0 0.0
    %1453 = vmatprep.subr.mxu0 0.0
    %1454 = vmatpush2.msra.mxu0 0.0
    %1455 = vmatprep.subr.mxu0 0.0
    %1456 = vmatpush2.msra.mxu0 0.0
    %1457 = vmatprep.subr.mxu0 0.0
    %1458 = vmatpush2.msra.mxu0 0.0
    %1459 = vmatprep.subr.mxu0 0.0
    %1460 = vmatpush2.msra.mxu0 0.0
    %1461 = vmatprep.subr.mxu0 0.0
    %1462 = vmatpush2.msra.mxu0 0.0
    %1463 = vmatprep.subr.mxu0 0.0
    %1464 = vmatpush2.msra.mxu0 0.0
    %1465 = vmatprep.subr.mxu0 0.0
    %1466 = vmatpush2.msra.mxu0 0.0
    %1467 = vmatprep.mubr.f32.mxu0 0.0
    %1468 = vmatmul.mubr.f32.gmra.mxu0 %v1392
    %v1469 = vpop.f32.mrf.mxu0
    %v1470 = vadd.f32 0.0, %v1469
    %v1471 = vpop.f32.mrf.mxu0
    %1472 = vmatprep.mubr.f32.mxu0 0.0
    %1473 = vmatmul.mubr.f32.gmra.mxu0 %v1395
    %v1474 = vpop.f32.mrf.mxu0
    %v1475 = vadd.f32 0.0, %v1474
    %v1476 = vpop.f32.mrf.mxu0
    %1477 = vmatprep.mubr.f32.mxu0 0.0
    %1478 = vmatmul.mubr.f32.gmra.mxu0 %v1398
    %v1479 = vpop.f32.mrf.mxu0
    %v1480 = vadd.f32 0.0, %v1479
    %v1481 = vpop.f32.mrf.mxu0
    %1482 = vmatprep.mubr.f32.mxu0 0.0
    %1483 = vmatmul.mubr.f32.gmra.mxu0 %v1401
    %v1484 = vpop.f32.mrf.mxu0
    %v1485 = vadd.f32 0.0, %v1484
    %v1486 = vpop.f32.mrf.mxu0
    %1487 = vdwg.mxu0
    %v1488 = vadd.f32 %v1103, %v1470
    %v1489 = vadd.f32 %v1108, %v1475
    %v1490 = vadd.f32 %v1113, %v1480
    %v1491 = vadd.f32 %v1118, %v1485
    %1492 = vrot.lane.b32.xlu0 %v366, 104
    %v1493 = vpop.permute.xlu0 %1492
    %1494 = vrot.lane.b32.xlu0 %v367, 104
    %v1495 = vpop.permute.xlu0 %1494
    %1496 = vrot.lane.b32.xlu0 %v368, 104
    %v1497 = vpop.permute.xlu0 %1496
    %1498 = vrot.lane.b32.xlu0 %v369, 104
    %v1499 = vpop.permute.xlu0 %1498
    %1500 = vrot.lane.b32.xlu0 %v348, 72
    %v1501 = vpop.permute.xlu0 %1500
    %1502 = vrot.lane.b32.xlu0 %v351, 72
    %v1503 = vpop.permute.xlu0 %1502
    %1504 = vrot.lane.b32.xlu0 %v356, 72
    %v1505 = vpop.permute.xlu0 %1504
    %1506 = vrot.lane.b32.xlu0 %v359, 72
    %v1507 = vpop.permute.xlu0 %1506
    %v1508 = vsel %vm398, %v1493, 0
    %v1510 = vsel %vm398, %v1495, 0
    %v1512 = vsel %vm398, %v1497, 0
    %v1514 = vsel %vm398, %v1499, 0
    %v1516 = vsel %vm398, %v1501, 0
    %v1518 = vsel %vm398, %v1503, 0
    %v1520 = vsel %vm398, %v1505, 0
    %v1522 = vsel %vm398, %v1507, 0
    %1524 = vmatprep.subr.mxu0 0.0
    %1525 = vmatpush1.xpose.msra.mxu0 0.0
    %1526 = vmatprep.subr.mxu0 0.0
    %1527 = vmatpush1.xpose.msra.mxu0 0.0
    %1528 = vmatprep.subr.mxu0 0.0
    %1529 = vmatpush1.xpose.msra.mxu0 0.0
    %1530 = vmatprep.subr.mxu0 0.0
    %1531 = vmatpush1.xpose.msra.mxu0 0.0
    %1532 = vmatprep.subr.mxu0 0.0
    %1533 = vmatpush1.xpose.msra.mxu0 0.0
    %1534 = vmatprep.subr.mxu0 0.0
    %1535 = vmatpush1.xpose.msra.mxu0 0.0
    %1536 = vmatprep.subr.mxu0 0.0
    %1537 = vmatpush1.xpose.msra.mxu0 0.0
    %1538 = vmatprep.subr.mxu0 0.0
    %1539 = vmatpush1.xpose.msra.mxu0 0.0
    %1540 = vmatprep.subr.mxu0 0.0
    %1541 = vmatpush1.xpose.msra.mxu0 0.0
    %1542 = vmatprep.subr.mxu0 0.0
    %1543 = vmatpush1.xpose.msra.mxu0 0.0
    %1544 = vmatprep.subr.mxu0 0.0
    %1545 = vmatpush1.xpose.msra.mxu0 0.0
    %1546 = vmatprep.subr.mxu0 0.0
    %1547 = vmatpush1.xpose.msra.mxu0 0.0
    %1548 = vmatprep.subr.mxu0 0.0
    %1549 = vmatpush1.xpose.msra.mxu0 %v1522
    %1550 = vmatprep.subr.mxu0 0.0
    %1551 = vmatpush1.xpose.msra.mxu0 %v1520
    %1552 = vmatprep.subr.mxu0 0.0
    %1553 = vmatpush1.xpose.msra.mxu0 %v1518
    %1554 = vmatprep.subr.mxu0 0.0
    %1555 = vmatpush1.xpose.msra.mxu0 %v1516
    %1556 = vmatprep.subr.mxu0 0.0
    %1557 = vmatpush2.xpose.msra.mxu0 0.0
    %1558 = vmatprep.subr.mxu0 0.0
    %1559 = vmatpush2.xpose.msra.mxu0 0.0
    %1560 = vmatprep.subr.mxu0 0.0
    %1561 = vmatpush2.xpose.msra.mxu0 0.0
    %1562 = vmatprep.subr.mxu0 0.0
    %1563 = vmatpush2.xpose.msra.mxu0 0.0
    %1564 = vmatprep.subr.mxu0 0.0
    %1565 = vmatpush2.xpose.msra.mxu0 0.0
    %1566 = vmatprep.subr.mxu0 0.0
    %1567 = vmatpush2.xpose.msra.mxu0 0.0
    %1568 = vmatprep.subr.mxu0 0.0
    %1569 = vmatpush2.xpose.msra.mxu0 0.0
    %1570 = vmatprep.subr.mxu0 0.0
    %1571 = vmatpush2.xpose.msra.mxu0 0.0
    %1572 = vmatprep.subr.mxu0 0.0
    %1573 = vmatpush2.xpose.msra.mxu0 0.0
    %1574 = vmatprep.subr.mxu0 0.0
    %1575 = vmatpush2.xpose.msra.mxu0 0.0
    %1576 = vmatprep.subr.mxu0 0.0
    %1577 = vmatpush2.xpose.msra.mxu0 0.0
    %1578 = vmatprep.subr.mxu0 0.0
    %1579 = vmatpush2.xpose.msra.mxu0 0.0
    %1580 = vmatprep.subr.mxu0 0.0
    %1581 = vmatpush2.xpose.msra.mxu0 0.0
    %1582 = vmatprep.subr.mxu0 0.0
    %1583 = vmatpush2.xpose.msra.mxu0 0.0
    %1584 = vmatprep.subr.mxu0 0.0
    %1585 = vmatpush2.xpose.msra.mxu0 0.0
    %1586 = vmatprep.subr.mxu0 0.0
    %1587 = vmatpush2.xpose.msra.mxu0 0.0
    %1588 = vmatprep.mubr.f32.mxu0 0.0
    %1589 = vmatmul.mubr.f32.gmra.mxu0 %v1508
    %v1590 = vpop.f32.mrf.mxu0
    %v1591 = vadd.f32 %v387, %v1590
    %v1592 = vpop.f32.mrf.mxu0
    %1593 = vmatprep.mubr.f32.mxu0 0.0
    %1594 = vmatmul.mubr.f32.gmra.mxu0 %v1510
    %v1595 = vpop.f32.mrf.mxu0
    %v1596 = vadd.f32 %v389, %v1595
    %v1597 = vpop.f32.mrf.mxu0
    %1598 = vmatprep.mubr.f32.mxu0 0.0
    %1599 = vmatmul.mubr.f32.gmra.mxu0 %v1512
    %v1600 = vpop.f32.mrf.mxu0
    %v1601 = vadd.f32 %v391, %v1600
    %v1602 = vpop.f32.mrf.mxu0
    %1603 = vmatprep.mubr.f32.mxu0 0.0
    %1604 = vmatmul.mubr.f32.gmra.mxu0 %v1514
    %v1605 = vpop.f32.mrf.mxu0
    %v1606 = vadd.f32 %v393, %v1605
    %v1607 = vpop.f32.mrf.mxu0
    %1608 = vdwg.mxu0
    %v1609 = vsel %vm230, %v1591, -inf
    %1610 = vmax.xlane.f32.xlu0 %v1609
    %v1611 = vpop.xlane.xlu0 %1610
    %v1612 = vsel %vm230, %v1596, -inf
    %1613 = vmax.xlane.f32.xlu0 %v1612
    %v1614 = vpop.xlane.xlu0 %1613
    %v1615 = vsel %vm230, %v1601, -inf
    %1616 = vmax.xlane.f32.xlu0 %v1615
    %v1617 = vpop.xlane.xlu0 %1616
    %v1618 = vsel %vm230, %v1606, -inf
    %1619 = vmax.xlane.f32.xlu0 %v1618
    %v1620 = vpop.xlane.xlu0 %1619
    %v1621 = vsub.f32 %v1591, %v1611
    %v1622 = vsub.f32 %v1596, %v1614
    %v1623 = vsub.f32 %v1601, %v1617
    %v1624 = vsub.f32 %v1606, %v1620
    %v1625 = vmul.f32 %v1621, 1.442695
    %v1626 = vpow.pop %v1625
    %v1627 = vmul.f32 %v1622, 1.442695
    %v1628 = vpow.pop %v1627
    %v1629 = vmul.f32 %v1623, 1.442695
    %v1630 = vpow.pop %v1629
    %v1631 = vmul.f32 %v1624, 1.442695
    %v1632 = vpow.pop %v1631
    %v1633 = vsel %vm230, %v1626, 0.0
    %1634 = vadd.xlane.f32.xlu0 %v1633
    %v1635 = vpop.xlane.xlu0 %1634
    %v1636 = vsel %vm230, %v1628, 0.0
    %1637 = vadd.xlane.f32.xlu0 %v1636
    %v1638 = vpop.xlane.xlu0 %1637
    %v1639 = vsel %vm230, %v1630, 0.0
    %1640 = vadd.xlane.f32.xlu0 %v1639
    %v1641 = vpop.xlane.xlu0 %1640
    %v1642 = vsel %vm230, %v1632, 0.0
    %1643 = vadd.xlane.f32.xlu0 %v1642
    %v1644 = vpop.xlane.xlu0 %1643
    %v1645 = vrcp.pop %v1635
    %v1646 = vrcp.pop %v1638
    %v1647 = vrcp.pop %v1641
    %v1648 = vrcp.pop %v1644
    %v1649 = vmul.f32 %v1626, %v1645
    %v1650 = vmul.f32 %v1628, %v1646
    %v1651 = vmul.f32 %v1630, %v1647
    %v1652 = vmul.f32 %v1632, %v1648
    %1653 = vrot.lane.b32.xlu0 %v348, 40
    %v1654 = vpop.permute.xlu0 %1653
    %1655 = vrot.lane.b32.xlu0 %v351, 40
    %v1656 = vpop.permute.xlu0 %1655
    %1657 = vrot.lane.b32.xlu0 %v356, 40
    %v1658 = vpop.permute.xlu0 %1657
    %1659 = vrot.lane.b32.xlu0 %v359, 40
    %v1660 = vpop.permute.xlu0 %1659
    %v1666 = vsel %vm230, %v1649, 0
    %v1669 = vsel %vm230, %v1650, 0
    %v1672 = vsel %vm230, %v1651, 0
    %v1675 = vsel %vm230, %v1652, 0
    %1677 = vmatprep.subr.mxu0 0.0
    %1678 = vmatpush1.msra.mxu0 0.0
    %1679 = vmatprep.subr.mxu0 0.0
    %1680 = vmatpush1.msra.mxu0 0.0
    %1681 = vmatprep.subr.mxu0 0.0
    %1682 = vmatpush1.msra.mxu0 0.0
    %1683 = vmatprep.subr.mxu0 0.0
    %1684 = vmatpush1.msra.mxu0 0.0
    %1685 = vmatprep.subr.mxu0 0.0
    %1686 = vmatpush1.msra.mxu0 0.0
    %1687 = vmatprep.subr.mxu0 0.0
    %1688 = vmatpush1.msra.mxu0 0.0
    %1689 = vmatprep.subr.mxu0 0.0
    %1690 = vmatpush1.msra.mxu0 0.0
    %1691 = vmatprep.subr.mxu0 0.0
    %1692 = vmatpush1.msra.mxu0 0.0
    %1693 = vmatprep.subr.mxu0 0.0
    %1694 = vmatpush1.msra.mxu0 0.0
    %1695 = vmatprep.subr.mxu0 0.0
    %1696 = vmatpush1.msra.mxu0 0.0
    %1697 = vmatprep.subr.mxu0 0.0
    %1698 = vmatpush1.msra.mxu0 0.0
    %1699 = vmatprep.subr.mxu0 0.0
    %1700 = vmatpush1.msra.mxu0 0.0
    %1701 = vmatprep.subr.mxu0 0.0
    %1702 = vmatpush1.msra.mxu0 %v1660
    %1703 = vmatprep.subr.mxu0 0.0
    %1704 = vmatpush1.msra.mxu0 %v1658
    %1705 = vmatprep.subr.mxu0 0.0
    %1706 = vmatpush1.msra.mxu0 %v1656
    %1707 = vmatprep.subr.mxu0 0.0
    %1708 = vmatpush1.msra.mxu0 %v1654
    %1709 = vmatprep.subr.mxu0 0.0
    %1710 = vmatpush2.msra.mxu0 0.0
    %1711 = vmatprep.subr.mxu0 0.0
    %1712 = vmatpush2.msra.mxu0 0.0
    %1713 = vmatprep.subr.mxu0 0.0
    %1714 = vmatpush2.msra.mxu0 0.0
    %1715 = vmatprep.subr.mxu0 0.0
    %1716 = vmatpush2.msra.mxu0 0.0
    %1717 = vmatprep.subr.mxu0 0.0
    %1718 = vmatpush2.msra.mxu0 0.0
    %1719 = vmatprep.subr.mxu0 0.0
    %1720 = vmatpush2.msra.mxu0 0.0
    %1721 = vmatprep.subr.mxu0 0.0
    %1722 = vmatpush2.msra.mxu0 0.0
    %1723 = vmatprep.subr.mxu0 0.0
    %1724 = vmatpush2.msra.mxu0 0.0
    %1725 = vmatprep.subr.mxu0 0.0
    %1726 = vmatpush2.msra.mxu0 0.0
    %1727 = vmatprep.subr.mxu0 0.0
    %1728 = vmatpush2.msra.mxu0 0.0
    %1729 = vmatprep.subr.mxu0 0.0
    %1730 = vmatpush2.msra.mxu0 0.0
    %1731 = vmatprep.subr.mxu0 0.0
    %1732 = vmatpush2.msra.mxu0 0.0
    %1733 = vmatprep.subr.mxu0 0.0
    %1734 = vmatpush2.msra.mxu0 0.0
    %1735 = vmatprep.subr.mxu0 0.0
    %1736 = vmatpush2.msra.mxu0 0.0
    %1737 = vmatprep.subr.mxu0 0.0
    %1738 = vmatpush2.msra.mxu0 0.0
    %1739 = vmatprep.subr.mxu0 0.0
    %1740 = vmatpush2.msra.mxu0 0.0
    %1741 = vmatprep.mubr.f32.mxu0 0.0
    %1742 = vmatmul.mubr.f32.gmra.mxu0 %v1666
    %v1743 = vpop.f32.mrf.mxu0
    %v1744 = vadd.f32 0.0, %v1743
    %v1745 = vpop.f32.mrf.mxu0
    %1746 = vmatprep.mubr.f32.mxu0 0.0
    %1747 = vmatmul.mubr.f32.gmra.mxu0 %v1669
    %v1748 = vpop.f32.mrf.mxu0
    %v1749 = vadd.f32 0.0, %v1748
    %v1750 = vpop.f32.mrf.mxu0
    %1751 = vmatprep.mubr.f32.mxu0 0.0
    %1752 = vmatmul.mubr.f32.gmra.mxu0 %v1672
    %v1753 = vpop.f32.mrf.mxu0
    %v1754 = vadd.f32 0.0, %v1753
    %v1755 = vpop.f32.mrf.mxu0
    %1756 = vmatprep.mubr.f32.mxu0 0.0
    %1757 = vmatmul.mubr.f32.gmra.mxu0 %v1675
    %v1758 = vpop.f32.mrf.mxu0
    %v1759 = vadd.f32 0.0, %v1758
    %v1760 = vpop.f32.mrf.mxu0
    %1761 = vdwg.mxu0
    %v1763 = vsel %vm398, %v1744, 0
    %v1766 = vsel %vm398, %v1749, 0
    %v1769 = vsel %vm398, %v1754, 0
    %v1772 = vsel %vm398, %v1759, 0
    %1774 = vmatprep.subr.mxu0 0.0
    %1775 = vmatpush1.msra.mxu0 0.0
    %1776 = vmatprep.subr.mxu0 0.0
    %1777 = vmatpush1.msra.mxu0 0.0
    %1778 = vmatprep.subr.mxu0 0.0
    %1779 = vmatpush1.msra.mxu0 0.0
    %1780 = vmatprep.subr.mxu0 0.0
    %1781 = vmatpush1.msra.mxu0 0.0
    %1782 = vmatprep.subr.mxu0 0.0
    %1783 = vmatpush1.msra.mxu0 0.0
    %1784 = vmatprep.subr.mxu0 0.0
    %1785 = vmatpush1.msra.mxu0 0.0
    %1786 = vmatprep.subr.mxu0 0.0
    %1787 = vmatpush1.msra.mxu0 0.0
    %1788 = vmatprep.subr.mxu0 0.0
    %1789 = vmatpush1.msra.mxu0 0.0
    %1790 = vmatprep.subr.mxu0 0.0
    %1791 = vmatpush1.msra.mxu0 0.0
    %1792 = vmatprep.subr.mxu0 0.0
    %1793 = vmatpush1.msra.mxu0 0.0
    %1794 = vmatprep.subr.mxu0 0.0
    %1795 = vmatpush1.msra.mxu0 0.0
    %1796 = vmatprep.subr.mxu0 0.0
    %1797 = vmatpush1.msra.mxu0 0.0
    %1798 = vmatprep.subr.mxu0 0.0
    %1799 = vmatpush1.msra.mxu0 0.0
    %1800 = vmatprep.subr.mxu0 0.0
    %1801 = vmatpush1.msra.mxu0 0.0
    %1802 = vmatprep.subr.mxu0 0.0
    %1803 = vmatpush1.msra.mxu0 0.0
    %1804 = vmatprep.subr.mxu0 0.0
    %1805 = vmatpush1.msra.mxu0 %v365
    %1806 = vmatprep.subr.mxu0 0.0
    %1807 = vmatpush2.msra.mxu0 0.0
    %1808 = vmatprep.subr.mxu0 0.0
    %1809 = vmatpush2.msra.mxu0 0.0
    %1810 = vmatprep.subr.mxu0 0.0
    %1811 = vmatpush2.msra.mxu0 0.0
    %1812 = vmatprep.subr.mxu0 0.0
    %1813 = vmatpush2.msra.mxu0 0.0
    %1814 = vmatprep.subr.mxu0 0.0
    %1815 = vmatpush2.msra.mxu0 0.0
    %1816 = vmatprep.subr.mxu0 0.0
    %1817 = vmatpush2.msra.mxu0 0.0
    %1818 = vmatprep.subr.mxu0 0.0
    %1819 = vmatpush2.msra.mxu0 0.0
    %1820 = vmatprep.subr.mxu0 0.0
    %1821 = vmatpush2.msra.mxu0 0.0
    %1822 = vmatprep.subr.mxu0 0.0
    %1823 = vmatpush2.msra.mxu0 0.0
    %1824 = vmatprep.subr.mxu0 0.0
    %1825 = vmatpush2.msra.mxu0 0.0
    %1826 = vmatprep.subr.mxu0 0.0
    %1827 = vmatpush2.msra.mxu0 0.0
    %1828 = vmatprep.subr.mxu0 0.0
    %1829 = vmatpush2.msra.mxu0 0.0
    %1830 = vmatprep.subr.mxu0 0.0
    %1831 = vmatpush2.msra.mxu0 0.0
    %1832 = vmatprep.subr.mxu0 0.0
    %1833 = vmatpush2.msra.mxu0 0.0
    %1834 = vmatprep.subr.mxu0 0.0
    %1835 = vmatpush2.msra.mxu0 0.0
    %1836 = vmatprep.subr.mxu0 0.0
    %1837 = vmatpush2.msra.mxu0 0.0
    %1838 = vmatprep.mubr.f32.mxu0 0.0
    %1839 = vmatmul.mubr.f32.gmra.mxu0 %v1763
    %v1840 = vpop.f32.mrf.mxu0
    %v1841 = vadd.f32 0.0, %v1840
    %v1842 = vpop.f32.mrf.mxu0
    %1843 = vmatprep.mubr.f32.mxu0 0.0
    %1844 = vmatmul.mubr.f32.gmra.mxu0 %v1766
    %v1845 = vpop.f32.mrf.mxu0
    %v1846 = vadd.f32 0.0, %v1845
    %v1847 = vpop.f32.mrf.mxu0
    %1848 = vmatprep.mubr.f32.mxu0 0.0
    %1849 = vmatmul.mubr.f32.gmra.mxu0 %v1769
    %v1850 = vpop.f32.mrf.mxu0
    %v1851 = vadd.f32 0.0, %v1850
    %v1852 = vpop.f32.mrf.mxu0
    %1853 = vmatprep.mubr.f32.mxu0 0.0
    %1854 = vmatmul.mubr.f32.gmra.mxu0 %v1772
    %v1855 = vpop.f32.mrf.mxu0
    %v1856 = vadd.f32 0.0, %v1855
    %v1857 = vpop.f32.mrf.mxu0
    %1858 = vdwg.mxu0
    %v1859 = vadd.f32 %v1488, %v1841
    %v1860 = vadd.f32 %v1489, %v1846
    %v1861 = vadd.f32 %v1490, %v1851
    %v1862 = vadd.f32 %v1491, %v1856
    %v1863 = vadd.f32 %v216, %v1859
    %v1864 = vadd.f32 %v219, %v1860
    %v1865 = vadd.f32 %v224, %v1861
    %v1866 = vadd.f32 %v227, %v1862
    %v1867 = vld [vmem:[%s1 + $0x21] sm:$0x1]
    %v1868 = vlaneseq
    %v1869 = vshrl.u32 %v1868, 7
    %v1870 = vsub.s32 0, %v1869
    %v1871 = vrot.slane %v1867, %v1870
    %v1872 = vadd.f32 %v1863, %v1871
    %v1873 = vadd.f32 %v1864, %v1871
    %v1874 = vadd.f32 %v1865, %v1871
    %v1875 = vadd.f32 %v1866, %v1871
    %v1876 = vsel %vm230, %v1872, 0.0
    %1877 = vadd.xlane.f32.xlu0 %v1876
    %v1878 = vpop.xlane.xlu0 %1877
    %v1879 = vsel %vm230, %v1873, 0.0
    %1880 = vadd.xlane.f32.xlu0 %v1879
    %v1881 = vpop.xlane.xlu0 %1880
    %v1882 = vsel %vm230, %v1874, 0.0
    %1883 = vadd.xlane.f32.xlu0 %v1882
    %v1884 = vpop.xlane.xlu0 %1883
    %v1885 = vsel %vm230, %v1875, 0.0
    %1886 = vadd.xlane.f32.xlu0 %v1885
    %v1887 = vpop.xlane.xlu0 %1886
    %v1888 = vmul.f32 %v1878, %v243
    %v1889 = vmul.f32 %v1881, %v243
    %v1890 = vmul.f32 %v1884, %v243
    %v1891 = vmul.f32 %v1887, %v243
    %v1892 = vsub.f32 %v1872, %v1888
    %v1893 = vsub.f32 %v1873, %v1889
    %v1894 = vsub.f32 %v1874, %v1890
    %v1895 = vsub.f32 %v1875, %v1891
    %v1896 = vmul.f32 %v1892, %v1892
    %v1897 = vmul.f32 %v1893, %v1893
    %v1898 = vmul.f32 %v1894, %v1894
    %v1899 = vmul.f32 %v1895, %v1895
    %v1900 = vsel %vm230, %v1896, 0.0
    %1901 = vadd.xlane.f32.xlu0 %v1900
    %v1902 = vpop.xlane.xlu0 %1901
    %v1903 = vsel %vm230, %v1897, 0.0
    %1904 = vadd.xlane.f32.xlu0 %v1903
    %v1905 = vpop.xlane.xlu0 %1904
    %v1906 = vsel %vm230, %v1898, 0.0
    %1907 = vadd.xlane.f32.xlu0 %v1906
    %v1908 = vpop.xlane.xlu0 %1907
    %v1909 = vsel %vm230, %v1899, 0.0
    %1910 = vadd.xlane.f32.xlu0 %v1909
    %v1911 = vpop.xlane.xlu0 %1910
    %v1912 = vmul.f32 %v1902, %v243
    %v1913 = vmul.f32 %v1905, %v243
    %v1914 = vmul.f32 %v1908, %v243
    %v1915 = vmul.f32 %v1911, %v243
    %v1916 = vadd.f32 %v1912, 1e-05
    %v1917 = vadd.f32 %v1913, 1e-05
    %v1918 = vadd.f32 %v1914, 1e-05
    %v1919 = vadd.f32 %v1915, 1e-05
    %v1920 = vrsqrt.pop %v1916
    %v1921 = vrsqrt.pop %v1917
    %v1922 = vrsqrt.pop %v1918
    %v1923 = vrsqrt.pop %v1919
    %v1924 = vmul.f32 %v1892, %v1920
    %v1925 = vmul.f32 %v1893, %v1921
    %v1926 = vmul.f32 %v1894, %v1922
    %v1927 = vmul.f32 %v1895, %v1923
    %v1928 = vpack.c.bf16 %v1925, %v1924
    %v1929 = vpack.c.bf16 %v1927, %v1926
    %v1930 = vld [vmem:[%s5] sm:$0xf]
    %v1931 = vld [vmem:[%s5 + $0x4] sm:$0xf]
    %v1932 = vld [vmem:[%s5 + $0x8] sm:$0xf]
    %v1933 = vld [vmem:[%s5 + $0xc] sm:$0xf]
    %v1934 = vld [vmem:[%s1 + $0x22] sm:$0x1]
    %v1935 = vlaneseq
    %v1936 = vshrl.u32 %v1935, 7
    %v1937 = vsub.s32 0, %v1936
    %v1938 = vrot.slane %v1934, %v1937
    %v1943 = vunpack.c.l.b16 %v1930
    %v1944 = vunpack.c.l.b16 %v1931
    %v1945 = vunpack.c.l.b16 %v1932
    %v1946 = vunpack.c.l.b16 %v1933
    %v1947 = vpack.c.b16 %v1944, %v1943
    %v1948 = vpack.c.b16 %v1946, %v1945
    %v1952 = vsel %vm230, %v1928, 0
    %v1955 = vsel %vm230, %v1929, 0
    %1957 = vmatprep.subr.bf16.mxu0 0
    %1958 = vmatpush1.bf16.msra.mxu0 0
    %1959 = vmatprep.subr.bf16.mxu0 0
    %1960 = vmatpush1.bf16.msra.mxu0 0
    %1961 = vmatprep.subr.bf16.mxu0 0
    %1962 = vmatpush1.bf16.msra.mxu0 0
    %1963 = vmatprep.subr.bf16.mxu0 0
    %1964 = vmatpush1.bf16.msra.mxu0 0
    %1965 = vmatprep.subr.bf16.mxu0 0
    %1966 = vmatpush1.bf16.msra.mxu0 0
    %1967 = vmatprep.subr.bf16.mxu0 0
    %1968 = vmatpush1.bf16.msra.mxu0 0
    %1969 = vmatprep.subr.bf16.mxu0 0
    %1970 = vmatpush1.bf16.msra.mxu0 %v1948
    %1971 = vmatprep.subr.bf16.mxu0 0
    %1972 = vmatpush1.bf16.msra.mxu0 %v1947
    %1973 = vmatprep.subr.bf16.mxu0 0
    %1974 = vmatpush2.bf16.msra.mxu0 0
    %1975 = vmatprep.subr.bf16.mxu0 0
    %1976 = vmatpush2.bf16.msra.mxu0 0
    %1977 = vmatprep.subr.bf16.mxu0 0
    %1978 = vmatpush2.bf16.msra.mxu0 0
    %1979 = vmatprep.subr.bf16.mxu0 0
    %1980 = vmatpush2.bf16.msra.mxu0 0
    %1981 = vmatprep.subr.bf16.mxu0 0
    %1982 = vmatpush2.bf16.msra.mxu0 0
    %1983 = vmatprep.subr.bf16.mxu0 0
    %1984 = vmatpush2.bf16.msra.mxu0 0
    %1985 = vmatprep.subr.bf16.mxu0 0
    %1986 = vmatpush2.bf16.msra.mxu0 0
    %1987 = vmatprep.subr.bf16.mxu0 0
    %1988 = vmatpush2.bf16.msra.mxu0 0
    %1989 = vmatprep.mubr.bf16.mxu0 0
    %1990 = vmatmul.mubr.bf16.gmra.mxu0 %v1952
    %v1991 = vpop.f32.mrf.mxu0
    %v1992 = vadd.f32 %v1938, %v1991
    %v1993 = vpop.f32.mrf.mxu0
    %v1994 = vpop.f32.mrf.mxu0
    %v1995 = vadd.f32 %v1938, %v1994
    %v1996 = vpop.f32.mrf.mxu0
    %1997 = vmatprep.mubr.bf16.mxu0 0
    %1998 = vmatmul.mubr.bf16.gmra.mxu0 %v1955
    %v1999 = vpop.f32.mrf.mxu0
    %v2000 = vadd.f32 %v1938, %v1999
    %v2001 = vpop.f32.mrf.mxu0
    %v2002 = vpop.f32.mrf.mxu0
    %v2003 = vadd.f32 %v1938, %v2002
    %v2004 = vpop.f32.mrf.mxu0
    %2005 = vdwg.mxu0
    %v2006 = vmul.f32 %v1992, 0.5
    %v2007 = vmul.f32 %v1995, 0.5
    %v2008 = vmul.f32 %v2000, 0.5
    %v2009 = vmul.f32 %v2003, 0.5
    %v2010 = vmul.f32 %v1992, 0.044715
    %v2011 = vmul.f32 %v1995, 0.044715
    %v2012 = vmul.f32 %v2000, 0.044715
    %v2013 = vmul.f32 %v2003, 0.044715
    %v2014 = vmul.f32 %v2010, %v1992
    %v2015 = vmul.f32 %v2011, %v1995
    %v2016 = vmul.f32 %v2012, %v2000
    %v2017 = vmul.f32 %v2013, %v2003
    %v2018 = vmul.f32 %v2014, %v1992
    %v2019 = vmul.f32 %v2015, %v1995
    %v2020 = vmul.f32 %v2016, %v2000
    %v2021 = vmul.f32 %v2017, %v2003
    %v2022 = vadd.f32 %v1992, %v2018
    %v2023 = vadd.f32 %v1995, %v2019
    %v2024 = vadd.f32 %v2000, %v2020
    %v2025 = vadd.f32 %v2003, %v2021
    %v2026 = vmul.f32 %v2022, 0.7978846
    %v2027 = vmul.f32 %v2023, 0.7978846
    %v2028 = vmul.f32 %v2024, 0.7978846
    %v2029 = vmul.f32 %v2025, 0.7978846
    %v2030 = vtanh.pop %v2026
    %v2031 = vtanh.pop %v2027
    %v2032 = vtanh.pop %v2028
    %v2033 = vtanh.pop %v2029
    %v2034 = vadd.f32 %v2030, 1.0
    %v2035 = vadd.f32 %v2031, 1.0
    %v2036 = vadd.f32 %v2032, 1.0
    %v2037 = vadd.f32 %v2033, 1.0
    %v2038 = vmul.f32 %v2006, %v2034
    %v2039 = vmul.f32 %v2007, %v2035
    %v2040 = vmul.f32 %v2008, %v2036
    %v2041 = vmul.f32 %v2009, %v2037
    %v2042 = vpack.c.bf16 %v2039, %v2038
    %v2043 = vpack.c.bf16 %v2041, %v2040
    %v2044 = vld [vmem:[%s6] sm:$0xf]
    %v2045 = vld [vmem:[%s6 + $0x4] sm:$0xf]
    %v2046 = vld [vmem:[%s6 + $0x8] sm:$0xf]
    %v2047 = vld [vmem:[%s6 + $0xc] sm:$0xf]
    %v2048 = vld [vmem:[%s6 + $0x10] sm:$0xf]
    %v2049 = vld [vmem:[%s6 + $0x14] sm:$0xf]
    %v2050 = vld [vmem:[%s6 + $0x18] sm:$0xf]
    %v2051 = vld [vmem:[%s6 + $0x1c] sm:$0xf]
    %v2060 = vunpack.c.l.b16 %v2044
    %v2061 = vunpack.c.l.b16 %v2045
    %v2062 = vunpack.c.l.b16 %v2046
    %v2063 = vunpack.c.l.b16 %v2047
    %v2064 = vunpack.c.l.b16 %v2048
    %v2065 = vunpack.c.l.b16 %v2049
    %v2066 = vunpack.c.l.b16 %v2050
    %v2067 = vunpack.c.l.b16 %v2051
    %v2068 = vpack.c.b16 %v2061, %v2060
    %v2069 = vpack.c.b16 %v2063, %v2062
    %v2070 = vpack.c.b16 %v2065, %v2064
    %v2071 = vpack.c.b16 %v2067, %v2066
    %vm2076 = vcmask 523264
    %v2078 = vsel %vm2076, %v2042, 0
    %v2081 = vsel %vm2076, %v2043, 0
    %2083 = vmatprep.subr.bf16.mxu0 0
    %2084 = vmatpush1.bf16.msra.mxu0 0
    %2085 = vmatprep.subr.bf16.mxu0 0
    %2086 = vmatpush1.bf16.msra.mxu0 0
    %2087 = vmatprep.subr.bf16.mxu0 0
    %2088 = vmatpush1.bf16.msra.mxu0 0
    %2089 = vmatprep.subr.bf16.mxu0 0
    %2090 = vmatpush1.bf16.msra.mxu0 0
    %2091 = vmatprep.subr.bf16.mxu0 0
    %2092 = vmatpush1.bf16.msra.mxu0 %v2071
    %2093 = vmatprep.subr.bf16.mxu0 0
    %2094 = vmatpush1.bf16.msra.mxu0 %v2070
    %2095 = vmatprep.subr.bf16.mxu0 0
    %2096 = vmatpush1.bf16.msra.mxu0 %v2069
    %2097 = vmatprep.subr.bf16.mxu0 0
    %2098 = vmatpush1.bf16.msra.mxu0 %v2068
    %2099 = vmatprep.subr.bf16.mxu0 0
    %2100 = vmatpush2.bf16.msra.mxu0 0
    %2101 = vmatprep.subr.bf16.mxu0 0
    %2102 = vmatpush2.bf16.msra.mxu0 0
    %2103 = vmatprep.subr.bf16.mxu0 0
    %2104 = vmatpush2.bf16.msra.mxu0 0
    %2105 = vmatprep.subr.bf16.mxu0 0
    %2106 = vmatpush2.bf16.msra.mxu0 0
    %2107 = vmatprep.subr.bf16.mxu0 0
    %2108 = vmatpush2.bf16.msra.mxu0 0
    %2109 = vmatprep.subr.bf16.mxu0 0
    %2110 = vmatpush2.bf16.msra.mxu0 0
    %2111 = vmatprep.subr.bf16.mxu0 0
    %2112 = vmatpush2.bf16.msra.mxu0 0
    %2113 = vmatprep.subr.bf16.mxu0 0
    %2114 = vmatpush2.bf16.msra.mxu0 0
    %2115 = vmatprep.mubr.bf16.mxu0 0
    %2116 = vmatmul.mubr.bf16.gmra.mxu0 %v2078
    %v2117 = vpop.f32.mrf.mxu0
    %v2118 = vadd.f32 0.0, %v2117
    %v2119 = vpop.f32.mrf.mxu0
    %v2120 = vpop.f32.mrf.mxu0
    %v2121 = vadd.f32 0.0, %v2120
    %v2122 = vpop.f32.mrf.mxu0
    %2123 = vmatprep.mubr.bf16.mxu0 0
    %2124 = vmatmul.mubr.bf16.gmra.mxu0 %v2081
    %v2125 = vpop.f32.mrf.mxu0
    %v2126 = vadd.f32 0.0, %v2125
    %v2127 = vpop.f32.mrf.mxu0
    %v2128 = vpop.f32.mrf.mxu0
    %v2129 = vadd.f32 0.0, %v2128
    %v2130 = vpop.f32.mrf.mxu0
    %2131 = vdwg.mxu0
    %v2132 = vadd.f32 %v1872, %v2118
    %v2133 = vadd.f32 %v1873, %v2121
    %v2134 = vadd.f32 %v1874, %v2126
    %v2135 = vadd.f32 %v1875, %v2129
    %v2136 = vld [vmem:[%s1 + $0x23] sm:$0x1]
    %v2137 = vlaneseq
    %v2138 = vshrl.u32 %v2137, 7
    %v2139 = vsub.s32 0, %v2138
    %v2140 = vrot.slane %v2136, %v2139
    %v2141 = vadd.f32 %v2132, %v2140
    %v2142 = vadd.f32 %v2133, %v2140
    %v2143 = vadd.f32 %v2134, %v2140
    %v2144 = vadd.f32 %v2135, %v2140
    %v2145 = vsel %vm230, %v2141, 0.0
    %2146 = vadd.xlane.f32.xlu0 %v2145
    %v2147 = vpop.xlane.xlu0 %2146
    %v2148 = vsel %vm230, %v2142, 0.0
    %2149 = vadd.xlane.f32.xlu0 %v2148
    %v2150 = vpop.xlane.xlu0 %2149
    %v2151 = vsel %vm230, %v2143, 0.0
    %2152 = vadd.xlane.f32.xlu0 %v2151
    %v2153 = vpop.xlane.xlu0 %2152
    %v2154 = vsel %vm230, %v2144, 0.0
    %2155 = vadd.xlane.f32.xlu0 %v2154
    %v2156 = vpop.xlane.xlu0 %2155
    %v2157 = vmul.f32 %v2147, %v243
    %v2158 = vmul.f32 %v2150, %v243
    %v2159 = vmul.f32 %v2153, %v243
    %v2160 = vmul.f32 %v2156, %v243
    %v2161 = vsub.f32 %v2141, %v2157
    %v2162 = vsub.f32 %v2142, %v2158
    %v2163 = vsub.f32 %v2143, %v2159
    %v2164 = vsub.f32 %v2144, %v2160
    %v2165 = vmul.f32 %v2161, %v2161
    %v2166 = vmul.f32 %v2162, %v2162
    %v2167 = vmul.f32 %v2163, %v2163
    %v2168 = vmul.f32 %v2164, %v2164
    %v2169 = vsel %vm230, %v2165, 0.0
    %2170 = vadd.xlane.f32.xlu0 %v2169
    %v2171 = vpop.xlane.xlu0 %2170
    %v2172 = vsel %vm230, %v2166, 0.0
    %2173 = vadd.xlane.f32.xlu0 %v2172
    %v2174 = vpop.xlane.xlu0 %2173
    %v2175 = vsel %vm230, %v2167, 0.0
    %2176 = vadd.xlane.f32.xlu0 %v2175
    %v2177 = vpop.xlane.xlu0 %2176
    %v2178 = vsel %vm230, %v2168, 0.0
    %2179 = vadd.xlane.f32.xlu0 %v2178
    %v2180 = vpop.xlane.xlu0 %2179
    %v2181 = vmul.f32 %v2171, %v243
    %v2182 = vmul.f32 %v2174, %v243
    %v2183 = vmul.f32 %v2177, %v243
    %v2184 = vmul.f32 %v2180, %v243
    %v2185 = vadd.f32 %v2181, 1e-05
    %v2186 = vadd.f32 %v2182, 1e-05
    %v2187 = vadd.f32 %v2183, 1e-05
    %v2188 = vadd.f32 %v2184, 1e-05
    %v2189 = vrsqrt.pop %v2185
    %v2190 = vrsqrt.pop %v2186
    %v2191 = vrsqrt.pop %v2187
    %v2192 = vrsqrt.pop %v2188
    %v2193 = vmul.f32 %v2161, %v2189
    %v2194 = vmul.f32 %v2162, %v2190
    %v2195 = vmul.f32 %v2163, %v2191
    %v2196 = vmul.f32 %v2164, %v2192
    %v2197 = vpack.c.bf16 %v2194, %v2193
    %v2198 = vpack.c.bf16 %v2196, %v2195
    %s2199 = scalar_lea.vmem %s3, 16
    %v2200 = vld [vmem:[%s2199] sm:$0xf]
    %v2201 = vld [vmem:[%s2199 + $0x4] sm:$0xf]
    %v2202 = vld [vmem:[%s2199 + $0x8] sm:$0xf]
    %v2203 = vld [vmem:[%s2199 + $0xc] sm:$0xf]
    %v2204 = vld [vmem:[%s1 + $0x24] sm:$0x1]
    %v2205 = vlaneseq
    %v2206 = vshrl.u32 %v2205, 7
    %v2207 = vsub.s32 0, %v2206
    %v2208 = vrot.slane %v2204, %v2207
    %v2213 = vunpack.c.l.b16 %v2200
    %v2214 = vunpack.c.l.b16 %v2201
    %v2215 = vunpack.c.l.b16 %v2202
    %v2216 = vunpack.c.l.b16 %v2203
    %v2217 = vpack.c.b16 %v2214, %v2213
    %v2218 = vpack.c.b16 %v2216, %v2215
    %v2222 = vsel %vm230, %v2197, 0
    %v2225 = vsel %vm230, %v2198, 0
    %2227 = vmatprep.subr.bf16.mxu0 0
    %2228 = vmatpush1.bf16.msra.mxu0 0
    %2229 = vmatprep.subr.bf16.mxu0 0
    %2230 = vmatpush1.bf16.msra.mxu0 0
    %2231 = vmatprep.subr.bf16.mxu0 0
    %2232 = vmatpush1.bf16.msra.mxu0 0
    %2233 = vmatprep.subr.bf16.mxu0 0
    %2234 = vmatpush1.bf16.msra.mxu0 0
    %2235 = vmatprep.subr.bf16.mxu0 0
    %2236 = vmatpush1.bf16.msra.mxu0 0
    %2237 = vmatprep.subr.bf16.mxu0 0
    %2238 = vmatpush1.bf16.msra.mxu0 0
    %2239 = vmatprep.subr.bf16.mxu0 0
    %2240 = vmatpush1.bf16.msra.mxu0 %v2218
    %2241 = vmatprep.subr.bf16.mxu0 0
    %2242 = vmatpush1.bf16.msra.mxu0 %v2217
    %2243 = vmatprep.subr.bf16.mxu0 0
    %2244 = vmatpush2.bf16.msra.mxu0 0
    %2245 = vmatprep.subr.bf16.mxu0 0
    %2246 = vmatpush2.bf16.msra.mxu0 0
    %2247 = vmatprep.subr.bf16.mxu0 0
    %2248 = vmatpush2.bf16.msra.mxu0 0
    %2249 = vmatprep.subr.bf16.mxu0 0
    %2250 = vmatpush2.bf16.msra.mxu0 0
    %2251 = vmatprep.subr.bf16.mxu0 0
    %2252 = vmatpush2.bf16.msra.mxu0 0
    %2253 = vmatprep.subr.bf16.mxu0 0
    %2254 = vmatpush2.bf16.msra.mxu0 0
    %2255 = vmatprep.subr.bf16.mxu0 0
    %2256 = vmatpush2.bf16.msra.mxu0 0
    %2257 = vmatprep.subr.bf16.mxu0 0
    %2258 = vmatpush2.bf16.msra.mxu0 0
    %2259 = vmatprep.mubr.bf16.mxu0 0
    %2260 = vmatmul.mubr.bf16.gmra.mxu0 %v2222
    %v2261 = vpop.f32.mrf.mxu0
    %v2262 = vadd.f32 %v2208, %v2261
    %v2263 = vpop.f32.mrf.mxu0
    %v2264 = vpop.f32.mrf.mxu0
    %v2265 = vadd.f32 %v2208, %v2264
    %v2266 = vpop.f32.mrf.mxu0
    %2267 = vmatprep.mubr.bf16.mxu0 0
    %2268 = vmatmul.mubr.bf16.gmra.mxu0 %v2225
    %v2269 = vpop.f32.mrf.mxu0
    %v2270 = vadd.f32 %v2208, %v2269
    %v2271 = vpop.f32.mrf.mxu0
    %v2272 = vpop.f32.mrf.mxu0
    %v2273 = vadd.f32 %v2208, %v2272
    %v2274 = vpop.f32.mrf.mxu0
    %2275 = vdwg.mxu0
    %s2276 = scalar_lea.vmem %s4, 32
    %v2277 = vld [vmem:[%s2276] sm:$0xff]
    %v2278 = vld [vmem:[%s2276 + $0x8] sm:$0xff]
    %v2279 = vld [vmem:[%s2276 + $0x10] sm:$0xff]
    %v2280 = vld [vmem:[%s2276 + $0x18] sm:$0xff]
    %v2281 = vmul.f32 %v2262, 0.35355338
    %v2282 = vmul.f32 %v2265, 0.35355338
    %v2283 = vmul.f32 %v2270, 0.35355338
    %v2284 = vmul.f32 %v2273, 0.35355338
    %2289 = vrot.lane.b32.xlu0 %v2262, 96
    %v2290 = vpop.permute.xlu0 %2289
    %2291 = vrot.lane.b32.xlu0 %v2265, 96
    %v2292 = vpop.permute.xlu0 %2291
    %2293 = vrot.lane.b32.xlu0 %v2270, 96
    %v2294 = vpop.permute.xlu0 %2293
    %2295 = vrot.lane.b32.xlu0 %v2273, 96
    %v2296 = vpop.permute.xlu0 %2295
    %v2298 = vsel %vm398, %v2281, 0
    %v2301 = vsel %vm398, %v2282, 0
    %v2304 = vsel %vm398, %v2283, 0
    %v2307 = vsel %vm398, %v2284, 0
    %v2309 = vsel %vm398, %v2290, 0
    %v2311 = vsel %vm398, %v2292, 0
    %v2313 = vsel %vm398, %v2294, 0
    %v2315 = vsel %vm398, %v2296, 0
    %2317 = vmatprep.subr.mxu0 0.0
    %2318 = vmatpush1.xpose.msra.mxu0 0.0
    %2319 = vmatprep.subr.mxu0 0.0
    %2320 = vmatpush1.xpose.msra.mxu0 0.0
    %2321 = vmatprep.subr.mxu0 0.0
    %2322 = vmatpush1.xpose.msra.mxu0 0.0
    %2323 = vmatprep.subr.mxu0 0.0
    %2324 = vmatpush1.xpose.msra.mxu0 0.0
    %2325 = vmatprep.subr.mxu0 0.0
    %2326 = vmatpush1.xpose.msra.mxu0 0.0
    %2327 = vmatprep.subr.mxu0 0.0
    %2328 = vmatpush1.xpose.msra.mxu0 0.0
    %2329 = vmatprep.subr.mxu0 0.0
    %2330 = vmatpush1.xpose.msra.mxu0 0.0
    %2331 = vmatprep.subr.mxu0 0.0
    %2332 = vmatpush1.xpose.msra.mxu0 0.0
    %2333 = vmatprep.subr.mxu0 0.0
    %2334 = vmatpush1.xpose.msra.mxu0 0.0
    %2335 = vmatprep.subr.mxu0 0.0
    %2336 = vmatpush1.xpose.msra.mxu0 0.0
    %2337 = vmatprep.subr.mxu0 0.0
    %2338 = vmatpush1.xpose.msra.mxu0 0.0
    %2339 = vmatprep.subr.mxu0 0.0
    %2340 = vmatpush1.xpose.msra.mxu0 0.0
    %2341 = vmatprep.subr.mxu0 0.0
    %2342 = vmatpush1.xpose.msra.mxu0 %v2315
    %2343 = vmatprep.subr.mxu0 0.0
    %2344 = vmatpush1.xpose.msra.mxu0 %v2313
    %2345 = vmatprep.subr.mxu0 0.0
    %2346 = vmatpush1.xpose.msra.mxu0 %v2311
    %2347 = vmatprep.subr.mxu0 0.0
    %2348 = vmatpush1.xpose.msra.mxu0 %v2309
    %2349 = vmatprep.subr.mxu0 0.0
    %2350 = vmatpush2.xpose.msra.mxu0 0.0
    %2351 = vmatprep.subr.mxu0 0.0
    %2352 = vmatpush2.xpose.msra.mxu0 0.0
    %2353 = vmatprep.subr.mxu0 0.0
    %2354 = vmatpush2.xpose.msra.mxu0 0.0
    %2355 = vmatprep.subr.mxu0 0.0
    %2356 = vmatpush2.xpose.msra.mxu0 0.0
    %2357 = vmatprep.subr.mxu0 0.0
    %2358 = vmatpush2.xpose.msra.mxu0 0.0
    %2359 = vmatprep.subr.mxu0 0.0
    %2360 = vmatpush2.xpose.msra.mxu0 0.0
    %2361 = vmatprep.subr.mxu0 0.0
    %2362 = vmatpush2.xpose.msra.mxu0 0.0
    %2363 = vmatprep.subr.mxu0 0.0
    %2364 = vmatpush2.xpose.msra.mxu0 0.0
    %2365 = vmatprep.subr.mxu0 0.0
    %2366 = vmatpush2.xpose.msra.mxu0 0.0
    %2367 = vmatprep.subr.mxu0 0.0
    %2368 = vmatpush2.xpose.msra.mxu0 0.0
    %2369 = vmatprep.subr.mxu0 0.0
    %2370 = vmatpush2.xpose.msra.mxu0 0.0
    %2371 = vmatprep.subr.mxu0 0.0
    %2372 = vmatpush2.xpose.msra.mxu0 0.0
    %2373 = vmatprep.subr.mxu0 0.0
    %2374 = vmatpush2.xpose.msra.mxu0 0.0
    %2375 = vmatprep.subr.mxu0 0.0
    %2376 = vmatpush2.xpose.msra.mxu0 0.0
    %2377 = vmatprep.subr.mxu0 0.0
    %2378 = vmatpush2.xpose.msra.mxu0 0.0
    %2379 = vmatprep.subr.mxu0 0.0
    %2380 = vmatpush2.xpose.msra.mxu0 0.0
    %2381 = vmatprep.mubr.f32.mxu0 0.0
    %2382 = vmatmul.mubr.f32.gmra.mxu0 %v2298
    %v2383 = vpop.f32.mrf.mxu0
    %v2384 = vadd.f32 %v387, %v2383
    %v2385 = vpop.f32.mrf.mxu0
    %2386 = vmatprep.mubr.f32.mxu0 0.0
    %2387 = vmatmul.mubr.f32.gmra.mxu0 %v2301
    %v2388 = vpop.f32.mrf.mxu0
    %v2389 = vadd.f32 %v389, %v2388
    %v2390 = vpop.f32.mrf.mxu0
    %2391 = vmatprep.mubr.f32.mxu0 0.0
    %2392 = vmatmul.mubr.f32.gmra.mxu0 %v2304
    %v2393 = vpop.f32.mrf.mxu0
    %v2394 = vadd.f32 %v391, %v2393
    %v2395 = vpop.f32.mrf.mxu0
    %2396 = vmatprep.mubr.f32.mxu0 0.0
    %2397 = vmatmul.mubr.f32.gmra.mxu0 %v2307
    %v2398 = vpop.f32.mrf.mxu0
    %v2399 = vadd.f32 %v393, %v2398
    %v2400 = vpop.f32.mrf.mxu0
    %2401 = vdwg.mxu0
    %v2402 = vsel %vm230, %v2384, -inf
    %2403 = vmax.xlane.f32.xlu0 %v2402
    %v2404 = vpop.xlane.xlu0 %2403
    %v2405 = vsel %vm230, %v2389, -inf
    %2406 = vmax.xlane.f32.xlu0 %v2405
    %v2407 = vpop.xlane.xlu0 %2406
    %v2408 = vsel %vm230, %v2394, -inf
    %2409 = vmax.xlane.f32.xlu0 %v2408
    %v2410 = vpop.xlane.xlu0 %2409
    %v2411 = vsel %vm230, %v2399, -inf
    %2412 = vmax.xlane.f32.xlu0 %v2411
    %v2413 = vpop.xlane.xlu0 %2412
    %v2414 = vsub.f32 %v2384, %v2404
    %v2415 = vsub.f32 %v2389, %v2407
    %v2416 = vsub.f32 %v2394, %v2410
    %v2417 = vsub.f32 %v2399, %v2413
    %v2418 = vmul.f32 %v2414, 1.442695
    %v2419 = vpow.pop %v2418
    %v2420 = vmul.f32 %v2415, 1.442695
    %v2421 = vpow.pop %v2420
    %v2422 = vmul.f32 %v2416, 1.442695
    %v2423 = vpow.pop %v2422
    %v2424 = vmul.f32 %v2417, 1.442695
    %v2425 = vpow.pop %v2424
    %v2426 = vsel %vm230, %v2419, 0.0
    %2427 = vadd.xlane.f32.xlu0 %v2426
    %v2428 = vpop.xlane.xlu0 %2427
    %v2429 = vsel %vm230, %v2421, 0.0
    %2430 = vadd.xlane.f32.xlu0 %v2429
    %v2431 = vpop.xlane.xlu0 %2430
    %v2432 = vsel %vm230, %v2423, 0.0
    %2433 = vadd.xlane.f32.xlu0 %v2432
    %v2434 = vpop.xlane.xlu0 %2433
    %v2435 = vsel %vm230, %v2425, 0.0
    %2436 = vadd.xlane.f32.xlu0 %v2435
    %v2437 = vpop.xlane.xlu0 %2436
    %v2438 = vrcp.pop %v2428
    %v2439 = vrcp.pop %v2431
    %v2440 = vrcp.pop %v2434
    %v2441 = vrcp.pop %v2437
    %v2442 = vmul.f32 %v2419, %v2438
    %v2443 = vmul.f32 %v2421, %v2439
    %v2444 = vmul.f32 %v2423, %v2440
    %v2445 = vmul.f32 %v2425, %v2441
    %2446 = vrot.lane.b32.xlu0 %v2262, 64
    %v2447 = vpop.permute.xlu0 %2446
    %2448 = vrot.lane.b32.xlu0 %v2265, 64
    %v2449 = vpop.permute.xlu0 %2448
    %2450 = vrot.lane.b32.xlu0 %v2270, 64
    %v2451 = vpop.permute.xlu0 %2450
    %2452 = vrot.lane.b32.xlu0 %v2273, 64
    %v2453 = vpop.permute.xlu0 %2452
    %v2459 = vsel %vm230, %v2442, 0
    %v2462 = vsel %vm230, %v2443, 0
    %v2465 = vsel %vm230, %v2444, 0
    %v2468 = vsel %vm230, %v2445, 0
    %2470 = vmatprep.subr.mxu0 0.0
    %2471 = vmatpush1.msra.mxu0 0.0
    %2472 = vmatprep.subr.mxu0 0.0
    %2473 = vmatpush1.msra.mxu0 0.0
    %2474 = vmatprep.subr.mxu0 0.0
    %2475 = vmatpush1.msra.mxu0 0.0
    %2476 = vmatprep.subr.mxu0 0.0
    %2477 = vmatpush1.msra.mxu0 0.0
    %2478 = vmatprep.subr.mxu0 0.0
    %2479 = vmatpush1.msra.mxu0 0.0
    %2480 = vmatprep.subr.mxu0 0.0
    %2481 = vmatpush1.msra.mxu0 0.0
    %2482 = vmatprep.subr.mxu0 0.0
    %2483 = vmatpush1.msra.mxu0 0.0
    %2484 = vmatprep.subr.mxu0 0.0
    %2485 = vmatpush1.msra.mxu0 0.0
    %2486 = vmatprep.subr.mxu0 0.0
    %2487 = vmatpush1.msra.mxu0 0.0
    %2488 = vmatprep.subr.mxu0 0.0
    %2489 = vmatpush1.msra.mxu0 0.0
    %2490 = vmatprep.subr.mxu0 0.0
    %2491 = vmatpush1.msra.mxu0 0.0
    %2492 = vmatprep.subr.mxu0 0.0
    %2493 = vmatpush1.msra.mxu0 0.0
    %2494 = vmatprep.subr.mxu0 0.0
    %2495 = vmatpush1.msra.mxu0 %v2453
    %2496 = vmatprep.subr.mxu0 0.0
    %2497 = vmatpush1.msra.mxu0 %v2451
    %2498 = vmatprep.subr.mxu0 0.0
    %2499 = vmatpush1.msra.mxu0 %v2449
    %2500 = vmatprep.subr.mxu0 0.0
    %2501 = vmatpush1.msra.mxu0 %v2447
    %2502 = vmatprep.subr.mxu0 0.0
    %2503 = vmatpush2.msra.mxu0 0.0
    %2504 = vmatprep.subr.mxu0 0.0
    %2505 = vmatpush2.msra.mxu0 0.0
    %2506 = vmatprep.subr.mxu0 0.0
    %2507 = vmatpush2.msra.mxu0 0.0
    %2508 = vmatprep.subr.mxu0 0.0
    %2509 = vmatpush2.msra.mxu0 0.0
    %2510 = vmatprep.subr.mxu0 0.0
    %2511 = vmatpush2.msra.mxu0 0.0
    %2512 = vmatprep.subr.mxu0 0.0
    %2513 = vmatpush2.msra.mxu0 0.0
    %2514 = vmatprep.subr.mxu0 0.0
    %2515 = vmatpush2.msra.mxu0 0.0
    %2516 = vmatprep.subr.mxu0 0.0
    %2517 = vmatpush2.msra.mxu0 0.0
    %2518 = vmatprep.subr.mxu0 0.0
    %2519 = vmatpush2.msra.mxu0 0.0
    %2520 = vmatprep.subr.mxu0 0.0
    %2521 = vmatpush2.msra.mxu0 0.0
    %2522 = vmatprep.subr.mxu0 0.0
    %2523 = vmatpush2.msra.mxu0 0.0
    %2524 = vmatprep.subr.mxu0 0.0
    %2525 = vmatpush2.msra.mxu0 0.0
    %2526 = vmatprep.subr.mxu0 0.0
    %2527 = vmatpush2.msra.mxu0 0.0
    %2528 = vmatprep.subr.mxu0 0.0
    %2529 = vmatpush2.msra.mxu0 0.0
    %2530 = vmatprep.subr.mxu0 0.0
    %2531 = vmatpush2.msra.mxu0 0.0
    %2532 = vmatprep.subr.mxu0 0.0
    %2533 = vmatpush2.msra.mxu0 0.0
    %2534 = vmatprep.mubr.f32.mxu0 0.0
    %2535 = vmatmul.mubr.f32.gmra.mxu0 %v2459
    %v2536 = vpop.f32.mrf.mxu0
    %v2537 = vadd.f32 0.0, %v2536
    %v2538 = vpop.f32.mrf.mxu0
    %2539 = vmatprep.mubr.f32.mxu0 0.0
    %2540 = vmatmul.mubr.f32.gmra.mxu0 %v2462
    %v2541 = vpop.f32.mrf.mxu0
    %v2542 = vadd.f32 0.0, %v2541
    %v2543 = vpop.f32.mrf.mxu0
    %2544 = vmatprep.mubr.f32.mxu0 0.0
    %2545 = vmatmul.mubr.f32.gmra.mxu0 %v2465
    %v2546 = vpop.f32.mrf.mxu0
    %v2547 = vadd.f32 0.0, %v2546
    %v2548 = vpop.f32.mrf.mxu0
    %2549 = vmatprep.mubr.f32.mxu0 0.0
    %2550 = vmatmul.mubr.f32.gmra.mxu0 %v2468
    %v2551 = vpop.f32.mrf.mxu0
    %v2552 = vadd.f32 0.0, %v2551
    %v2553 = vpop.f32.mrf.mxu0
    %2554 = vdwg.mxu0
    %2555 = vrot.lane.b32.xlu0 %v2281, 120
    %v2556 = vpop.permute.xlu0 %2555
    %2557 = vrot.lane.b32.xlu0 %v2282, 120
    %v2558 = vpop.permute.xlu0 %2557
    %2559 = vrot.lane.b32.xlu0 %v2283, 120
    %v2560 = vpop.permute.xlu0 %2559
    %2561 = vrot.lane.b32.xlu0 %v2284, 120
    %v2562 = vpop.permute.xlu0 %2561
    %2563 = vrot.lane.b32.xlu0 %v2262, 88
    %v2564 = vpop.permute.xlu0 %2563
    %2565 = vrot.lane.b32.xlu0 %v2265, 88
    %v2566 = vpop.permute.xlu0 %2565
    %2567 = vrot.lane.b32.xlu0 %v2270, 88
    %v2568 = vpop.permute.xlu0 %2567
    %2569 = vrot.lane.b32.xlu0 %v2273, 88
    %v2570 = vpop.permute.xlu0 %2569
    %v2571 = vsel %vm398, %v2556, 0
    %v2573 = vsel %vm398, %v2558, 0
    %v2575 = vsel %vm398, %v2560, 0
    %v2577 = vsel %vm398, %v2562, 0
    %v2579 = vsel %vm398, %v2564, 0
    %v2581 = vsel %vm398, %v2566, 0
    %v2583 = vsel %vm398, %v2568, 0
    %v2585 = vsel %vm398, %v2570, 0
    %2587 = vmatprep.subr.mxu0 0.0
    %2588 = vmatpush1.xpose.msra.mxu0 0.0
    %2589 = vmatprep.subr.mxu0 0.0
    %2590 = vmatpush1.xpose.msra.mxu0 0.0
    %2591 = vmatprep.subr.mxu0 0.0
    %2592 = vmatpush1.xpose.msra.mxu0 0.0
    %2593 = vmatprep.subr.mxu0 0.0
    %2594 = vmatpush1.xpose.msra.mxu0 0.0
    %2595 = vmatprep.subr.mxu0 0.0
    %2596 = vmatpush1.xpose.msra.mxu0 0.0
    %2597 = vmatprep.subr.mxu0 0.0
    %2598 = vmatpush1.xpose.msra.mxu0 0.0
    %2599 = vmatprep.subr.mxu0 0.0
    %2600 = vmatpush1.xpose.msra.mxu0 0.0
    %2601 = vmatprep.subr.mxu0 0.0
    %2602 = vmatpush1.xpose.msra.mxu0 0.0
    %2603 = vmatprep.subr.mxu0 0.0
    %2604 = vmatpush1.xpose.msra.mxu0 0.0
    %2605 = vmatprep.subr.mxu0 0.0
    %2606 = vmatpush1.xpose.msra.mxu0 0.0
    %2607 = vmatprep.subr.mxu0 0.0
    %2608 = vmatpush1.xpose.msra.mxu0 0.0
    %2609 = vmatprep.subr.mxu0 0.0
    %2610 = vmatpush1.xpose.msra.mxu0 0.0
    %2611 = vmatprep.subr.mxu0 0.0
    %2612 = vmatpush1.xpose.msra.mxu0 %v2585
    %2613 = vmatprep.subr.mxu0 0.0
    %2614 = vmatpush1.xpose.msra.mxu0 %v2583
    %2615 = vmatprep.subr.mxu0 0.0
    %2616 = vmatpush1.xpose.msra.mxu0 %v2581
    %2617 = vmatprep.subr.mxu0 0.0
    %2618 = vmatpush1.xpose.msra.mxu0 %v2579
    %2619 = vmatprep.subr.mxu0 0.0
    %2620 = vmatpush2.xpose.msra.mxu0 0.0
    %2621 = vmatprep.subr.mxu0 0.0
    %2622 = vmatpush2.xpose.msra.mxu0 0.0
    %2623 = vmatprep.subr.mxu0 0.0
    %2624 = vmatpush2.xpose.msra.mxu0 0.0
    %2625 = vmatprep.subr.mxu0 0.0
    %2626 = vmatpush2.xpose.msra.mxu0 0.0
    %2627 = vmatprep.subr.mxu0 0.0
    %2628 = vmatpush2.xpose.msra.mxu0 0.0
    %2629 = vmatprep.subr.mxu0 0.0
    %2630 = vmatpush2.xpose.msra.mxu0 0.0
    %2631 = vmatprep.subr.mxu0 0.0
    %2632 = vmatpush2.xpose.msra.mxu0 0.0
    %2633 = vmatprep.subr.mxu0 0.0
    %2634 = vmatpush2.xpose.msra.mxu0 0.0
    %2635 = vmatprep.subr.mxu0 0.0
    %2636 = vmatpush2.xpose.msra.mxu0 0.0
    %2637 = vmatprep.subr.mxu0 0.0
    %2638 = vmatpush2.xpose.msra.mxu0 0.0
    %2639 = vmatprep.subr.mxu0 0.0
    %2640 = vmatpush2.xpose.msra.mxu0 0.0
    %2641 = vmatprep.subr.mxu0 0.0
    %2642 = vmatpush2.xpose.msra.mxu0 0.0
    %2643 = vmatprep.subr.mxu0 0.0
    %2644 = vmatpush2.xpose.msra.mxu0 0.0
    %2645 = vmatprep.subr.mxu0 0.0
    %2646 = vmatpush2.xpose.msra.mxu0 0.0
    %2647 = vmatprep.subr.mxu0 0.0
    %2648 = vmatpush2.xpose.msra.mxu0 0.0
    %2649 = vmatprep.subr.mxu0 0.0
    %2650 = vmatpush2.xpose.msra.mxu0 0.0
    %2651 = vmatprep.mubr.f32.mxu0 0.0
    %2652 = vmatmul.mubr.f32.gmra.mxu0 %v2571
    %v2653 = vpop.f32.mrf.mxu0
    %v2654 = vadd.f32 %v387, %v2653
    %v2655 = vpop.f32.mrf.mxu0
    %2656 = vmatprep.mubr.f32.mxu0 0.0
    %2657 = vmatmul.mubr.f32.gmra.mxu0 %v2573
    %v2658 = vpop.f32.mrf.mxu0
    %v2659 = vadd.f32 %v389, %v2658
    %v2660 = vpop.f32.mrf.mxu0
    %2661 = vmatprep.mubr.f32.mxu0 0.0
    %2662 = vmatmul.mubr.f32.gmra.mxu0 %v2575
    %v2663 = vpop.f32.mrf.mxu0
    %v2664 = vadd.f32 %v391, %v2663
    %v2665 = vpop.f32.mrf.mxu0
    %2666 = vmatprep.mubr.f32.mxu0 0.0
    %2667 = vmatmul.mubr.f32.gmra.mxu0 %v2577
    %v2668 = vpop.f32.mrf.mxu0
    %v2669 = vadd.f32 %v393, %v2668
    %v2670 = vpop.f32.mrf.mxu0
    %2671 = vdwg.mxu0
    %v2672 = vsel %vm230, %v2654, -inf
    %2673 = vmax.xlane.f32.xlu0 %v2672
    %v2674 = vpop.xlane.xlu0 %2673
    %v2675 = vsel %vm230, %v2659, -inf
    %2676 = vmax.xlane.f32.xlu0 %v2675
    %v2677 = vpop.xlane.xlu0 %2676
    %v2678 = vsel %vm230, %v2664, -inf
    %2679 = vmax.xlane.f32.xlu0 %v2678
    %v2680 = vpop.xlane.xlu0 %2679
    %v2681 = vsel %vm230, %v2669, -inf
    %2682 = vmax.xlane.f32.xlu0 %v2681
    %v2683 = vpop.xlane.xlu0 %2682
    %v2684 = vsub.f32 %v2654, %v2674
    %v2685 = vsub.f32 %v2659, %v2677
    %v2686 = vsub.f32 %v2664, %v2680
    %v2687 = vsub.f32 %v2669, %v2683
    %v2688 = vmul.f32 %v2684, 1.442695
    %v2689 = vpow.pop %v2688
    %v2690 = vmul.f32 %v2685, 1.442695
    %v2691 = vpow.pop %v2690
    %v2692 = vmul.f32 %v2686, 1.442695
    %v2693 = vpow.pop %v2692
    %v2694 = vmul.f32 %v2687, 1.442695
    %v2695 = vpow.pop %v2694
    %v2696 = vsel %vm230, %v2689, 0.0
    %2697 = vadd.xlane.f32.xlu0 %v2696
    %v2698 = vpop.xlane.xlu0 %2697
    %v2699 = vsel %vm230, %v2691, 0.0
    %2700 = vadd.xlane.f32.xlu0 %v2699
    %v2701 = vpop.xlane.xlu0 %2700
    %v2702 = vsel %vm230, %v2693, 0.0
    %2703 = vadd.xlane.f32.xlu0 %v2702
    %v2704 = vpop.xlane.xlu0 %2703
    %v2705 = vsel %vm230, %v2695, 0.0
    %2706 = vadd.xlane.f32.xlu0 %v2705
    %v2707 = vpop.xlane.xlu0 %2706
    %v2708 = vrcp.pop %v2698
    %v2709 = vrcp.pop %v2701
    %v2710 = vrcp.pop %v2704
    %v2711 = vrcp.pop %v2707
    %v2712 = vmul.f32 %v2689, %v2708
    %v2713 = vmul.f32 %v2691, %v2709
    %v2714 = vmul.f32 %v2693, %v2710
    %v2715 = vmul.f32 %v2695, %v2711
    %2716 = vrot.lane.b32.xlu0 %v2262, 56
    %v2717 = vpop.permute.xlu0 %2716
    %2718 = vrot.lane.b32.xlu0 %v2265, 56
    %v2719 = vpop.permute.xlu0 %2718
    %2720 = vrot.lane.b32.xlu0 %v2270, 56
    %v2721 = vpop.permute.xlu0 %2720
    %2722 = vrot.lane.b32.xlu0 %v2273, 56
    %v2723 = vpop.permute.xlu0 %2722
    %v2729 = vsel %vm230, %v2712, 0
    %v2732 = vsel %vm230, %v2713, 0
    %v2735 = vsel %vm230, %v2714, 0
    %v2738 = vsel %vm230, %v2715, 0
    %2740 = vmatprep.subr.mxu0 0.0
    %2741 = vmatpush1.msra.mxu0 0.0
    %2742 = vmatprep.subr.mxu0 0.0
    %2743 = vmatpush1.msra.mxu0 0.0
    %2744 = vmatprep.subr.mxu0 0.0
    %2745 = vmatpush1.msra.mxu0 0.0
    %2746 = vmatprep.subr.mxu0 0.0
    %2747 = vmatpush1.msra.mxu0 0.0
    %2748 = vmatprep.subr.mxu0 0.0
    %2749 = vmatpush1.msra.mxu0 0.0
    %2750 = vmatprep.subr.mxu0 0.0
    %2751 = vmatpush1.msra.mxu0 0.0
    %2752 = vmatprep.subr.mxu0 0.0
    %2753 = vmatpush1.msra.mxu0 0.0
    %2754 = vmatprep.subr.mxu0 0.0
    %2755 = vmatpush1.msra.mxu0 0.0
    %2756 = vmatprep.subr.mxu0 0.0
    %2757 = vmatpush1.msra.mxu0 0.0
    %2758 = vmatprep.subr.mxu0 0.0
    %2759 = vmatpush1.msra.mxu0 0.0
    %2760 = vmatprep.subr.mxu0 0.0
    %2761 = vmatpush1.msra.mxu0 0.0
    %2762 = vmatprep.subr.mxu0 0.0
    %2763 = vmatpush1.msra.mxu0 0.0
    %2764 = vmatprep.subr.mxu0 0.0
    %2765 = vmatpush1.msra.mxu0 %v2723
    %2766 = vmatprep.subr.mxu0 0.0
    %2767 = vmatpush1.msra.mxu0 %v2721
    %2768 = vmatprep.subr.mxu0 0.0
    %2769 = vmatpush1.msra.mxu0 %v2719
    %2770 = vmatprep.subr.mxu0 0.0
    %2771 = vmatpush1.msra.mxu0 %v2717
    %2772 = vmatprep.subr.mxu0 0.0
    %2773 = vmatpush2.msra.mxu0 0.0
    %2774 = vmatprep.subr.mxu0 0.0
    %2775 = vmatpush2.msra.mxu0 0.0
    %2776 = vmatprep.subr.mxu0 0.0
    %2777 = vmatpush2.msra.mxu0 0.0
    %2778 = vmatprep.subr.mxu0 0.0
    %2779 = vmatpush2.msra.mxu0 0.0
    %2780 = vmatprep.subr.mxu0 0.0
    %2781 = vmatpush2.msra.mxu0 0.0
    %2782 = vmatprep.subr.mxu0 0.0
    %2783 = vmatpush2.msra.mxu0 0.0
    %2784 = vmatprep.subr.mxu0 0.0
    %2785 = vmatpush2.msra.mxu0 0.0
    %2786 = vmatprep.subr.mxu0 0.0
    %2787 = vmatpush2.msra.mxu0 0.0
    %2788 = vmatprep.subr.mxu0 0.0
    %2789 = vmatpush2.msra.mxu0 0.0
    %2790 = vmatprep.subr.mxu0 0.0
    %2791 = vmatpush2.msra.mxu0 0.0
    %2792 = vmatprep.subr.mxu0 0.0
    %2793 = vmatpush2.msra.mxu0 0.0
    %2794 = vmatprep.subr.mxu0 0.0
    %2795 = vmatpush2.msra.mxu0 0.0
    %2796 = vmatprep.subr.mxu0 0.0
    %2797 = vmatpush2.msra.mxu0 0.0
    %2798 = vmatprep.subr.mxu0 0.0
    %2799 = vmatpush2.msra.mxu0 0.0
    %2800 = vmatprep.subr.mxu0 0.0
    %2801 = vmatpush2.msra.mxu0 0.0
    %2802 = vmatprep.subr.mxu0 0.0
    %2803 = vmatpush2.msra.mxu0 0.0
    %2804 = vmatprep.mubr.f32.mxu0 0.0
    %2805 = vmatmul.mubr.f32.gmra.mxu0 %v2729
    %v2806 = vpop.f32.mrf.mxu0
    %v2807 = vadd.f32 0.0, %v2806
    %v2808 = vpop.f32.mrf.mxu0
    %2809 = vmatprep.mubr.f32.mxu0 0.0
    %2810 = vmatmul.mubr.f32.gmra.mxu0 %v2732
    %v2811 = vpop.f32.mrf.mxu0
    %v2812 = vadd.f32 0.0, %v2811
    %v2813 = vpop.f32.mrf.mxu0
    %2814 = vmatprep.mubr.f32.mxu0 0.0
    %2815 = vmatmul.mubr.f32.gmra.mxu0 %v2735
    %v2816 = vpop.f32.mrf.mxu0
    %v2817 = vadd.f32 0.0, %v2816
    %v2818 = vpop.f32.mrf.mxu0
    %2819 = vmatprep.mubr.f32.mxu0 0.0
    %2820 = vmatmul.mubr.f32.gmra.mxu0 %v2738
    %v2821 = vpop.f32.mrf.mxu0
    %v2822 = vadd.f32 0.0, %v2821
    %v2823 = vpop.f32.mrf.mxu0
    %2824 = vdwg.mxu0
    %v2826 = vsel %vm398, %v2807, 0
    %v2829 = vsel %vm398, %v2812, 0
    %v2832 = vsel %vm398, %v2817, 0
    %v2835 = vsel %vm398, %v2822, 0
    %2837 = vmatprep.subr.mxu0 0.0
    %2838 = vmatpush1.msra.mxu0 0.0
    %2839 = vmatprep.subr.mxu0 0.0
    %2840 = vmatpush1.msra.mxu0 0.0
    %2841 = vmatprep.subr.mxu0 0.0
    %2842 = vmatpush1.msra.mxu0 0.0
    %2843 = vmatprep.subr.mxu0 0.0
    %2844 = vmatpush1.msra.mxu0 0.0
    %2845 = vmatprep.subr.mxu0 0.0
    %2846 = vmatpush1.msra.mxu0 0.0
    %2847 = vmatprep.subr.mxu0 0.0
    %2848 = vmatpush1.msra.mxu0 0.0
    %2849 = vmatprep.subr.mxu0 0.0
    %2850 = vmatpush1.msra.mxu0 0.0
    %2851 = vmatprep.subr.mxu0 0.0
    %2852 = vmatpush1.msra.mxu0 0.0
    %2853 = vmatprep.subr.mxu0 0.0
    %2854 = vmatpush1.msra.mxu0 0.0
    %2855 = vmatprep.subr.mxu0 0.0
    %2856 = vmatpush1.msra.mxu0 0.0
    %2857 = vmatprep.subr.mxu0 0.0
    %2858 = vmatpush1.msra.mxu0 0.0
    %2859 = vmatprep.subr.mxu0 0.0
    %2860 = vmatpush1.msra.mxu0 0.0
    %2861 = vmatprep.subr.mxu0 0.0
    %2862 = vmatpush1.msra.mxu0 0.0
    %2863 = vmatprep.subr.mxu0 0.0
    %2864 = vmatpush1.msra.mxu0 0.0
    %2865 = vmatprep.subr.mxu0 0.0
    %2866 = vmatpush1.msra.mxu0 0.0
    %2867 = vmatprep.subr.mxu0 0.0
    %2868 = vmatpush1.msra.mxu0 %v2278
    %2869 = vmatprep.subr.mxu0 0.0
    %2870 = vmatpush2.msra.mxu0 0.0
    %2871 = vmatprep.subr.mxu0 0.0
    %2872 = vmatpush2.msra.mxu0 0.0
    %2873 = vmatprep.subr.mxu0 0.0
    %2874 = vmatpush2.msra.mxu0 0.0
    %2875 = vmatprep.subr.mxu0 0.0
    %2876 = vmatpush2.msra.mxu0 0.0
    %2877 = vmatprep.subr.mxu0 0.0
    %2878 = vmatpush2.msra.mxu0 0.0
    %2879 = vmatprep.subr.mxu0 0.0
    %2880 = vmatpush2.msra.mxu0 0.0
    %2881 = vmatprep.subr.mxu0 0.0
    %2882 = vmatpush2.msra.mxu0 0.0
    %2883 = vmatprep.subr.mxu0 0.0
    %2884 = vmatpush2.msra.mxu0 0.0
    %2885 = vmatprep.subr.mxu0 0.0
    %2886 = vmatpush2.msra.mxu0 0.0
    %2887 = vmatprep.subr.mxu0 0.0
    %2888 = vmatpush2.msra.mxu0 0.0
    %2889 = vmatprep.subr.mxu0 0.0
    %2890 = vmatpush2.msra.mxu0 0.0
    %2891 = vmatprep.subr.mxu0 0.0
    %2892 = vmatpush2.msra.mxu0 0.0
    %2893 = vmatprep.subr.mxu0 0.0
    %2894 = vmatpush2.msra.mxu0 0.0
    %2895 = vmatprep.subr.mxu0 0.0
    %2896 = vmatpush2.msra.mxu0 0.0
    %2897 = vmatprep.subr.mxu0 0.0
    %2898 = vmatpush2.msra.mxu0 0.0
    %2899 = vmatprep.subr.mxu0 0.0
    %2900 = vmatpush2.msra.mxu0 0.0
    %2901 = vmatprep.mubr.f32.mxu0 0.0
    %2902 = vmatmul.mubr.f32.gmra.mxu0 %v2826
    %v2903 = vpop.f32.mrf.mxu0
    %v2904 = vadd.f32 0.0, %v2903
    %v2905 = vpop.f32.mrf.mxu0
    %2906 = vmatprep.mubr.f32.mxu0 0.0
    %2907 = vmatmul.mubr.f32.gmra.mxu0 %v2829
    %v2908 = vpop.f32.mrf.mxu0
    %v2909 = vadd.f32 0.0, %v2908
    %v2910 = vpop.f32.mrf.mxu0
    %2911 = vmatprep.mubr.f32.mxu0 0.0
    %2912 = vmatmul.mubr.f32.gmra.mxu0 %v2832
    %v2913 = vpop.f32.mrf.mxu0
    %v2914 = vadd.f32 0.0, %v2913
    %v2915 = vpop.f32.mrf.mxu0
    %2916 = vmatprep.mubr.f32.mxu0 0.0
    %2917 = vmatmul.mubr.f32.gmra.mxu0 %v2835
    %v2918 = vpop.f32.mrf.mxu0
    %v2919 = vadd.f32 0.0, %v2918
    %v2920 = vpop.f32.mrf.mxu0
    %2921 = vdwg.mxu0
    %v2923 = vsel %vm398, %v2537, 0
    %v2926 = vsel %vm398, %v2542, 0
    %v2929 = vsel %vm398, %v2547, 0
    %v2932 = vsel %vm398, %v2552, 0
    %2934 = vmatprep.subr.mxu0 0.0
    %2935 = vmatpush1.msra.mxu0 0.0
    %2936 = vmatprep.subr.mxu0 0.0
    %2937 = vmatpush1.msra.mxu0 0.0
    %2938 = vmatprep.subr.mxu0 0.0
    %2939 = vmatpush1.msra.mxu0 0.0
    %2940 = vmatprep.subr.mxu0 0.0
    %2941 = vmatpush1.msra.mxu0 0.0
    %2942 = vmatprep.subr.mxu0 0.0
    %2943 = vmatpush1.msra.mxu0 0.0
    %2944 = vmatprep.subr.mxu0 0.0
    %2945 = vmatpush1.msra.mxu0 0.0
    %2946 = vmatprep.subr.mxu0 0.0
    %2947 = vmatpush1.msra.mxu0 0.0
    %2948 = vmatprep.subr.mxu0 0.0
    %2949 = vmatpush1.msra.mxu0 0.0
    %2950 = vmatprep.subr.mxu0 0.0
    %2951 = vmatpush1.msra.mxu0 0.0
    %2952 = vmatprep.subr.mxu0 0.0
    %2953 = vmatpush1.msra.mxu0 0.0
    %2954 = vmatprep.subr.mxu0 0.0
    %2955 = vmatpush1.msra.mxu0 0.0
    %2956 = vmatprep.subr.mxu0 0.0
    %2957 = vmatpush1.msra.mxu0 0.0
    %2958 = vmatprep.subr.mxu0 0.0
    %2959 = vmatpush1.msra.mxu0 0.0
    %2960 = vmatprep.subr.mxu0 0.0
    %2961 = vmatpush1.msra.mxu0 0.0
    %2962 = vmatprep.subr.mxu0 0.0
    %2963 = vmatpush1.msra.mxu0 0.0
    %2964 = vmatprep.subr.mxu0 0.0
    %2965 = vmatpush1.msra.mxu0 %v2277
    %2966 = vmatprep.subr.mxu0 0.0
    %2967 = vmatpush2.msra.mxu0 0.0
    %2968 = vmatprep.subr.mxu0 0.0
    %2969 = vmatpush2.msra.mxu0 0.0
    %2970 = vmatprep.subr.mxu0 0.0
    %2971 = vmatpush2.msra.mxu0 0.0
    %2972 = vmatprep.subr.mxu0 0.0
    %2973 = vmatpush2.msra.mxu0 0.0
    %2974 = vmatprep.subr.mxu0 0.0
    %2975 = vmatpush2.msra.mxu0 0.0
    %2976 = vmatprep.subr.mxu0 0.0
    %2977 = vmatpush2.msra.mxu0 0.0
    %2978 = vmatprep.subr.mxu0 0.0
    %2979 = vmatpush2.msra.mxu0 0.0
    %2980 = vmatprep.subr.mxu0 0.0
    %2981 = vmatpush2.msra.mxu0 0.0
    %2982 = vmatprep.subr.mxu0 0.0
    %2983 = vmatpush2.msra.mxu0 0.0
    %2984 = vmatprep.subr.mxu0 0.0
    %2985 = vmatpush2.msra.mxu0 0.0
    %2986 = vmatprep.subr.mxu0 0.0
    %2987 = vmatpush2.msra.mxu0 0.0
    %2988 = vmatprep.subr.mxu0 0.0
    %2989 = vmatpush2.msra.mxu0 0.0
    %2990 = vmatprep.subr.mxu0 0.0
    %2991 = vmatpush2.msra.mxu0 0.0
    %2992 = vmatprep.subr.mxu0 0.0
    %2993 = vmatpush2.msra.mxu0 0.0
    %2994 = vmatprep.subr.mxu0 0.0
    %2995 = vmatpush2.msra.mxu0 0.0
    %2996 = vmatprep.subr.mxu0 0.0
    %2997 = vmatpush2.msra.mxu0 0.0
    %2998 = vmatprep.mubr.f32.mxu0 0.0
    %2999 = vmatmul.mubr.f32.gmra.mxu0 %v2923
    %v3000 = vpop.f32.mrf.mxu0
    %v3001 = vadd.f32 %v2904, %v3000
    %v3002 = vpop.f32.mrf.mxu0
    %3003 = vmatprep.mubr.f32.mxu0 0.0
    %3004 = vmatmul.mubr.f32.gmra.mxu0 %v2926
    %v3005 = vpop.f32.mrf.mxu0
    %v3006 = vadd.f32 %v2909, %v3005
    %v3007 = vpop.f32.mrf.mxu0
    %3008 = vmatprep.mubr.f32.mxu0 0.0
    %3009 = vmatmul.mubr.f32.gmra.mxu0 %v2929
    %v3010 = vpop.f32.mrf.mxu0
    %v3011 = vadd.f32 %v2914, %v3010
    %v3012 = vpop.f32.mrf.mxu0
    %3013 = vmatprep.mubr.f32.mxu0 0.0
    %3014 = vmatmul.mubr.f32.gmra.mxu0 %v2932
    %v3015 = vpop.f32.mrf.mxu0
    %v3016 = vadd.f32 %v2919, %v3015
    %v3017 = vpop.f32.mrf.mxu0
    %3018 = vdwg.mxu0
    %3019 = vrot.lane.b32.xlu0 %v2281, 112
    %v3020 = vpop.permute.xlu0 %3019
    %3021 = vrot.lane.b32.xlu0 %v2282, 112
    %v3022 = vpop.permute.xlu0 %3021
    %3023 = vrot.lane.b32.xlu0 %v2283, 112
    %v3024 = vpop.permute.xlu0 %3023
    %3025 = vrot.lane.b32.xlu0 %v2284, 112
    %v3026 = vpop.permute.xlu0 %3025
    %3027 = vrot.lane.b32.xlu0 %v2262, 80
    %v3028 = vpop.permute.xlu0 %3027
    %3029 = vrot.lane.b32.xlu0 %v2265, 80
    %v3030 = vpop.permute.xlu0 %3029
    %3031 = vrot.lane.b32.xlu0 %v2270, 80
    %v3032 = vpop.permute.xlu0 %3031
    %3033 = vrot.lane.b32.xlu0 %v2273, 80
    %v3034 = vpop.permute.xlu0 %3033
    %v3035 = vsel %vm398, %v3020, 0
    %v3037 = vsel %vm398, %v3022, 0
    %v3039 = vsel %vm398, %v3024, 0
    %v3041 = vsel %vm398, %v3026, 0
    %v3043 = vsel %vm398, %v3028, 0
    %v3045 = vsel %vm398, %v3030, 0
    %v3047 = vsel %vm398, %v3032, 0
    %v3049 = vsel %vm398, %v3034, 0
    %3051 = vmatprep.subr.mxu0 0.0
    %3052 = vmatpush1.xpose.msra.mxu0 0.0
    %3053 = vmatprep.subr.mxu0 0.0
    %3054 = vmatpush1.xpose.msra.mxu0 0.0
    %3055 = vmatprep.subr.mxu0 0.0
    %3056 = vmatpush1.xpose.msra.mxu0 0.0
    %3057 = vmatprep.subr.mxu0 0.0
    %3058 = vmatpush1.xpose.msra.mxu0 0.0
    %3059 = vmatprep.subr.mxu0 0.0
    %3060 = vmatpush1.xpose.msra.mxu0 0.0
    %3061 = vmatprep.subr.mxu0 0.0
    %3062 = vmatpush1.xpose.msra.mxu0 0.0
    %3063 = vmatprep.subr.mxu0 0.0
    %3064 = vmatpush1.xpose.msra.mxu0 0.0
    %3065 = vmatprep.subr.mxu0 0.0
    %3066 = vmatpush1.xpose.msra.mxu0 0.0
    %3067 = vmatprep.subr.mxu0 0.0
    %3068 = vmatpush1.xpose.msra.mxu0 0.0
    %3069 = vmatprep.subr.mxu0 0.0
    %3070 = vmatpush1.xpose.msra.mxu0 0.0
    %3071 = vmatprep.subr.mxu0 0.0
    %3072 = vmatpush1.xpose.msra.mxu0 0.0
    %3073 = vmatprep.subr.mxu0 0.0
    %3074 = vmatpush1.xpose.msra.mxu0 0.0
    %3075 = vmatprep.subr.mxu0 0.0
    %3076 = vmatpush1.xpose.msra.mxu0 %v3049
    %3077 = vmatprep.subr.mxu0 0.0
    %3078 = vmatpush1.xpose.msra.mxu0 %v3047
    %3079 = vmatprep.subr.mxu0 0.0
    %3080 = vmatpush1.xpose.msra.mxu0 %v3045
    %3081 = vmatprep.subr.mxu0 0.0
    %3082 = vmatpush1.xpose.msra.mxu0 %v3043
    %3083 = vmatprep.subr.mxu0 0.0
    %3084 = vmatpush2.xpose.msra.mxu0 0.0
    %3085 = vmatprep.subr.mxu0 0.0
    %3086 = vmatpush2.xpose.msra.mxu0 0.0
    %3087 = vmatprep.subr.mxu0 0.0
    %3088 = vmatpush2.xpose.msra.mxu0 0.0
    %3089 = vmatprep.subr.mxu0 0.0
    %3090 = vmatpush2.xpose.msra.mxu0 0.0
    %3091 = vmatprep.subr.mxu0 0.0
    %3092 = vmatpush2.xpose.msra.mxu0 0.0
    %3093 = vmatprep.subr.mxu0 0.0
    %3094 = vmatpush2.xpose.msra.mxu0 0.0
    %3095 = vmatprep.subr.mxu0 0.0
    %3096 = vmatpush2.xpose.msra.mxu0 0.0
    %3097 = vmatprep.subr.mxu0 0.0
    %3098 = vmatpush2.xpose.msra.mxu0 0.0
    %3099 = vmatprep.subr.mxu0 0.0
    %3100 = vmatpush2.xpose.msra.mxu0 0.0
    %3101 = vmatprep.subr.mxu0 0.0
    %3102 = vmatpush2.xpose.msra.mxu0 0.0
    %3103 = vmatprep.subr.mxu0 0.0
    %3104 = vmatpush2.xpose.msra.mxu0 0.0
    %3105 = vmatprep.subr.mxu0 0.0
    %3106 = vmatpush2.xpose.msra.mxu0 0.0
    %3107 = vmatprep.subr.mxu0 0.0
    %3108 = vmatpush2.xpose.msra.mxu0 0.0
    %3109 = vmatprep.subr.mxu0 0.0
    %3110 = vmatpush2.xpose.msra.mxu0 0.0
    %3111 = vmatprep.subr.mxu0 0.0
    %3112 = vmatpush2.xpose.msra.mxu0 0.0
    %3113 = vmatprep.subr.mxu0 0.0
    %3114 = vmatpush2.xpose.msra.mxu0 0.0
    %3115 = vmatprep.mubr.f32.mxu0 0.0
    %3116 = vmatmul.mubr.f32.gmra.mxu0 %v3035
    %v3117 = vpop.f32.mrf.mxu0
    %v3118 = vadd.f32 %v387, %v3117
    %v3119 = vpop.f32.mrf.mxu0
    %3120 = vmatprep.mubr.f32.mxu0 0.0
    %3121 = vmatmul.mubr.f32.gmra.mxu0 %v3037
    %v3122 = vpop.f32.mrf.mxu0
    %v3123 = vadd.f32 %v389, %v3122
    %v3124 = vpop.f32.mrf.mxu0
    %3125 = vmatprep.mubr.f32.mxu0 0.0
    %3126 = vmatmul.mubr.f32.gmra.mxu0 %v3039
    %v3127 = vpop.f32.mrf.mxu0
    %v3128 = vadd.f32 %v391, %v3127
    %v3129 = vpop.f32.mrf.mxu0
    %3130 = vmatprep.mubr.f32.mxu0 0.0
    %3131 = vmatmul.mubr.f32.gmra.mxu0 %v3041
    %v3132 = vpop.f32.mrf.mxu0
    %v3133 = vadd.f32 %v393, %v3132
    %v3134 = vpop.f32.mrf.mxu0
    %3135 = vdwg.mxu0
    %v3136 = vsel %vm230, %v3118, -inf
    %3137 = vmax.xlane.f32.xlu0 %v3136
    %v3138 = vpop.xlane.xlu0 %3137
    %v3139 = vsel %vm230, %v3123, -inf
    %3140 = vmax.xlane.f32.xlu0 %v3139
    %v3141 = vpop.xlane.xlu0 %3140
    %v3142 = vsel %vm230, %v3128, -inf
    %3143 = vmax.xlane.f32.xlu0 %v3142
    %v3144 = vpop.xlane.xlu0 %3143
    %v3145 = vsel %vm230, %v3133, -inf
    %3146 = vmax.xlane.f32.xlu0 %v3145
    %v3147 = vpop.xlane.xlu0 %3146
    %v3148 = vsub.f32 %v3118, %v3138
    %v3149 = vsub.f32 %v3123, %v3141
    %v3150 = vsub.f32 %v3128, %v3144
    %v3151 = vsub.f32 %v3133, %v3147
    %v3152 = vmul.f32 %v3148, 1.442695
    %v3153 = vpow.pop %v3152
    %v3154 = vmul.f32 %v3149, 1.442695
    %v3155 = vpow.pop %v3154
    %v3156 = vmul.f32 %v3150, 1.442695
    %v3157 = vpow.pop %v3156
    %v3158 = vmul.f32 %v3151, 1.442695
    %v3159 = vpow.pop %v3158
    %v3160 = vsel %vm230, %v3153, 0.0
    %3161 = vadd.xlane.f32.xlu0 %v3160
    %v3162 = vpop.xlane.xlu0 %3161
    %v3163 = vsel %vm230, %v3155, 0.0
    %3164 = vadd.xlane.f32.xlu0 %v3163
    %v3165 = vpop.xlane.xlu0 %3164
    %v3166 = vsel %vm230, %v3157, 0.0
    %3167 = vadd.xlane.f32.xlu0 %v3166
    %v3168 = vpop.xlane.xlu0 %3167
    %v3169 = vsel %vm230, %v3159, 0.0
    %3170 = vadd.xlane.f32.xlu0 %v3169
    %v3171 = vpop.xlane.xlu0 %3170
    %v3172 = vrcp.pop %v3162
    %v3173 = vrcp.pop %v3165
    %v3174 = vrcp.pop %v3168
    %v3175 = vrcp.pop %v3171
    %v3176 = vmul.f32 %v3153, %v3172
    %v3177 = vmul.f32 %v3155, %v3173
    %v3178 = vmul.f32 %v3157, %v3174
    %v3179 = vmul.f32 %v3159, %v3175
    %3180 = vrot.lane.b32.xlu0 %v2262, 48
    %v3181 = vpop.permute.xlu0 %3180
    %3182 = vrot.lane.b32.xlu0 %v2265, 48
    %v3183 = vpop.permute.xlu0 %3182
    %3184 = vrot.lane.b32.xlu0 %v2270, 48
    %v3185 = vpop.permute.xlu0 %3184
    %3186 = vrot.lane.b32.xlu0 %v2273, 48
    %v3187 = vpop.permute.xlu0 %3186
    %v3193 = vsel %vm230, %v3176, 0
    %v3196 = vsel %vm230, %v3177, 0
    %v3199 = vsel %vm230, %v3178, 0
    %v3202 = vsel %vm230, %v3179, 0
    %3204 = vmatprep.subr.mxu0 0.0
    %3205 = vmatpush1.msra.mxu0 0.0
    %3206 = vmatprep.subr.mxu0 0.0
    %3207 = vmatpush1.msra.mxu0 0.0
    %3208 = vmatprep.subr.mxu0 0.0
    %3209 = vmatpush1.msra.mxu0 0.0
    %3210 = vmatprep.subr.mxu0 0.0
    %3211 = vmatpush1.msra.mxu0 0.0
    %3212 = vmatprep.subr.mxu0 0.0
    %3213 = vmatpush1.msra.mxu0 0.0
    %3214 = vmatprep.subr.mxu0 0.0
    %3215 = vmatpush1.msra.mxu0 0.0
    %3216 = vmatprep.subr.mxu0 0.0
    %3217 = vmatpush1.msra.mxu0 0.0
    %3218 = vmatprep.subr.mxu0 0.0
    %3219 = vmatpush1.msra.mxu0 0.0
    %3220 = vmatprep.subr.mxu0 0.0
    %3221 = vmatpush1.msra.mxu0 0.0
    %3222 = vmatprep.subr.mxu0 0.0
    %3223 = vmatpush1.msra.mxu0 0.0
    %3224 = vmatprep.subr.mxu0 0.0
    %3225 = vmatpush1.msra.mxu0 0.0
    %3226 = vmatprep.subr.mxu0 0.0
    %3227 = vmatpush1.msra.mxu0 0.0
    %3228 = vmatprep.subr.mxu0 0.0
    %3229 = vmatpush1.msra.mxu0 %v3187
    %3230 = vmatprep.subr.mxu0 0.0
    %3231 = vmatpush1.msra.mxu0 %v3185
    %3232 = vmatprep.subr.mxu0 0.0
    %3233 = vmatpush1.msra.mxu0 %v3183
    %3234 = vmatprep.subr.mxu0 0.0
    %3235 = vmatpush1.msra.mxu0 %v3181
    %3236 = vmatprep.subr.mxu0 0.0
    %3237 = vmatpush2.msra.mxu0 0.0
    %3238 = vmatprep.subr.mxu0 0.0
    %3239 = vmatpush2.msra.mxu0 0.0
    %3240 = vmatprep.subr.mxu0 0.0
    %3241 = vmatpush2.msra.mxu0 0.0
    %3242 = vmatprep.subr.mxu0 0.0
    %3243 = vmatpush2.msra.mxu0 0.0
    %3244 = vmatprep.subr.mxu0 0.0
    %3245 = vmatpush2.msra.mxu0 0.0
    %3246 = vmatprep.subr.mxu0 0.0
    %3247 = vmatpush2.msra.mxu0 0.0
    %3248 = vmatprep.subr.mxu0 0.0
    %3249 = vmatpush2.msra.mxu0 0.0
    %3250 = vmatprep.subr.mxu0 0.0
    %3251 = vmatpush2.msra.mxu0 0.0
    %3252 = vmatprep.subr.mxu0 0.0
    %3253 = vmatpush2.msra.mxu0 0.0
    %3254 = vmatprep.subr.mxu0 0.0
    %3255 = vmatpush2.msra.mxu0 0.0
    %3256 = vmatprep.subr.mxu0 0.0
    %3257 = vmatpush2.msra.mxu0 0.0
    %3258 = vmatprep.subr.mxu0 0.0
    %3259 = vmatpush2.msra.mxu0 0.0
    %3260 = vmatprep.subr.mxu0 0.0
    %3261 = vmatpush2.msra.mxu0 0.0
    %3262 = vmatprep.subr.mxu0 0.0
    %3263 = vmatpush2.msra.mxu0 0.0
    %3264 = vmatprep.subr.mxu0 0.0
    %3265 = vmatpush2.msra.mxu0 0.0
    %3266 = vmatprep.subr.mxu0 0.0
    %3267 = vmatpush2.msra.mxu0 0.0
    %3268 = vmatprep.mubr.f32.mxu0 0.0
    %3269 = vmatmul.mubr.f32.gmra.mxu0 %v3193
    %v3270 = vpop.f32.mrf.mxu0
    %v3271 = vadd.f32 0.0, %v3270
    %v3272 = vpop.f32.mrf.mxu0
    %3273 = vmatprep.mubr.f32.mxu0 0.0
    %3274 = vmatmul.mubr.f32.gmra.mxu0 %v3196
    %v3275 = vpop.f32.mrf.mxu0
    %v3276 = vadd.f32 0.0, %v3275
    %v3277 = vpop.f32.mrf.mxu0
    %3278 = vmatprep.mubr.f32.mxu0 0.0
    %3279 = vmatmul.mubr.f32.gmra.mxu0 %v3199
    %v3280 = vpop.f32.mrf.mxu0
    %v3281 = vadd.f32 0.0, %v3280
    %v3282 = vpop.f32.mrf.mxu0
    %3283 = vmatprep.mubr.f32.mxu0 0.0
    %3284 = vmatmul.mubr.f32.gmra.mxu0 %v3202
    %v3285 = vpop.f32.mrf.mxu0
    %v3286 = vadd.f32 0.0, %v3285
    %v3287 = vpop.f32.mrf.mxu0
    %3288 = vdwg.mxu0
    %v3290 = vsel %vm398, %v3271, 0
    %v3293 = vsel %vm398, %v3276, 0
    %v3296 = vsel %vm398, %v3281, 0
    %v3299 = vsel %vm398, %v3286, 0
    %3301 = vmatprep.subr.mxu0 0.0
    %3302 = vmatpush1.msra.mxu0 0.0
    %3303 = vmatprep.subr.mxu0 0.0
    %3304 = vmatpush1.msra.mxu0 0.0
    %3305 = vmatprep.subr.mxu0 0.0
    %3306 = vmatpush1.msra.mxu0 0.0
    %3307 = vmatprep.subr.mxu0 0.0
    %3308 = vmatpush1.msra.mxu0 0.0
    %3309 = vmatprep.subr.mxu0 0.0
    %3310 = vmatpush1.msra.mxu0 0.0
    %3311 = vmatprep.subr.mxu0 0.0
    %3312 = vmatpush1.msra.mxu0 0.0
    %3313 = vmatprep.subr.mxu0 0.0
    %3314 = vmatpush1.msra.mxu0 0.0
    %3315 = vmatprep.subr.mxu0 0.0
    %3316 = vmatpush1.msra.mxu0 0.0
    %3317 = vmatprep.subr.mxu0 0.0
    %3318 = vmatpush1.msra.mxu0 0.0
    %3319 = vmatprep.subr.mxu0 0.0
    %3320 = vmatpush1.msra.mxu0 0.0
    %3321 = vmatprep.subr.mxu0 0.0
    %3322 = vmatpush1.msra.mxu0 0.0
    %3323 = vmatprep.subr.mxu0 0.0
    %3324 = vmatpush1.msra.mxu0 0.0
    %3325 = vmatprep.subr.mxu0 0.0
    %3326 = vmatpush1.msra.mxu0 0.0
    %3327 = vmatprep.subr.mxu0 0.0
    %3328 = vmatpush1.msra.mxu0 0.0
    %3329 = vmatprep.subr.mxu0 0.0
    %3330 = vmatpush1.msra.mxu0 0.0
    %3331 = vmatprep.subr.mxu0 0.0
    %3332 = vmatpush1.msra.mxu0 %v2279
    %3333 = vmatprep.subr.mxu0 0.0
    %3334 = vmatpush2.msra.mxu0 0.0
    %3335 = vmatprep.subr.mxu0 0.0
    %3336 = vmatpush2.msra.mxu0 0.0
    %3337 = vmatprep.subr.mxu0 0.0
    %3338 = vmatpush2.msra.mxu0 0.0
    %3339 = vmatprep.subr.mxu0 0.0
    %3340 = vmatpush2.msra.mxu0 0.0
    %3341 = vmatprep.subr.mxu0 0.0
    %3342 = vmatpush2.msra.mxu0 0.0
    %3343 = vmatprep.subr.mxu0 0.0
    %3344 = vmatpush2.msra.mxu0 0.0
    %3345 = vmatprep.subr.mxu0 0.0
    %3346 = vmatpush2.msra.mxu0 0.0
    %3347 = vmatprep.subr.mxu0 0.0
    %3348 = vmatpush2.msra.mxu0 0.0
    %3349 = vmatprep.subr.mxu0 0.0
    %3350 = vmatpush2.msra.mxu0 0.0
    %3351 = vmatprep.subr.mxu0 0.0
    %3352 = vmatpush2.msra.mxu0 0.0
    %3353 = vmatprep.subr.mxu0 0.0
    %3354 = vmatpush2.msra.mxu0 0.0
    %3355 = vmatprep.subr.mxu0 0.0
    %3356 = vmatpush2.msra.mxu0 0.0
    %3357 = vmatprep.subr.mxu0 0.0
    %3358 = vmatpush2.msra.mxu0 0.0
    %3359 = vmatprep.subr.mxu0 0.0
    %3360 = vmatpush2.msra.mxu0 0.0
    %3361 = vmatprep.subr.mxu0 0.0
    %3362 = vmatpush2.msra.mxu0 0.0
    %3363 = vmatprep.subr.mxu0 0.0
    %3364 = vmatpush2.msra.mxu0 0.0
    %3365 = vmatprep.mubr.f32.mxu0 0.0
    %3366 = vmatmul.mubr.f32.gmra.mxu0 %v3290
    %v3367 = vpop.f32.mrf.mxu0
    %v3368 = vadd.f32 0.0, %v3367
    %v3369 = vpop.f32.mrf.mxu0
    %3370 = vmatprep.mubr.f32.mxu0 0.0
    %3371 = vmatmul.mubr.f32.gmra.mxu0 %v3293
    %v3372 = vpop.f32.mrf.mxu0
    %v3373 = vadd.f32 0.0, %v3372
    %v3374 = vpop.f32.mrf.mxu0
    %3375 = vmatprep.mubr.f32.mxu0 0.0
    %3376 = vmatmul.mubr.f32.gmra.mxu0 %v3296
    %v3377 = vpop.f32.mrf.mxu0
    %v3378 = vadd.f32 0.0, %v3377
    %v3379 = vpop.f32.mrf.mxu0
    %3380 = vmatprep.mubr.f32.mxu0 0.0
    %3381 = vmatmul.mubr.f32.gmra.mxu0 %v3299
    %v3382 = vpop.f32.mrf.mxu0
    %v3383 = vadd.f32 0.0, %v3382
    %v3384 = vpop.f32.mrf.mxu0
    %3385 = vdwg.mxu0
    %v3386 = vadd.f32 %v3001, %v3368
    %v3387 = vadd.f32 %v3006, %v3373
    %v3388 = vadd.f32 %v3011, %v3378
    %v3389 = vadd.f32 %v3016, %v3383
    %3390 = vrot.lane.b32.xlu0 %v2281, 104
    %v3391 = vpop.permute.xlu0 %3390
    %3392 = vrot.lane.b32.xlu0 %v2282, 104
    %v3393 = vpop.permute.xlu0 %3392
    %3394 = vrot.lane.b32.xlu0 %v2283, 104
    %v3395 = vpop.permute.xlu0 %3394
    %3396 = vrot.lane.b32.xlu0 %v2284, 104
    %v3397 = vpop.permute.xlu0 %3396
    %3398 = vrot.lane.b32.xlu0 %v2262, 72
    %v3399 = vpop.permute.xlu0 %3398
    %3400 = vrot.lane.b32.xlu0 %v2265, 72
    %v3401 = vpop.permute.xlu0 %3400
    %3402 = vrot.lane.b32.xlu0 %v2270, 72
    %v3403 = vpop.permute.xlu0 %3402
    %3404 = vrot.lane.b32.xlu0 %v2273, 72
    %v3405 = vpop.permute.xlu0 %3404
    %v3406 = vsel %vm398, %v3391, 0
    %v3408 = vsel %vm398, %v3393, 0
    %v3410 = vsel %vm398, %v3395, 0
    %v3412 = vsel %vm398, %v3397, 0
    %v3414 = vsel %vm398, %v3399, 0
    %v3416 = vsel %vm398, %v3401, 0
    %v3418 = vsel %vm398, %v3403, 0
    %v3420 = vsel %vm398, %v3405, 0
    %3422 = vmatprep.subr.mxu0 0.0
    %3423 = vmatpush1.xpose.msra.mxu0 0.0
    %3424 = vmatprep.subr.mxu0 0.0
    %3425 = vmatpush1.xpose.msra.mxu0 0.0
    %3426 = vmatprep.subr.mxu0 0.0
    %3427 = vmatpush1.xpose.msra.mxu0 0.0
    %3428 = vmatprep.subr.mxu0 0.0
    %3429 = vmatpush1.xpose.msra.mxu0 0.0
    %3430 = vmatprep.subr.mxu0 0.0
    %3431 = vmatpush1.xpose.msra.mxu0 0.0
    %3432 = vmatprep.subr.mxu0 0.0
    %3433 = vmatpush1.xpose.msra.mxu0 0.0
    %3434 = vmatprep.subr.mxu0 0.0
    %3435 = vmatpush1.xpose.msra.mxu0 0.0
    %3436 = vmatprep.subr.mxu0 0.0
    %3437 = vmatpush1.xpose.msra.mxu0 0.0
    %3438 = vmatprep.subr.mxu0 0.0
    %3439 = vmatpush1.xpose.msra.mxu0 0.0
    %3440 = vmatprep.subr.mxu0 0.0
    %3441 = vmatpush1.xpose.msra.mxu0 0.0
    %3442 = vmatprep.subr.mxu0 0.0
    %3443 = vmatpush1.xpose.msra.mxu0 0.0
    %3444 = vmatprep.subr.mxu0 0.0
    %3445 = vmatpush1.xpose.msra.mxu0 0.0
    %3446 = vmatprep.subr.mxu0 0.0
    %3447 = vmatpush1.xpose.msra.mxu0 %v3420
    %3448 = vmatprep.subr.mxu0 0.0
    %3449 = vmatpush1.xpose.msra.mxu0 %v3418
    %3450 = vmatprep.subr.mxu0 0.0
    %3451 = vmatpush1.xpose.msra.mxu0 %v3416
    %3452 = vmatprep.subr.mxu0 0.0
    %3453 = vmatpush1.xpose.msra.mxu0 %v3414
    %3454 = vmatprep.subr.mxu0 0.0
    %3455 = vmatpush2.xpose.msra.mxu0 0.0
    %3456 = vmatprep.subr.mxu0 0.0
    %3457 = vmatpush2.xpose.msra.mxu0 0.0
    %3458 = vmatprep.subr.mxu0 0.0
    %3459 = vmatpush2.xpose.msra.mxu0 0.0
    %3460 = vmatprep.subr.mxu0 0.0
    %3461 = vmatpush2.xpose.msra.mxu0 0.0
    %3462 = vmatprep.subr.mxu0 0.0
    %3463 = vmatpush2.xpose.msra.mxu0 0.0
    %3464 = vmatprep.subr.mxu0 0.0
    %3465 = vmatpush2.xpose.msra.mxu0 0.0
    %3466 = vmatprep.subr.mxu0 0.0
    %3467 = vmatpush2.xpose.msra.mxu0 0.0
    %3468 = vmatprep.subr.mxu0 0.0
    %3469 = vmatpush2.xpose.msra.mxu0 0.0
    %3470 = vmatprep.subr.mxu0 0.0
    %3471 = vmatpush2.xpose.msra.mxu0 0.0
    %3472 = vmatprep.subr.mxu0 0.0
    %3473 = vmatpush2.xpose.msra.mxu0 0.0
    %3474 = vmatprep.subr.mxu0 0.0
    %3475 = vmatpush2.xpose.msra.mxu0 0.0
    %3476 = vmatprep.subr.mxu0 0.0
    %3477 = vmatpush2.xpose.msra.mxu0 0.0
    %3478 = vmatprep.subr.mxu0 0.0
    %3479 = vmatpush2.xpose.msra.mxu0 0.0
    %3480 = vmatprep.subr.mxu0 0.0
    %3481 = vmatpush2.xpose.msra.mxu0 0.0
    %3482 = vmatprep.subr.mxu0 0.0
    %3483 = vmatpush2.xpose.msra.mxu0 0.0
    %3484 = vmatprep.subr.mxu0 0.0
    %3485 = vmatpush2.xpose.msra.mxu0 0.0
    %3486 = vmatprep.mubr.f32.mxu0 0.0
    %3487 = vmatmul.mubr.f32.gmra.mxu0 %v3406
    %v3488 = vpop.f32.mrf.mxu0
    %v3489 = vadd.f32 %v387, %v3488
    %v3490 = vpop.f32.mrf.mxu0
    %3491 = vmatprep.mubr.f32.mxu0 0.0
    %3492 = vmatmul.mubr.f32.gmra.mxu0 %v3408
    %v3493 = vpop.f32.mrf.mxu0
    %v3494 = vadd.f32 %v389, %v3493
    %v3495 = vpop.f32.mrf.mxu0
    %3496 = vmatprep.mubr.f32.mxu0 0.0
    %3497 = vmatmul.mubr.f32.gmra.mxu0 %v3410
    %v3498 = vpop.f32.mrf.mxu0
    %v3499 = vadd.f32 %v391, %v3498
    %v3500 = vpop.f32.mrf.mxu0
    %3501 = vmatprep.mubr.f32.mxu0 0.0
    %3502 = vmatmul.mubr.f32.gmra.mxu0 %v3412
    %v3503 = vpop.f32.mrf.mxu0
    %v3504 = vadd.f32 %v393, %v3503
    %v3505 = vpop.f32.mrf.mxu0
    %3506 = vdwg.mxu0
    %v3507 = vsel %vm230, %v3489, -inf
    %3508 = vmax.xlane.f32.xlu0 %v3507
    %v3509 = vpop.xlane.xlu0 %3508
    %v3510 = vsel %vm230, %v3494, -inf
    %3511 = vmax.xlane.f32.xlu0 %v3510
    %v3512 = vpop.xlane.xlu0 %3511
    %v3513 = vsel %vm230, %v3499, -inf
    %3514 = vmax.xlane.f32.xlu0 %v3513
    %v3515 = vpop.xlane.xlu0 %3514
    %v3516 = vsel %vm230, %v3504, -inf
    %3517 = vmax.xlane.f32.xlu0 %v3516
    %v3518 = vpop.xlane.xlu0 %3517
    %v3519 = vsub.f32 %v3489, %v3509
    %v3520 = vsub.f32 %v3494, %v3512
    %v3521 = vsub.f32 %v3499, %v3515
    %v3522 = vsub.f32 %v3504, %v3518
    %v3523 = vmul.f32 %v3519, 1.442695
    %v3524 = vpow.pop %v3523
    %v3525 = vmul.f32 %v3520, 1.442695
    %v3526 = vpow.pop %v3525
    %v3527 = vmul.f32 %v3521, 1.442695
    %v3528 = vpow.pop %v3527
    %v3529 = vmul.f32 %v3522, 1.442695
    %v3530 = vpow.pop %v3529
    %v3531 = vsel %vm230, %v3524, 0.0
    %3532 = vadd.xlane.f32.xlu0 %v3531
    %v3533 = vpop.xlane.xlu0 %3532
    %v3534 = vsel %vm230, %v3526, 0.0
    %3535 = vadd.xlane.f32.xlu0 %v3534
    %v3536 = vpop.xlane.xlu0 %3535
    %v3537 = vsel %vm230, %v3528, 0.0
    %3538 = vadd.xlane.f32.xlu0 %v3537
    %v3539 = vpop.xlane.xlu0 %3538
    %v3540 = vsel %vm230, %v3530, 0.0
    %3541 = vadd.xlane.f32.xlu0 %v3540
    %v3542 = vpop.xlane.xlu0 %3541
    %v3543 = vrcp.pop %v3533
    %v3544 = vrcp.pop %v3536
    %v3545 = vrcp.pop %v3539
    %v3546 = vrcp.pop %v3542
    %v3547 = vmul.f32 %v3524, %v3543
    %v3548 = vmul.f32 %v3526, %v3544
    %v3549 = vmul.f32 %v3528, %v3545
    %v3550 = vmul.f32 %v3530, %v3546
    %3551 = vrot.lane.b32.xlu0 %v2262, 40
    %v3552 = vpop.permute.xlu0 %3551
    %3553 = vrot.lane.b32.xlu0 %v2265, 40
    %v3554 = vpop.permute.xlu0 %3553
    %3555 = vrot.lane.b32.xlu0 %v2270, 40
    %v3556 = vpop.permute.xlu0 %3555
    %3557 = vrot.lane.b32.xlu0 %v2273, 40
    %v3558 = vpop.permute.xlu0 %3557
    %v3564 = vsel %vm230, %v3547, 0
    %v3567 = vsel %vm230, %v3548, 0
    %v3570 = vsel %vm230, %v3549, 0
    %v3573 = vsel %vm230, %v3550, 0
    %3575 = vmatprep.subr.mxu0 0.0
    %3576 = vmatpush1.msra.mxu0 0.0
    %3577 = vmatprep.subr.mxu0 0.0
    %3578 = vmatpush1.msra.mxu0 0.0
    %3579 = vmatprep.subr.mxu0 0.0
    %3580 = vmatpush1.msra.mxu0 0.0
    %3581 = vmatprep.subr.mxu0 0.0
    %3582 = vmatpush1.msra.mxu0 0.0
    %3583 = vmatprep.subr.mxu0 0.0
    %3584 = vmatpush1.msra.mxu0 0.0
    %3585 = vmatprep.subr.mxu0 0.0
    %3586 = vmatpush1.msra.mxu0 0.0
    %3587 = vmatprep.subr.mxu0 0.0
    %3588 = vmatpush1.msra.mxu0 0.0
    %3589 = vmatprep.subr.mxu0 0.0
    %3590 = vmatpush1.msra.mxu0 0.0
    %3591 = vmatprep.subr.mxu0 0.0
    %3592 = vmatpush1.msra.mxu0 0.0
    %3593 = vmatprep.subr.mxu0 0.0
    %3594 = vmatpush1.msra.mxu0 0.0
    %3595 = vmatprep.subr.mxu0 0.0
    %3596 = vmatpush1.msra.mxu0 0.0
    %3597 = vmatprep.subr.mxu0 0.0
    %3598 = vmatpush1.msra.mxu0 0.0
    %3599 = vmatprep.subr.mxu0 0.0
    %3600 = vmatpush1.msra.mxu0 %v3558
    %3601 = vmatprep.subr.mxu0 0.0
    %3602 = vmatpush1.msra.mxu0 %v3556
    %3603 = vmatprep.subr.mxu0 0.0
    %3604 = vmatpush1.msra.mxu0 %v3554
    %3605 = vmatprep.subr.mxu0 0.0
    %3606 = vmatpush1.msra.mxu0 %v3552
    %3607 = vmatprep.subr.mxu0 0.0
    %3608 = vmatpush2.msra.mxu0 0.0
    %3609 = vmatprep.subr.mxu0 0.0
    %3610 = vmatpush2.msra.mxu0 0.0
    %3611 = vmatprep.subr.mxu0 0.0
    %3612 = vmatpush2.msra.mxu0 0.0
    %3613 = vmatprep.subr.mxu0 0.0
    %3614 = vmatpush2.msra.mxu0 0.0
    %3615 = vmatprep.subr.mxu0 0.0
    %3616 = vmatpush2.msra.mxu0 0.0
    %3617 = vmatprep.subr.mxu0 0.0
    %3618 = vmatpush2.msra.mxu0 0.0
    %3619 = vmatprep.subr.mxu0 0.0
    %3620 = vmatpush2.msra.mxu0 0.0
    %3621 = vmatprep.subr.mxu0 0.0
    %3622 = vmatpush2.msra.mxu0 0.0
    %3623 = vmatprep.subr.mxu0 0.0
    %3624 = vmatpush2.msra.mxu0 0.0
    %3625 = vmatprep.subr.mxu0 0.0
    %3626 = vmatpush2.msra.mxu0 0.0
    %3627 = vmatprep.subr.mxu0 0.0
    %3628 = vmatpush2.msra.mxu0 0.0
    %3629 = vmatprep.subr.mxu0 0.0
    %3630 = vmatpush2.msra.mxu0 0.0
    %3631 = vmatprep.subr.mxu0 0.0
    %3632 = vmatpush2.msra.mxu0 0.0
    %3633 = vmatprep.subr.mxu0 0.0
    %3634 = vmatpush2.msra.mxu0 0.0
    %3635 = vmatprep.subr.mxu0 0.0
    %3636 = vmatpush2.msra.mxu0 0.0
    %3637 = vmatprep.subr.mxu0 0.0
    %3638 = vmatpush2.msra.mxu0 0.0
    %3639 = vmatprep.mubr.f32.mxu0 0.0
    %3640 = vmatmul.mubr.f32.gmra.mxu0 %v3564
    %v3641 = vpop.f32.mrf.mxu0
    %v3642 = vadd.f32 0.0, %v3641
    %v3643 = vpop.f32.mrf.mxu0
    %3644 = vmatprep.mubr.f32.mxu0 0.0
    %3645 = vmatmul.mubr.f32.gmra.mxu0 %v3567
    %v3646 = vpop.f32.mrf.mxu0
    %v3647 = vadd.f32 0.0, %v3646
    %v3648 = vpop.f32.mrf.mxu0
    %3649 = vmatprep.mubr.f32.mxu0 0.0
    %3650 = vmatmul.mubr.f32.gmra.mxu0 %v3570
    %v3651 = vpop.f32.mrf.mxu0
    %v3652 = vadd.f32 0.0, %v3651
    %v3653 = vpop.f32.mrf.mxu0
    %3654 = vmatprep.mubr.f32.mxu0 0.0
    %3655 = vmatmul.mubr.f32.gmra.mxu0 %v3573
    %v3656 = vpop.f32.mrf.mxu0
    %v3657 = vadd.f32 0.0, %v3656
    %v3658 = vpop.f32.mrf.mxu0
    %3659 = vdwg.mxu0
    %v3661 = vsel %vm398, %v3642, 0
    %v3664 = vsel %vm398, %v3647, 0
    %v3667 = vsel %vm398, %v3652, 0
    %v3670 = vsel %vm398, %v3657, 0
    %3672 = vmatprep.subr.mxu0 0.0
    %3673 = vmatpush1.msra.mxu0 0.0
    %3674 = vmatprep.subr.mxu0 0.0
    %3675 = vmatpush1.msra.mxu0 0.0
    %3676 = vmatprep.subr.mxu0 0.0
    %3677 = vmatpush1.msra.mxu0 0.0
    %3678 = vmatprep.subr.mxu0 0.0
    %3679 = vmatpush1.msra.mxu0 0.0
    %3680 = vmatprep.subr.mxu0 0.0
    %3681 = vmatpush1.msra.mxu0 0.0
    %3682 = vmatprep.subr.mxu0 0.0
    %3683 = vmatpush1.msra.mxu0 0.0
    %3684 = vmatprep.subr.mxu0 0.0
    %3685 = vmatpush1.msra.mxu0 0.0
    %3686 = vmatprep.subr.mxu0 0.0
    %3687 = vmatpush1.msra.mxu0 0.0
    %3688 = vmatprep.subr.mxu0 0.0
    %3689 = vmatpush1.msra.mxu0 0.0
    %3690 = vmatprep.subr.mxu0 0.0
    %3691 = vmatpush1.msra.mxu0 0.0
    %3692 = vmatprep.subr.mxu0 0.0
    %3693 = vmatpush1.msra.mxu0 0.0
    %3694 = vmatprep.subr.mxu0 0.0
    %3695 = vmatpush1.msra.mxu0 0.0
    %3696 = vmatprep.subr.mxu0 0.0
    %3697 = vmatpush1.msra.mxu0 0.0
    %3698 = vmatprep.subr.mxu0 0.0
    %3699 = vmatpush1.msra.mxu0 0.0
    %3700 = vmatprep.subr.mxu0 0.0
    %3701 = vmatpush1.msra.mxu0 0.0
    %3702 = vmatprep.subr.mxu0 0.0
    %3703 = vmatpush1.msra.mxu0 %v2280
    %3704 = vmatprep.subr.mxu0 0.0
    %3705 = vmatpush2.msra.mxu0 0.0
    %3706 = vmatprep.subr.mxu0 0.0
    %3707 = vmatpush2.msra.mxu0 0.0
    %3708 = vmatprep.subr.mxu0 0.0
    %3709 = vmatpush2.msra.mxu0 0.0
    %3710 = vmatprep.subr.mxu0 0.0
    %3711 = vmatpush2.msra.mxu0 0.0
    %3712 = vmatprep.subr.mxu0 0.0
    %3713 = vmatpush2.msra.mxu0 0.0
    %3714 = vmatprep.subr.mxu0 0.0
    %3715 = vmatpush2.msra.mxu0 0.0
    %3716 = vmatprep.subr.mxu0 0.0
    %3717 = vmatpush2.msra.mxu0 0.0
    %3718 = vmatprep.subr.mxu0 0.0
    %3719 = vmatpush2.msra.mxu0 0.0
    %3720 = vmatprep.subr.mxu0 0.0
    %3721 = vmatpush2.msra.mxu0 0.0
    %3722 = vmatprep.subr.mxu0 0.0
    %3723 = vmatpush2.msra.mxu0 0.0
    %3724 = vmatprep.subr.mxu0 0.0
    %3725 = vmatpush2.msra.mxu0 0.0
    %3726 = vmatprep.subr.mxu0 0.0
    %3727 = vmatpush2.msra.mxu0 0.0
    %3728 = vmatprep.subr.mxu0 0.0
    %3729 = vmatpush2.msra.mxu0 0.0
    %3730 = vmatprep.subr.mxu0 0.0
    %3731 = vmatpush2.msra.mxu0 0.0
    %3732 = vmatprep.subr.mxu0 0.0
    %3733 = vmatpush2.msra.mxu0 0.0
    %3734 = vmatprep.subr.mxu0 0.0
    %3735 = vmatpush2.msra.mxu0 0.0
    %3736 = vmatprep.mubr.f32.mxu0 0.0
    %3737 = vmatmul.mubr.f32.gmra.mxu0 %v3661
    %v3738 = vpop.f32.mrf.mxu0
    %v3739 = vadd.f32 0.0, %v3738
    %v3740 = vpop.f32.mrf.mxu0
    %3741 = vmatprep.mubr.f32.mxu0 0.0
    %3742 = vmatmul.mubr.f32.gmra.mxu0 %v3664
    %v3743 = vpop.f32.mrf.mxu0
    %v3744 = vadd.f32 0.0, %v3743
    %v3745 = vpop.f32.mrf.mxu0
    %3746 = vmatprep.mubr.f32.mxu0 0.0
    %3747 = vmatmul.mubr.f32.gmra.mxu0 %v3667
    %v3748 = vpop.f32.mrf.mxu0
    %v3749 = vadd.f32 0.0, %v3748
    %v3750 = vpop.f32.mrf.mxu0
    %3751 = vmatprep.mubr.f32.mxu0 0.0
    %3752 = vmatmul.mubr.f32.gmra.mxu0 %v3670
    %v3753 = vpop.f32.mrf.mxu0
    %v3754 = vadd.f32 0.0, %v3753
    %v3755 = vpop.f32.mrf.mxu0
    %3756 = vdwg.mxu0
    %v3757 = vadd.f32 %v3386, %v3739
    %v3758 = vadd.f32 %v3387, %v3744
    %v3759 = vadd.f32 %v3388, %v3749
    %v3760 = vadd.f32 %v3389, %v3754
    %v3761 = vadd.f32 %v2141, %v3757
    %v3762 = vadd.f32 %v2142, %v3758
    %v3763 = vadd.f32 %v2143, %v3759
    %v3764 = vadd.f32 %v2144, %v3760
    %v3765 = vld [vmem:[%s1 + $0x25] sm:$0x1]
    %v3766 = vlaneseq
    %v3767 = vshrl.u32 %v3766, 7
    %v3768 = vsub.s32 0, %v3767
    %v3769 = vrot.slane %v3765, %v3768
    %v3770 = vadd.f32 %v3761, %v3769
    %v3771 = vadd.f32 %v3762, %v3769
    %v3772 = vadd.f32 %v3763, %v3769
    %v3773 = vadd.f32 %v3764, %v3769
    %v3774 = vsel %vm230, %v3770, 0.0
    %3775 = vadd.xlane.f32.xlu0 %v3774
    %v3776 = vpop.xlane.xlu0 %3775
    %v3777 = vsel %vm230, %v3771, 0.0
    %3778 = vadd.xlane.f32.xlu0 %v3777
    %v3779 = vpop.xlane.xlu0 %3778
    %v3780 = vsel %vm230, %v3772, 0.0
    %3781 = vadd.xlane.f32.xlu0 %v3780
    %v3782 = vpop.xlane.xlu0 %3781
    %v3783 = vsel %vm230, %v3773, 0.0
    %3784 = vadd.xlane.f32.xlu0 %v3783
    %v3785 = vpop.xlane.xlu0 %3784
    %v3786 = vmul.f32 %v3776, %v243
    %v3787 = vmul.f32 %v3779, %v243
    %v3788 = vmul.f32 %v3782, %v243
    %v3789 = vmul.f32 %v3785, %v243
    %v3790 = vsub.f32 %v3770, %v3786
    %v3791 = vsub.f32 %v3771, %v3787
    %v3792 = vsub.f32 %v3772, %v3788
    %v3793 = vsub.f32 %v3773, %v3789
    %v3794 = vmul.f32 %v3790, %v3790
    %v3795 = vmul.f32 %v3791, %v3791
    %v3796 = vmul.f32 %v3792, %v3792
    %v3797 = vmul.f32 %v3793, %v3793
    %v3798 = vsel %vm230, %v3794, 0.0
    %3799 = vadd.xlane.f32.xlu0 %v3798
    %v3800 = vpop.xlane.xlu0 %3799
    %v3801 = vsel %vm230, %v3795, 0.0
    %3802 = vadd.xlane.f32.xlu0 %v3801
    %v3803 = vpop.xlane.xlu0 %3802
    %v3804 = vsel %vm230, %v3796, 0.0
    %3805 = vadd.xlane.f32.xlu0 %v3804
    %v3806 = vpop.xlane.xlu0 %3805
    %v3807 = vsel %vm230, %v3797, 0.0
    %3808 = vadd.xlane.f32.xlu0 %v3807
    %v3809 = vpop.xlane.xlu0 %3808
    %v3810 = vmul.f32 %v3800, %v243
    %v3811 = vmul.f32 %v3803, %v243
    %v3812 = vmul.f32 %v3806, %v243
    %v3813 = vmul.f32 %v3809, %v243
    %v3814 = vadd.f32 %v3810, 1e-05
    %v3815 = vadd.f32 %v3811, 1e-05
    %v3816 = vadd.f32 %v3812, 1e-05
    %v3817 = vadd.f32 %v3813, 1e-05
    %v3818 = vrsqrt.pop %v3814
    %v3819 = vrsqrt.pop %v3815
    %v3820 = vrsqrt.pop %v3816
    %v3821 = vrsqrt.pop %v3817
    %v3822 = vmul.f32 %v3790, %v3818
    %v3823 = vmul.f32 %v3791, %v3819
    %v3824 = vmul.f32 %v3792, %v3820
    %v3825 = vmul.f32 %v3793, %v3821
    %v3826 = vpack.c.bf16 %v3823, %v3822
    %v3827 = vpack.c.bf16 %v3825, %v3824
    %s3828 = scalar_lea.vmem %s5, 16
    %v3829 = vld [vmem:[%s3828] sm:$0xf]
    %v3830 = vld [vmem:[%s3828 + $0x4] sm:$0xf]
    %v3831 = vld [vmem:[%s3828 + $0x8] sm:$0xf]
    %v3832 = vld [vmem:[%s3828 + $0xc] sm:$0xf]
    %v3833 = vld [vmem:[%s1 + $0x26] sm:$0x1]
    %v3834 = vlaneseq
    %v3835 = vshrl.u32 %v3834, 7
    %v3836 = vsub.s32 0, %v3835
    %v3837 = vrot.slane %v3833, %v3836
    %v3842 = vunpack.c.l.b16 %v3829
    %v3843 = vunpack.c.l.b16 %v3830
    %v3844 = vunpack.c.l.b16 %v3831
    %v3845 = vunpack.c.l.b16 %v3832
    %v3846 = vpack.c.b16 %v3843, %v3842
    %v3847 = vpack.c.b16 %v3845, %v3844
    %v3851 = vsel %vm230, %v3826, 0
    %v3854 = vsel %vm230, %v3827, 0
    %3856 = vmatprep.subr.bf16.mxu0 0
    %3857 = vmatpush1.bf16.msra.mxu0 0
    %3858 = vmatprep.subr.bf16.mxu0 0
    %3859 = vmatpush1.bf16.msra.mxu0 0
    %3860 = vmatprep.subr.bf16.mxu0 0
    %3861 = vmatpush1.bf16.msra.mxu0 0
    %3862 = vmatprep.subr.bf16.mxu0 0
    %3863 = vmatpush1.bf16.msra.mxu0 0
    %3864 = vmatprep.subr.bf16.mxu0 0
    %3865 = vmatpush1.bf16.msra.mxu0 0
    %3866 = vmatprep.subr.bf16.mxu0 0
    %3867 = vmatpush1.bf16.msra.mxu0 0
    %3868 = vmatprep.subr.bf16.mxu0 0
    %3869 = vmatpush1.bf16.msra.mxu0 %v3847
    %3870 = vmatprep.subr.bf16.mxu0 0
    %3871 = vmatpush1.bf16.msra.mxu0 %v3846
    %3872 = vmatprep.subr.bf16.mxu0 0
    %3873 = vmatpush2.bf16.msra.mxu0 0
    %3874 = vmatprep.subr.bf16.mxu0 0
    %3875 = vmatpush2.bf16.msra.mxu0 0
    %3876 = vmatprep.subr.bf16.mxu0 0
    %3877 = vmatpush2.bf16.msra.mxu0 0
    %3878 = vmatprep.subr.bf16.mxu0 0
    %3879 = vmatpush2.bf16.msra.mxu0 0
    %3880 = vmatprep.subr.bf16.mxu0 0
    %3881 = vmatpush2.bf16.msra.mxu0 0
    %3882 = vmatprep.subr.bf16.mxu0 0
    %3883 = vmatpush2.bf16.msra.mxu0 0
    %3884 = vmatprep.subr.bf16.mxu0 0
    %3885 = vmatpush2.bf16.msra.mxu0 0
    %3886 = vmatprep.subr.bf16.mxu0 0
    %3887 = vmatpush2.bf16.msra.mxu0 0
    %3888 = vmatprep.mubr.bf16.mxu0 0
    %3889 = vmatmul.mubr.bf16.gmra.mxu0 %v3851
    %v3890 = vpop.f32.mrf.mxu0
    %v3891 = vadd.f32 %v3837, %v3890
    %v3892 = vpop.f32.mrf.mxu0
    %v3893 = vpop.f32.mrf.mxu0
    %v3894 = vadd.f32 %v3837, %v3893
    %v3895 = vpop.f32.mrf.mxu0
    %3896 = vmatprep.mubr.bf16.mxu0 0
    %3897 = vmatmul.mubr.bf16.gmra.mxu0 %v3854
    %v3898 = vpop.f32.mrf.mxu0
    %v3899 = vadd.f32 %v3837, %v3898
    %v3900 = vpop.f32.mrf.mxu0
    %v3901 = vpop.f32.mrf.mxu0
    %v3902 = vadd.f32 %v3837, %v3901
    %v3903 = vpop.f32.mrf.mxu0
    %3904 = vdwg.mxu0
    %v3905 = vmul.f32 %v3891, 0.5
    %v3906 = vmul.f32 %v3894, 0.5
    %v3907 = vmul.f32 %v3899, 0.5
    %v3908 = vmul.f32 %v3902, 0.5
    %v3909 = vmul.f32 %v3891, 0.044715
    %v3910 = vmul.f32 %v3894, 0.044715
    %v3911 = vmul.f32 %v3899, 0.044715
    %v3912 = vmul.f32 %v3902, 0.044715
    %v3913 = vmul.f32 %v3909, %v3891
    %v3914 = vmul.f32 %v3910, %v3894
    %v3915 = vmul.f32 %v3911, %v3899
    %v3916 = vmul.f32 %v3912, %v3902
    %v3917 = vmul.f32 %v3913, %v3891
    %v3918 = vmul.f32 %v3914, %v3894
    %v3919 = vmul.f32 %v3915, %v3899
    %v3920 = vmul.f32 %v3916, %v3902
    %v3921 = vadd.f32 %v3891, %v3917
    %v3922 = vadd.f32 %v3894, %v3918
    %v3923 = vadd.f32 %v3899, %v3919
    %v3924 = vadd.f32 %v3902, %v3920
    %v3925 = vmul.f32 %v3921, 0.7978846
    %v3926 = vmul.f32 %v3922, 0.7978846
    %v3927 = vmul.f32 %v3923, 0.7978846
    %v3928 = vmul.f32 %v3924, 0.7978846
    %v3929 = vtanh.pop %v3925
    %v3930 = vtanh.pop %v3926
    %v3931 = vtanh.pop %v3927
    %v3932 = vtanh.pop %v3928
    %v3933 = vadd.f32 %v3929, 1.0
    %v3934 = vadd.f32 %v3930, 1.0
    %v3935 = vadd.f32 %v3931, 1.0
    %v3936 = vadd.f32 %v3932, 1.0
    %v3937 = vmul.f32 %v3905, %v3933
    %v3938 = vmul.f32 %v3906, %v3934
    %v3939 = vmul.f32 %v3907, %v3935
    %v3940 = vmul.f32 %v3908, %v3936
    %v3941 = vpack.c.bf16 %v3938, %v3937
    %v3942 = vpack.c.bf16 %v3940, %v3939
    %s3943 = scalar_lea.vmem %s6, 32
    %v3944 = vld [vmem:[%s3943] sm:$0xf]
    %v3945 = vld [vmem:[%s3943 + $0x4] sm:$0xf]
    %v3946 = vld [vmem:[%s3943 + $0x8] sm:$0xf]
    %v3947 = vld [vmem:[%s3943 + $0xc] sm:$0xf]
    %v3948 = vld [vmem:[%s3943 + $0x10] sm:$0xf]
    %v3949 = vld [vmem:[%s3943 + $0x14] sm:$0xf]
    %v3950 = vld [vmem:[%s3943 + $0x18] sm:$0xf]
    %v3951 = vld [vmem:[%s3943 + $0x1c] sm:$0xf]
    %v3960 = vunpack.c.l.b16 %v3944
    %v3961 = vunpack.c.l.b16 %v3945
    %v3962 = vunpack.c.l.b16 %v3946
    %v3963 = vunpack.c.l.b16 %v3947
    %v3964 = vunpack.c.l.b16 %v3948
    %v3965 = vunpack.c.l.b16 %v3949
    %v3966 = vunpack.c.l.b16 %v3950
    %v3967 = vunpack.c.l.b16 %v3951
    %v3968 = vpack.c.b16 %v3961, %v3960
    %v3969 = vpack.c.b16 %v3963, %v3962
    %v3970 = vpack.c.b16 %v3965, %v3964
    %v3971 = vpack.c.b16 %v3967, %v3966
    %v3977 = vsel %vm2076, %v3941, 0
    %v3980 = vsel %vm2076, %v3942, 0
    %3982 = vmatprep.subr.bf16.mxu0 0
    %3983 = vmatpush1.bf16.msra.mxu0 0
    %3984 = vmatprep.subr.bf16.mxu0 0
    %3985 = vmatpush1.bf16.msra.mxu0 0
    %3986 = vmatprep.subr.bf16.mxu0 0
    %3987 = vmatpush1.bf16.msra.mxu0 0
    %3988 = vmatprep.subr.bf16.mxu0 0
    %3989 = vmatpush1.bf16.msra.mxu0 0
    %3990 = vmatprep.subr.bf16.mxu0 0
    %3991 = vmatpush1.bf16.msra.mxu0 %v3971
    %3992 = vmatprep.subr.bf16.mxu0 0
    %3993 = vmatpush1.bf16.msra.mxu0 %v3970
    %3994 = vmatprep.subr.bf16.mxu0 0
    %3995 = vmatpush1.bf16.msra.mxu0 %v3969
    %3996 = vmatprep.subr.bf16.mxu0 0
    %3997 = vmatpush1.bf16.msra.mxu0 %v3968
    %3998 = vmatprep.subr.bf16.mxu0 0
    %3999 = vmatpush2.bf16.msra.mxu0 0
    %4000 = vmatprep.subr.bf16.mxu0 0
    %4001 = vmatpush2.bf16.msra.mxu0 0
    %4002 = vmatprep.subr.bf16.mxu0 0
    %4003 = vmatpush2.bf16.msra.mxu0 0
    %4004 = vmatprep.subr.bf16.mxu0 0
    %4005 = vmatpush2.bf16.msra.mxu0 0
    %4006 = vmatprep.subr.bf16.mxu0 0
    %4007 = vmatpush2.bf16.msra.mxu0 0
    %4008 = vmatprep.subr.bf16.mxu0 0
    %4009 = vmatpush2.bf16.msra.mxu0 0
    %4010 = vmatprep.subr.bf16.mxu0 0
    %4011 = vmatpush2.bf16.msra.mxu0 0
    %4012 = vmatprep.subr.bf16.mxu0 0
    %4013 = vmatpush2.bf16.msra.mxu0 0
    %4014 = vmatprep.mubr.bf16.mxu0 0
    %4015 = vmatmul.mubr.bf16.gmra.mxu0 %v3977
    %v4016 = vpop.f32.mrf.mxu0
    %v4017 = vadd.f32 0.0, %v4016
    %v4018 = vpop.f32.mrf.mxu0
    %v4019 = vpop.f32.mrf.mxu0
    %v4020 = vadd.f32 0.0, %v4019
    %v4021 = vpop.f32.mrf.mxu0
    %4022 = vmatprep.mubr.bf16.mxu0 0
    %4023 = vmatmul.mubr.bf16.gmra.mxu0 %v3980
    %v4024 = vpop.f32.mrf.mxu0
    %v4025 = vadd.f32 0.0, %v4024
    %v4026 = vpop.f32.mrf.mxu0
    %v4027 = vpop.f32.mrf.mxu0
    %v4028 = vadd.f32 0.0, %v4027
    %v4029 = vpop.f32.mrf.mxu0
    %4030 = vdwg.mxu0
    %v4031 = vadd.f32 %v3770, %v4017
    %v4032 = vadd.f32 %v3771, %v4020
    %v4033 = vadd.f32 %v3772, %v4025
    %v4034 = vadd.f32 %v3773, %v4028
    %v4035 = vld [vmem:[%s1 + $0x27] sm:$0x1]
    %v4036 = vlaneseq
    %v4037 = vshrl.u32 %v4036, 7
    %v4038 = vsub.s32 0, %v4037
    %v4039 = vrot.slane %v4035, %v4038
    %v4040 = vadd.f32 %v4031, %v4039
    %v4041 = vadd.f32 %v4032, %v4039
    %v4042 = vadd.f32 %v4033, %v4039
    %v4043 = vadd.f32 %v4034, %v4039
    %v4044 = vsel %vm230, %v4040, 0.0
    %4045 = vadd.xlane.f32.xlu0 %v4044
    %v4046 = vpop.xlane.xlu0 %4045
    %v4047 = vsel %vm230, %v4041, 0.0
    %4048 = vadd.xlane.f32.xlu0 %v4047
    %v4049 = vpop.xlane.xlu0 %4048
    %v4050 = vsel %vm230, %v4042, 0.0
    %4051 = vadd.xlane.f32.xlu0 %v4050
    %v4052 = vpop.xlane.xlu0 %4051
    %v4053 = vsel %vm230, %v4043, 0.0
    %4054 = vadd.xlane.f32.xlu0 %v4053
    %v4055 = vpop.xlane.xlu0 %4054
    %v4056 = vmul.f32 %v4046, %v243
    %v4057 = vmul.f32 %v4049, %v243
    %v4058 = vmul.f32 %v4052, %v243
    %v4059 = vmul.f32 %v4055, %v243
    %v4060 = vsub.f32 %v4040, %v4056
    %v4061 = vsub.f32 %v4041, %v4057
    %v4062 = vsub.f32 %v4042, %v4058
    %v4063 = vsub.f32 %v4043, %v4059
    %v4064 = vmul.f32 %v4060, %v4060
    %v4065 = vmul.f32 %v4061, %v4061
    %v4066 = vmul.f32 %v4062, %v4062
    %v4067 = vmul.f32 %v4063, %v4063
    %v4068 = vsel %vm230, %v4064, 0.0
    %4069 = vadd.xlane.f32.xlu0 %v4068
    %v4070 = vpop.xlane.xlu0 %4069
    %v4071 = vsel %vm230, %v4065, 0.0
    %4072 = vadd.xlane.f32.xlu0 %v4071
    %v4073 = vpop.xlane.xlu0 %4072
    %v4074 = vsel %vm230, %v4066, 0.0
    %4075 = vadd.xlane.f32.xlu0 %v4074
    %v4076 = vpop.xlane.xlu0 %4075
    %v4077 = vsel %vm230, %v4067, 0.0
    %4078 = vadd.xlane.f32.xlu0 %v4077
    %v4079 = vpop.xlane.xlu0 %4078
    %v4080 = vmul.f32 %v4070, %v243
    %v4081 = vmul.f32 %v4073, %v243
    %v4082 = vmul.f32 %v4076, %v243
    %v4083 = vmul.f32 %v4079, %v243
    %v4084 = vadd.f32 %v4080, 1e-05
    %v4085 = vadd.f32 %v4081, 1e-05
    %v4086 = vadd.f32 %v4082, 1e-05
    %v4087 = vadd.f32 %v4083, 1e-05
    %v4088 = vrsqrt.pop %v4084
    %v4089 = vrsqrt.pop %v4085
    %v4090 = vrsqrt.pop %v4086
    %v4091 = vrsqrt.pop %v4087
    %v4092 = vmul.f32 %v4060, %v4088
    %v4093 = vmul.f32 %v4061, %v4089
    %v4094 = vmul.f32 %v4062, %v4090
    %v4095 = vmul.f32 %v4063, %v4091
    %s4096 = smul.u32 4, 64
    %s4097 = smul.u32 %s4096, 1
    %s4098 = sshll.u32 %s4097, 4
    %4099 = dma.done [#allocation3], %s4098
    %v4100 = vpack.c.bf16 %v4092, %v4092
    %v4101 = vpack.c.bf16 %v4094, %v4094
    %v4102 = vld [vmem:[#allocation2] sm:$0xf]
    %v4103 = vld [vmem:[#allocation2 + $0x4] sm:$0xf]
    %v4104 = vld [vmem:[#allocation2 + $0x8] sm:$0xf]
    %v4105 = vld [vmem:[#allocation2 + $0xc] sm:$0xf]
    %v4106 = vld [vmem:[#allocation2 + $0x10] sm:$0xf]
    %v4107 = vld [vmem:[#allocation2 + $0x14] sm:$0xf]
    %v4108 = vld [vmem:[#allocation2 + $0x18] sm:$0xf]
    %v4109 = vld [vmem:[#allocation2 + $0x1c] sm:$0xf]
    %v4112 = vunpack.c.l.b16 %v4100
    %v4113 = vunpack.c.l.b16 %v4101
    %v4114 = vrot.slane %v4112, 1
    %vm4115 = vcmask 1041409
    %v4116 = vsel %vm4115, %v4113, %v4114
    %v4117 = vpack.c.b16 %v4116, %v4116
    %v4122 = vunpack.c.l.b16 %v4106
    %v4123 = vunpack.c.l.b16 %v4107
    %v4124 = vunpack.c.l.b16 %v4108
    %v4125 = vunpack.c.l.b16 %v4109
    %v4126 = vpack.c.b16 %v4123, %v4122
    %v4127 = vpack.c.b16 %v4125, %v4124
    %v4131 = vsel %vm230, %v4117, 0
    %4133 = vmatprep.subr.bf16.mxu0 0
    %4134 = vmatpush1.bf16.msra.mxu0 0
    %4135 = vmatprep.subr.bf16.mxu0 0
    %4136 = vmatpush1.bf16.msra.mxu0 0
    %4137 = vmatprep.subr.bf16.mxu0 0
    %4138 = vmatpush1.bf16.msra.mxu0 0
    %4139 = vmatprep.subr.bf16.mxu0 0
    %4140 = vmatpush1.bf16.msra.mxu0 0
    %4141 = vmatprep.subr.bf16.mxu0 0
    %4142 = vmatpush1.bf16.msra.mxu0 0
    %4143 = vmatprep.subr.bf16.mxu0 0
    %4144 = vmatpush1.bf16.msra.mxu0 0
    %4145 = vmatprep.subr.bf16.mxu0 0
    %4146 = vmatpush1.bf16.msra.mxu0 %v4127
    %4147 = vmatprep.subr.bf16.mxu0 0
    %4148 = vmatpush1.bf16.msra.mxu0 %v4126
    %4149 = vmatprep.subr.bf16.mxu0 0
    %4150 = vmatpush2.bf16.msra.mxu0 0
    %4151 = vmatprep.subr.bf16.mxu0 0
    %4152 = vmatpush2.bf16.msra.mxu0 0
    %4153 = vmatprep.subr.bf16.mxu0 0
    %4154 = vmatpush2.bf16.msra.mxu0 0
    %4155 = vmatprep.subr.bf16.mxu0 0
    %4156 = vmatpush2.bf16.msra.mxu0 0
    %4157 = vmatprep.subr.bf16.mxu0 0
    %4158 = vmatpush2.bf16.msra.mxu0 0
    %4159 = vmatprep.subr.bf16.mxu0 0
    %4160 = vmatpush2.bf16.msra.mxu0 0
    %4161 = vmatprep.subr.bf16.mxu0 0
    %4162 = vmatpush2.bf16.msra.mxu0 0
    %4163 = vmatprep.subr.bf16.mxu0 0
    %4164 = vmatpush2.bf16.msra.mxu0 0
    %4165 = vmatprep.mubr.bf16.mxu0 0
    %4166 = vmatmul.mubr.bf16.gmra.mxu0 %v4131
    %v4167 = vpop.f32.mrf.mxu0
    %v4168 = vadd.f32 0.0, %v4167
    %v4169 = vpop.f32.mrf.mxu0
    %v4170 = vpop.f32.mrf.mxu0
    %v4171 = vpop.f32.mrf.mxu0
    %4172 = vdwg.mxu0
    %v4173 = vrot.slane %v4113, 7
    %v4174 = vsel %vm4115, %v4173, %v4112
    %v4175 = vpack.c.b16 %v4174, %v4174
    %v4180 = vunpack.c.l.b16 %v4102
    %v4181 = vunpack.c.l.b16 %v4103
    %v4182 = vunpack.c.l.b16 %v4104
    %v4183 = vunpack.c.l.b16 %v4105
    %v4184 = vpack.c.b16 %v4181, %v4180
    %v4185 = vpack.c.b16 %v4183, %v4182
    %v4189 = vsel %vm230, %v4175, 0
    %4191 = vmatprep.subr.bf16.mxu0 0
    %4192 = vmatpush1.bf16.msra.mxu0 0
    %4193 = vmatprep.subr.bf16.mxu0 0
    %4194 = vmatpush1.bf16.msra.mxu0 0
    %4195 = vmatprep.subr.bf16.mxu0 0
    %4196 = vmatpush1.bf16.msra.mxu0 0
    %4197 = vmatprep.subr.bf16.mxu0 0
    %4198 = vmatpush1.bf16.msra.mxu0 0
    %4199 = vmatprep.subr.bf16.mxu0 0
    %4200 = vmatpush1.bf16.msra.mxu0 0
    %4201 = vmatprep.subr.bf16.mxu0 0
    %4202 = vmatpush1.bf16.msra.mxu0 0
    %4203 = vmatprep.subr.bf16.mxu0 0
    %4204 = vmatpush1.bf16.msra.mxu0 %v4185
    %4205 = vmatprep.subr.bf16.mxu0 0
    %4206 = vmatpush1.bf16.msra.mxu0 %v4184
    %4207 = vmatprep.subr.bf16.mxu0 0
    %4208 = vmatpush2.bf16.msra.mxu0 0
    %4209 = vmatprep.subr.bf16.mxu0 0
    %4210 = vmatpush2.bf16.msra.mxu0 0
    %4211 = vmatprep.subr.bf16.mxu0 0
    %4212 = vmatpush2.bf16.msra.mxu0 0
    %4213 = vmatprep.subr.bf16.mxu0 0
    %4214 = vmatpush2.bf16.msra.mxu0 0
    %4215 = vmatprep.subr.bf16.mxu0 0
    %4216 = vmatpush2.bf16.msra.mxu0 0
    %4217 = vmatprep.subr.bf16.mxu0 0
    %4218 = vmatpush2.bf16.msra.mxu0 0
    %4219 = vmatprep.subr.bf16.mxu0 0
    %4220 = vmatpush2.bf16.msra.mxu0 0
    %4221 = vmatprep.subr.bf16.mxu0 0
    %4222 = vmatpush2.bf16.msra.mxu0 0
    %4223 = vmatprep.mubr.bf16.mxu0 0
    %4224 = vmatmul.mubr.bf16.gmra.mxu0 %v4189
    %v4225 = vpop.f32.mrf.mxu0
    %v4226 = vadd.f32 %v4168, %v4225
    %v4227 = vpop.f32.mrf.mxu0
    %v4228 = vpop.f32.mrf.mxu0
    %v4229 = vpop.f32.mrf.mxu0
    %4230 = vdwg.mxu0
    %v4231 = vld [vmem:[#allocation2 + $0x20] sm:$0xf]
    %v4232 = vld [vmem:[#allocation2 + $0x24] sm:$0xf]
    %v4233 = vld [vmem:[#allocation2 + $0x28] sm:$0xf]
    %v4234 = vld [vmem:[#allocation2 + $0x2c] sm:$0xf]
    %v4235 = vrot.slane %v4112, 2
    %v4236 = vrot.slane %v4113, 1
    %v4237 = vsel %vm4115, %v4236, %v4235
    %v4238 = vpack.c.b16 %v4237, %v4237
    %v4243 = vunpack.c.l.b16 %v4231
    %v4244 = vunpack.c.l.b16 %v4232
    %v4245 = vunpack.c.l.b16 %v4233
    %v4246 = vunpack.c.l.b16 %v4234
    %v4247 = vpack.c.b16 %v4244, %v4243
    %v4248 = vpack.c.b16 %v4246, %v4245
    %v4252 = vsel %vm230, %v4238, 0
    %4254 = vmatprep.subr.bf16.mxu0 0
    %4255 = vmatpush1.bf16.msra.mxu0 0
    %4256 = vmatprep.subr.bf16.mxu0 0
    %4257 = vmatpush1.bf16.msra.mxu0 0
    %4258 = vmatprep.subr.bf16.mxu0 0
    %4259 = vmatpush1.bf16.msra.mxu0 0
    %4260 = vmatprep.subr.bf16.mxu0 0
    %4261 = vmatpush1.bf16.msra.mxu0 0
    %4262 = vmatprep.subr.bf16.mxu0 0
    %4263 = vmatpush1.bf16.msra.mxu0 0
    %4264 = vmatprep.subr.bf16.mxu0 0
    %4265 = vmatpush1.bf16.msra.mxu0 0
    %4266 = vmatprep.subr.bf16.mxu0 0
    %4267 = vmatpush1.bf16.msra.mxu0 %v4248
    %4268 = vmatprep.subr.bf16.mxu0 0
    %4269 = vmatpush1.bf16.msra.mxu0 %v4247
    %4270 = vmatprep.subr.bf16.mxu0 0
    %4271 = vmatpush2.bf16.msra.mxu0 0
    %4272 = vmatprep.subr.bf16.mxu0 0
    %4273 = vmatpush2.bf16.msra.mxu0 0
    %4274 = vmatprep.subr.bf16.mxu0 0
    %4275 = vmatpush2.bf16.msra.mxu0 0
    %4276 = vmatprep.subr.bf16.mxu0 0
    %4277 = vmatpush2.bf16.msra.mxu0 0
    %4278 = vmatprep.subr.bf16.mxu0 0
    %4279 = vmatpush2.bf16.msra.mxu0 0
    %4280 = vmatprep.subr.bf16.mxu0 0
    %4281 = vmatpush2.bf16.msra.mxu0 0
    %4282 = vmatprep.subr.bf16.mxu0 0
    %4283 = vmatpush2.bf16.msra.mxu0 0
    %4284 = vmatprep.subr.bf16.mxu0 0
    %4285 = vmatpush2.bf16.msra.mxu0 0
    %4286 = vmatprep.mubr.bf16.mxu0 0
    %4287 = vmatmul.mubr.bf16.gmra.mxu0 %v4252
    %v4288 = vpop.f32.mrf.mxu0
    %v4289 = vadd.f32 0.0, %v4288
    %v4290 = vpop.f32.mrf.mxu0
    %v4291 = vpop.f32.mrf.mxu0
    %v4292 = vpop.f32.mrf.mxu0
    %4293 = vdwg.mxu0
    %v4294 = vadd.f32 %v4226, %v4289
    %v4295 = vld [vmem:[#allocation2 + $0x30] sm:$0xf]
    %v4296 = vld [vmem:[#allocation2 + $0x34] sm:$0xf]
    %v4297 = vld [vmem:[#allocation2 + $0x38] sm:$0xf]
    %v4298 = vld [vmem:[#allocation2 + $0x3c] sm:$0xf]
    %v4299 = vrot.slane %v4112, 3
    %v4300 = vrot.slane %v4113, 2
    %v4301 = vsel %vm4115, %v4300, %v4299
    %v4302 = vpack.c.b16 %v4301, %v4301
    %v4307 = vunpack.c.l.b16 %v4295
    %v4308 = vunpack.c.l.b16 %v4296
    %v4309 = vunpack.c.l.b16 %v4297
    %v4310 = vunpack.c.l.b16 %v4298
    %v4311 = vpack.c.b16 %v4308, %v4307
    %v4312 = vpack.c.b16 %v4310, %v4309
    %v4316 = vsel %vm230, %v4302, 0
    %4318 = vmatprep.subr.bf16.mxu0 0
    %4319 = vmatpush1.bf16.msra.mxu0 0
    %4320 = vmatprep.subr.bf16.mxu0 0
    %4321 = vmatpush1.bf16.msra.mxu0 0
    %4322 = vmatprep.subr.bf16.mxu0 0
    %4323 = vmatpush1.bf16.msra.mxu0 0
    %4324 = vmatprep.subr.bf16.mxu0 0
    %4325 = vmatpush1.bf16.msra.mxu0 0
    %4326 = vmatprep.subr.bf16.mxu0 0
    %4327 = vmatpush1.bf16.msra.mxu0 0
    %4328 = vmatprep.subr.bf16.mxu0 0
    %4329 = vmatpush1.bf16.msra.mxu0 0
    %4330 = vmatprep.subr.bf16.mxu0 0
    %4331 = vmatpush1.bf16.msra.mxu0 %v4312
    %4332 = vmatprep.subr.bf16.mxu0 0
    %4333 = vmatpush1.bf16.msra.mxu0 %v4311
    %4334 = vmatprep.subr.bf16.mxu0 0
    %4335 = vmatpush2.bf16.msra.mxu0 0
    %4336 = vmatprep.subr.bf16.mxu0 0
    %4337 = vmatpush2.bf16.msra.mxu0 0
    %4338 = vmatprep.subr.bf16.mxu0 0
    %4339 = vmatpush2.bf16.msra.mxu0 0
    %4340 = vmatprep.subr.bf16.mxu0 0
    %4341 = vmatpush2.bf16.msra.mxu0 0
    %4342 = vmatprep.subr.bf16.mxu0 0
    %4343 = vmatpush2.bf16.msra.mxu0 0
    %4344 = vmatprep.subr.bf16.mxu0 0
    %4345 = vmatpush2.bf16.msra.mxu0 0
    %4346 = vmatprep.subr.bf16.mxu0 0
    %4347 = vmatpush2.bf16.msra.mxu0 0
    %4348 = vmatprep.subr.bf16.mxu0 0
    %4349 = vmatpush2.bf16.msra.mxu0 0
    %4350 = vmatprep.mubr.bf16.mxu0 0
    %4351 = vmatmul.mubr.bf16.gmra.mxu0 %v4316
    %v4352 = vpop.f32.mrf.mxu0
    %v4353 = vadd.f32 0.0, %v4352
    %v4354 = vpop.f32.mrf.mxu0
    %v4355 = vpop.f32.mrf.mxu0
    %v4356 = vpop.f32.mrf.mxu0
    %4357 = vdwg.mxu0
    %v4358 = vadd.f32 %v4294, %v4353
    %v4359 = vld [vmem:[#allocation2 + $0x40] sm:$0xf]
    %v4360 = vld [vmem:[#allocation2 + $0x44] sm:$0xf]
    %v4361 = vld [vmem:[#allocation2 + $0x48] sm:$0xf]
    %v4362 = vld [vmem:[#allocation2 + $0x4c] sm:$0xf]
    %v4363 = vrot.slane %v4112, 4
    %v4364 = vrot.slane %v4113, 3
    %v4365 = vsel %vm4115, %v4364, %v4363
    %v4366 = vpack.c.b16 %v4365, %v4365
    %v4371 = vunpack.c.l.b16 %v4359
    %v4372 = vunpack.c.l.b16 %v4360
    %v4373 = vunpack.c.l.b16 %v4361
    %v4374 = vunpack.c.l.b16 %v4362
    %v4375 = vpack.c.b16 %v4372, %v4371
    %v4376 = vpack.c.b16 %v4374, %v4373
    %v4380 = vsel %vm230, %v4366, 0
    %4382 = vmatprep.subr.bf16.mxu0 0
    %4383 = vmatpush1.bf16.msra.mxu0 0
    %4384 = vmatprep.subr.bf16.mxu0 0
    %4385 = vmatpush1.bf16.msra.mxu0 0
    %4386 = vmatprep.subr.bf16.mxu0 0
    %4387 = vmatpush1.bf16.msra.mxu0 0
    %4388 = vmatprep.subr.bf16.mxu0 0
    %4389 = vmatpush1.bf16.msra.mxu0 0
    %4390 = vmatprep.subr.bf16.mxu0 0
    %4391 = vmatpush1.bf16.msra.mxu0 0
    %4392 = vmatprep.subr.bf16.mxu0 0
    %4393 = vmatpush1.bf16.msra.mxu0 0
    %4394 = vmatprep.subr.bf16.mxu0 0
    %4395 = vmatpush1.bf16.msra.mxu0 %v4376
    %4396 = vmatprep.subr.bf16.mxu0 0
    %4397 = vmatpush1.bf16.msra.mxu0 %v4375
    %4398 = vmatprep.subr.bf16.mxu0 0
    %4399 = vmatpush2.bf16.msra.mxu0 0
    %4400 = vmatprep.subr.bf16.mxu0 0
    %4401 = vmatpush2.bf16.msra.mxu0 0
    %4402 = vmatprep.subr.bf16.mxu0 0
    %4403 = vmatpush2.bf16.msra.mxu0 0
    %4404 = vmatprep.subr.bf16.mxu0 0
    %4405 = vmatpush2.bf16.msra.mxu0 0
    %4406 = vmatprep.subr.bf16.mxu0 0
    %4407 = vmatpush2.bf16.msra.mxu0 0
    %4408 = vmatprep.subr.bf16.mxu0 0
    %4409 = vmatpush2.bf16.msra.mxu0 0
    %4410 = vmatprep.subr.bf16.mxu0 0
    %4411 = vmatpush2.bf16.msra.mxu0 0
    %4412 = vmatprep.subr.bf16.mxu0 0
    %4413 = vmatpush2.bf16.msra.mxu0 0
    %4414 = vmatprep.mubr.bf16.mxu0 0
    %4415 = vmatmul.mubr.bf16.gmra.mxu0 %v4380
    %v4416 = vpop.f32.mrf.mxu0
    %v4417 = vadd.f32 0.0, %v4416
    %v4418 = vpop.f32.mrf.mxu0
    %v4419 = vpop.f32.mrf.mxu0
    %v4420 = vpop.f32.mrf.mxu0
    %4421 = vdwg.mxu0
    %v4422 = vadd.f32 %v4358, %v4417
    %v4423 = vld [vmem:[#allocation2 + $0x50] sm:$0xf]
    %v4424 = vld [vmem:[#allocation2 + $0x54] sm:$0xf]
    %v4425 = vld [vmem:[#allocation2 + $0x58] sm:$0xf]
    %v4426 = vld [vmem:[#allocation2 + $0x5c] sm:$0xf]
    %v4427 = vrot.slane %v4112, 5
    %v4428 = vrot.slane %v4113, 4
    %v4429 = vsel %vm4115, %v4428, %v4427
    %v4430 = vpack.c.b16 %v4429, %v4429
    %v4435 = vunpack.c.l.b16 %v4423
    %v4436 = vunpack.c.l.b16 %v4424
    %v4437 = vunpack.c.l.b16 %v4425
    %v4438 = vunpack.c.l.b16 %v4426
    %v4439 = vpack.c.b16 %v4436, %v4435
    %v4440 = vpack.c.b16 %v4438, %v4437
    %v4444 = vsel %vm230, %v4430, 0
    %4446 = vmatprep.subr.bf16.mxu0 0
    %4447 = vmatpush1.bf16.msra.mxu0 0
    %4448 = vmatprep.subr.bf16.mxu0 0
    %4449 = vmatpush1.bf16.msra.mxu0 0
    %4450 = vmatprep.subr.bf16.mxu0 0
    %4451 = vmatpush1.bf16.msra.mxu0 0
    %4452 = vmatprep.subr.bf16.mxu0 0
    %4453 = vmatpush1.bf16.msra.mxu0 0
    %4454 = vmatprep.subr.bf16.mxu0 0
    %4455 = vmatpush1.bf16.msra.mxu0 0
    %4456 = vmatprep.subr.bf16.mxu0 0
    %4457 = vmatpush1.bf16.msra.mxu0 0
    %4458 = vmatprep.subr.bf16.mxu0 0
    %4459 = vmatpush1.bf16.msra.mxu0 %v4440
    %4460 = vmatprep.subr.bf16.mxu0 0
    %4461 = vmatpush1.bf16.msra.mxu0 %v4439
    %4462 = vmatprep.subr.bf16.mxu0 0
    %4463 = vmatpush2.bf16.msra.mxu0 0
    %4464 = vmatprep.subr.bf16.mxu0 0
    %4465 = vmatpush2.bf16.msra.mxu0 0
    %4466 = vmatprep.subr.bf16.mxu0 0
    %4467 = vmatpush2.bf16.msra.mxu0 0
    %4468 = vmatprep.subr.bf16.mxu0 0
    %4469 = vmatpush2.bf16.msra.mxu0 0
    %4470 = vmatprep.subr.bf16.mxu0 0
    %4471 = vmatpush2.bf16.msra.mxu0 0
    %4472 = vmatprep.subr.bf16.mxu0 0
    %4473 = vmatpush2.bf16.msra.mxu0 0
    %4474 = vmatprep.subr.bf16.mxu0 0
    %4475 = vmatpush2.bf16.msra.mxu0 0
    %4476 = vmatprep.subr.bf16.mxu0 0
    %4477 = vmatpush2.bf16.msra.mxu0 0
    %4478 = vmatprep.mubr.bf16.mxu0 0
    %4479 = vmatmul.mubr.bf16.gmra.mxu0 %v4444
    %v4480 = vpop.f32.mrf.mxu0
    %v4481 = vadd.f32 0.0, %v4480
    %v4482 = vpop.f32.mrf.mxu0
    %v4483 = vpop.f32.mrf.mxu0
    %v4484 = vpop.f32.mrf.mxu0
    %4485 = vdwg.mxu0
    %v4486 = vadd.f32 %v4422, %v4481
    %v4487 = vld [vmem:[#allocation2 + $0x60] sm:$0xf]
    %v4488 = vld [vmem:[#allocation2 + $0x64] sm:$0xf]
    %v4489 = vld [vmem:[#allocation2 + $0x68] sm:$0xf]
    %v4490 = vld [vmem:[#allocation2 + $0x6c] sm:$0xf]
    %v4491 = vrot.slane %v4112, 6
    %v4492 = vrot.slane %v4113, 5
    %v4493 = vsel %vm4115, %v4492, %v4491
    %v4494 = vpack.c.b16 %v4493, %v4493
    %v4499 = vunpack.c.l.b16 %v4487
    %v4500 = vunpack.c.l.b16 %v4488
    %v4501 = vunpack.c.l.b16 %v4489
    %v4502 = vunpack.c.l.b16 %v4490
    %v4503 = vpack.c.b16 %v4500, %v4499
    %v4504 = vpack.c.b16 %v4502, %v4501
    %v4508 = vsel %vm230, %v4494, 0
    %4510 = vmatprep.subr.bf16.mxu0 0
    %4511 = vmatpush1.bf16.msra.mxu0 0
    %4512 = vmatprep.subr.bf16.mxu0 0
    %4513 = vmatpush1.bf16.msra.mxu0 0
    %4514 = vmatprep.subr.bf16.mxu0 0
    %4515 = vmatpush1.bf16.msra.mxu0 0
    %4516 = vmatprep.subr.bf16.mxu0 0
    %4517 = vmatpush1.bf16.msra.mxu0 0
    %4518 = vmatprep.subr.bf16.mxu0 0
    %4519 = vmatpush1.bf16.msra.mxu0 0
    %4520 = vmatprep.subr.bf16.mxu0 0
    %4521 = vmatpush1.bf16.msra.mxu0 0
    %4522 = vmatprep.subr.bf16.mxu0 0
    %4523 = vmatpush1.bf16.msra.mxu0 %v4504
    %4524 = vmatprep.subr.bf16.mxu0 0
    %4525 = vmatpush1.bf16.msra.mxu0 %v4503
    %4526 = vmatprep.subr.bf16.mxu0 0
    %4527 = vmatpush2.bf16.msra.mxu0 0
    %4528 = vmatprep.subr.bf16.mxu0 0
    %4529 = vmatpush2.bf16.msra.mxu0 0
    %4530 = vmatprep.subr.bf16.mxu0 0
    %4531 = vmatpush2.bf16.msra.mxu0 0
    %4532 = vmatprep.subr.bf16.mxu0 0
    %4533 = vmatpush2.bf16.msra.mxu0 0
    %4534 = vmatprep.subr.bf16.mxu0 0
    %4535 = vmatpush2.bf16.msra.mxu0 0
    %4536 = vmatprep.subr.bf16.mxu0 0
    %4537 = vmatpush2.bf16.msra.mxu0 0
    %4538 = vmatprep.subr.bf16.mxu0 0
    %4539 = vmatpush2.bf16.msra.mxu0 0
    %4540 = vmatprep.subr.bf16.mxu0 0
    %4541 = vmatpush2.bf16.msra.mxu0 0
    %4542 = vmatprep.mubr.bf16.mxu0 0
    %4543 = vmatmul.mubr.bf16.gmra.mxu0 %v4508
    %v4544 = vpop.f32.mrf.mxu0
    %v4545 = vadd.f32 0.0, %v4544
    %v4546 = vpop.f32.mrf.mxu0
    %v4547 = vpop.f32.mrf.mxu0
    %v4548 = vpop.f32.mrf.mxu0
    %4549 = vdwg.mxu0
    %v4550 = vadd.f32 %v4486, %v4545
    %v4551 = vld [vmem:[#allocation2 + $0x70] sm:$0xf]
    %v4552 = vld [vmem:[#allocation2 + $0x74] sm:$0xf]
    %v4553 = vld [vmem:[#allocation2 + $0x78] sm:$0xf]
    %v4554 = vld [vmem:[#allocation2 + $0x7c] sm:$0xf]
    %v4555 = vrot.slane %v4112, 7
    %v4556 = vrot.slane %v4113, 6
    %v4557 = vsel %vm4115, %v4556, %v4555
    %v4558 = vpack.c.b16 %v4557, %v4557
    %v4563 = vunpack.c.l.b16 %v4551
    %v4564 = vunpack.c.l.b16 %v4552
    %v4565 = vunpack.c.l.b16 %v4553
    %v4566 = vunpack.c.l.b16 %v4554
    %v4567 = vpack.c.b16 %v4564, %v4563
    %v4568 = vpack.c.b16 %v4566, %v4565
    %v4572 = vsel %vm230, %v4558, 0
    %4574 = vmatprep.subr.bf16.mxu0 0
    %4575 = vmatpush1.bf16.msra.mxu0 0
    %4576 = vmatprep.subr.bf16.mxu0 0
    %4577 = vmatpush1.bf16.msra.mxu0 0
    %4578 = vmatprep.subr.bf16.mxu0 0
    %4579 = vmatpush1.bf16.msra.mxu0 0
    %4580 = vmatprep.subr.bf16.mxu0 0
    %4581 = vmatpush1.bf16.msra.mxu0 0
    %4582 = vmatprep.subr.bf16.mxu0 0
    %4583 = vmatpush1.bf16.msra.mxu0 0
    %4584 = vmatprep.subr.bf16.mxu0 0
    %4585 = vmatpush1.bf16.msra.mxu0 0
    %4586 = vmatprep.subr.bf16.mxu0 0
    %4587 = vmatpush1.bf16.msra.mxu0 %v4568
    %4588 = vmatprep.subr.bf16.mxu0 0
    %4589 = vmatpush1.bf16.msra.mxu0 %v4567
    %4590 = vmatprep.subr.bf16.mxu0 0
    %4591 = vmatpush2.bf16.msra.mxu0 0
    %4592 = vmatprep.subr.bf16.mxu0 0
    %4593 = vmatpush2.bf16.msra.mxu0 0
    %4594 = vmatprep.subr.bf16.mxu0 0
    %4595 = vmatpush2.bf16.msra.mxu0 0
    %4596 = vmatprep.subr.bf16.mxu0 0
    %4597 = vmatpush2.bf16.msra.mxu0 0
    %4598 = vmatprep.subr.bf16.mxu0 0
    %4599 = vmatpush2.bf16.msra.mxu0 0
    %4600 = vmatprep.subr.bf16.mxu0 0
    %4601 = vmatpush2.bf16.msra.mxu0 0
    %4602 = vmatprep.subr.bf16.mxu0 0
    %4603 = vmatpush2.bf16.msra.mxu0 0
    %4604 = vmatprep.subr.bf16.mxu0 0
    %4605 = vmatpush2.bf16.msra.mxu0 0
    %4606 = vmatprep.mubr.bf16.mxu0 0
    %4607 = vmatmul.mubr.bf16.gmra.mxu0 %v4572
    %v4608 = vpop.f32.mrf.mxu0
    %v4609 = vadd.f32 0.0, %v4608
    %v4610 = vpop.f32.mrf.mxu0
    %v4611 = vpop.f32.mrf.mxu0
    %v4612 = vpop.f32.mrf.mxu0
    %4613 = vdwg.mxu0
    %v4614 = vadd.f32 %v4550, %v4609
    %v4615 = vpack.c.bf16 %v4093, %v4093
    %v4616 = vpack.c.bf16 %v4095, %v4095
    %v4617 = vld [vmem:[#allocation2 + $0x80] sm:$0xf]
    %v4618 = vld [vmem:[#allocation2 + $0x84] sm:$0xf]
    %v4619 = vld [vmem:[#allocation2 + $0x88] sm:$0xf]
    %v4620 = vld [vmem:[#allocation2 + $0x8c] sm:$0xf]
    %v4623 = vunpack.c.l.b16 %v4615
    %v4624 = vunpack.c.l.b16 %v4616
    %v4625 = vrot.slane %v4624, 7
    %v4626 = vsel %vm4115, %v4625, %v4623
    %v4627 = vpack.c.b16 %v4626, %v4626
    %v4632 = vunpack.c.l.b16 %v4617
    %v4633 = vunpack.c.l.b16 %v4618
    %v4634 = vunpack.c.l.b16 %v4619
    %v4635 = vunpack.c.l.b16 %v4620
    %v4636 = vpack.c.b16 %v4633, %v4632
    %v4637 = vpack.c.b16 %v4635, %v4634
    %v4641 = vsel %vm230, %v4627, 0
    %4643 = vmatprep.subr.bf16.mxu0 0
    %4644 = vmatpush1.bf16.msra.mxu0 0
    %4645 = vmatprep.subr.bf16.mxu0 0
    %4646 = vmatpush1.bf16.msra.mxu0 0
    %4647 = vmatprep.subr.bf16.mxu0 0
    %4648 = vmatpush1.bf16.msra.mxu0 0
    %4649 = vmatprep.subr.bf16.mxu0 0
    %4650 = vmatpush1.bf16.msra.mxu0 0
    %4651 = vmatprep.subr.bf16.mxu0 0
    %4652 = vmatpush1.bf16.msra.mxu0 0
    %4653 = vmatprep.subr.bf16.mxu0 0
    %4654 = vmatpush1.bf16.msra.mxu0 0
    %4655 = vmatprep.subr.bf16.mxu0 0
    %4656 = vmatpush1.bf16.msra.mxu0 %v4637
    %4657 = vmatprep.subr.bf16.mxu0 0
    %4658 = vmatpush1.bf16.msra.mxu0 %v4636
    %4659 = vmatprep.subr.bf16.mxu0 0
    %4660 = vmatpush2.bf16.msra.mxu0 0
    %4661 = vmatprep.subr.bf16.mxu0 0
    %4662 = vmatpush2.bf16.msra.mxu0 0
    %4663 = vmatprep.subr.bf16.mxu0 0
    %4664 = vmatpush2.bf16.msra.mxu0 0
    %4665 = vmatprep.subr.bf16.mxu0 0
    %4666 = vmatpush2.bf16.msra.mxu0 0
    %4667 = vmatprep.subr.bf16.mxu0 0
    %4668 = vmatpush2.bf16.msra.mxu0 0
    %4669 = vmatprep.subr.bf16.mxu0 0
    %4670 = vmatpush2.bf16.msra.mxu0 0
    %4671 = vmatprep.subr.bf16.mxu0 0
    %4672 = vmatpush2.bf16.msra.mxu0 0
    %4673 = vmatprep.subr.bf16.mxu0 0
    %4674 = vmatpush2.bf16.msra.mxu0 0
    %4675 = vmatprep.mubr.bf16.mxu0 0
    %4676 = vmatmul.mubr.bf16.gmra.mxu0 %v4641
    %v4677 = vpop.f32.mrf.mxu0
    %v4678 = vadd.f32 0.0, %v4677
    %v4679 = vpop.f32.mrf.mxu0
    %v4680 = vpop.f32.mrf.mxu0
    %v4681 = vpop.f32.mrf.mxu0
    %4682 = vdwg.mxu0
    %v4683 = vadd.f32 %v4614, %v4678
    %v4684 = vld [vmem:[#allocation2 + $0x90] sm:$0xf]
    %v4685 = vld [vmem:[#allocation2 + $0x94] sm:$0xf]
    %v4686 = vld [vmem:[#allocation2 + $0x98] sm:$0xf]
    %v4687 = vld [vmem:[#allocation2 + $0x9c] sm:$0xf]
    %v4688 = vrot.slane %v4623, 1
    %v4689 = vsel %vm4115, %v4624, %v4688
    %v4690 = vpack.c.b16 %v4689, %v4689
    %v4695 = vunpack.c.l.b16 %v4684
    %v4696 = vunpack.c.l.b16 %v4685
    %v4697 = vunpack.c.l.b16 %v4686
    %v4698 = vunpack.c.l.b16 %v4687
    %v4699 = vpack.c.b16 %v4696, %v4695
    %v4700 = vpack.c.b16 %v4698, %v4697
    %v4704 = vsel %vm230, %v4690, 0
    %4706 = vmatprep.subr.bf16.mxu0 0
    %4707 = vmatpush1.bf16.msra.mxu0 0
    %4708 = vmatprep.subr.bf16.mxu0 0
    %4709 = vmatpush1.bf16.msra.mxu0 0
    %4710 = vmatprep.subr.bf16.mxu0 0
    %4711 = vmatpush1.bf16.msra.mxu0 0
    %4712 = vmatprep.subr.bf16.mxu0 0
    %4713 = vmatpush1.bf16.msra.mxu0 0
    %4714 = vmatprep.subr.bf16.mxu0 0
    %4715 = vmatpush1.bf16.msra.mxu0 0
    %4716 = vmatprep.subr.bf16.mxu0 0
    %4717 = vmatpush1.bf16.msra.mxu0 0
    %4718 = vmatprep.subr.bf16.mxu0 0
    %4719 = vmatpush1.bf16.msra.mxu0 %v4700
    %4720 = vmatprep.subr.bf16.mxu0 0
    %4721 = vmatpush1.bf16.msra.mxu0 %v4699
    %4722 = vmatprep.subr.bf16.mxu0 0
    %4723 = vmatpush2.bf16.msra.mxu0 0
    %4724 = vmatprep.subr.bf16.mxu0 0
    %4725 = vmatpush2.bf16.msra.mxu0 0
    %4726 = vmatprep.subr.bf16.mxu0 0
    %4727 = vmatpush2.bf16.msra.mxu0 0
    %4728 = vmatprep.subr.bf16.mxu0 0
    %4729 = vmatpush2.bf16.msra.mxu0 0
    %4730 = vmatprep.subr.bf16.mxu0 0
    %4731 = vmatpush2.bf16.msra.mxu0 0
    %4732 = vmatprep.subr.bf16.mxu0 0
    %4733 = vmatpush2.bf16.msra.mxu0 0
    %4734 = vmatprep.subr.bf16.mxu0 0
    %4735 = vmatpush2.bf16.msra.mxu0 0
    %4736 = vmatprep.subr.bf16.mxu0 0
    %4737 = vmatpush2.bf16.msra.mxu0 0
    %4738 = vmatprep.mubr.bf16.mxu0 0
    %4739 = vmatmul.mubr.bf16.gmra.mxu0 %v4704
    %v4740 = vpop.f32.mrf.mxu0
    %v4741 = vadd.f32 0.0, %v4740
    %v4742 = vpop.f32.mrf.mxu0
    %v4743 = vpop.f32.mrf.mxu0
    %v4744 = vpop.f32.mrf.mxu0
    %4745 = vdwg.mxu0
    %v4746 = vadd.f32 %v4683, %v4741
    %v4747 = vld [vmem:[#allocation2 + $0xa0] sm:$0xf]
    %v4748 = vld [vmem:[#allocation2 + $0xa4] sm:$0xf]
    %v4749 = vld [vmem:[#allocation2 + $0xa8] sm:$0xf]
    %v4750 = vld [vmem:[#allocation2 + $0xac] sm:$0xf]
    %v4751 = vrot.slane %v4623, 2
    %v4752 = vrot.slane %v4624, 1
    %v4753 = vsel %vm4115, %v4752, %v4751
    %v4754 = vpack.c.b16 %v4753, %v4753
    %v4759 = vunpack.c.l.b16 %v4747
    %v4760 = vunpack.c.l.b16 %v4748
    %v4761 = vunpack.c.l.b16 %v4749
    %v4762 = vunpack.c.l.b16 %v4750
    %v4763 = vpack.c.b16 %v4760, %v4759
    %v4764 = vpack.c.b16 %v4762, %v4761
    %v4768 = vsel %vm230, %v4754, 0
    %4770 = vmatprep.subr.bf16.mxu0 0
    %4771 = vmatpush1.bf16.msra.mxu0 0
    %4772 = vmatprep.subr.bf16.mxu0 0
    %4773 = vmatpush1.bf16.msra.mxu0 0
    %4774 = vmatprep.subr.bf16.mxu0 0
    %4775 = vmatpush1.bf16.msra.mxu0 0
    %4776 = vmatprep.subr.bf16.mxu0 0
    %4777 = vmatpush1.bf16.msra.mxu0 0
    %4778 = vmatprep.subr.bf16.mxu0 0
    %4779 = vmatpush1.bf16.msra.mxu0 0
    %4780 = vmatprep.subr.bf16.mxu0 0
    %4781 = vmatpush1.bf16.msra.mxu0 0
    %4782 = vmatprep.subr.bf16.mxu0 0
    %4783 = vmatpush1.bf16.msra.mxu0 %v4764
    %4784 = vmatprep.subr.bf16.mxu0 0
    %4785 = vmatpush1.bf16.msra.mxu0 %v4763
    %4786 = vmatprep.subr.bf16.mxu0 0
    %4787 = vmatpush2.bf16.msra.mxu0 0
    %4788 = vmatprep.subr.bf16.mxu0 0
    %4789 = vmatpush2.bf16.msra.mxu0 0
    %4790 = vmatprep.subr.bf16.mxu0 0
    %4791 = vmatpush2.bf16.msra.mxu0 0
    %4792 = vmatprep.subr.bf16.mxu0 0
    %4793 = vmatpush2.bf16.msra.mxu0 0
    %4794 = vmatprep.subr.bf16.mxu0 0
    %4795 = vmatpush2.bf16.msra.mxu0 0
    %4796 = vmatprep.subr.bf16.mxu0 0
    %4797 = vmatpush2.bf16.msra.mxu0 0
    %4798 = vmatprep.subr.bf16.mxu0 0
    %4799 = vmatpush2.bf16.msra.mxu0 0
    %4800 = vmatprep.subr.bf16.mxu0 0
    %4801 = vmatpush2.bf16.msra.mxu0 0
    %4802 = vmatprep.mubr.bf16.mxu0 0
    %4803 = vmatmul.mubr.bf16.gmra.mxu0 %v4768
    %v4804 = vpop.f32.mrf.mxu0
    %v4805 = vadd.f32 0.0, %v4804
    %v4806 = vpop.f32.mrf.mxu0
    %v4807 = vpop.f32.mrf.mxu0
    %v4808 = vpop.f32.mrf.mxu0
    %4809 = vdwg.mxu0
    %v4810 = vadd.f32 %v4746, %v4805
    %v4811 = vld [vmem:[#allocation2 + $0xb0] sm:$0xf]
    %v4812 = vld [vmem:[#allocation2 + $0xb4] sm:$0xf]
    %v4813 = vld [vmem:[#allocation2 + $0xb8] sm:$0xf]
    %v4814 = vld [vmem:[#allocation2 + $0xbc] sm:$0xf]
    %v4815 = vrot.slane %v4623, 3
    %v4816 = vrot.slane %v4624, 2
    %v4817 = vsel %vm4115, %v4816, %v4815
    %v4818 = vpack.c.b16 %v4817, %v4817
    %v4823 = vunpack.c.l.b16 %v4811
    %v4824 = vunpack.c.l.b16 %v4812
    %v4825 = vunpack.c.l.b16 %v4813
    %v4826 = vunpack.c.l.b16 %v4814
    %v4827 = vpack.c.b16 %v4824, %v4823
    %v4828 = vpack.c.b16 %v4826, %v4825
    %v4832 = vsel %vm230, %v4818, 0
    %4834 = vmatprep.subr.bf16.mxu0 0
    %4835 = vmatpush1.bf16.msra.mxu0 0
    %4836 = vmatprep.subr.bf16.mxu0 0
    %4837 = vmatpush1.bf16.msra.mxu0 0
    %4838 = vmatprep.subr.bf16.mxu0 0
    %4839 = vmatpush1.bf16.msra.mxu0 0
    %4840 = vmatprep.subr.bf16.mxu0 0
    %4841 = vmatpush1.bf16.msra.mxu0 0
    %4842 = vmatprep.subr.bf16.mxu0 0
    %4843 = vmatpush1.bf16.msra.mxu0 0
    %4844 = vmatprep.subr.bf16.mxu0 0
    %4845 = vmatpush1.bf16.msra.mxu0 0
    %4846 = vmatprep.subr.bf16.mxu0 0
    %4847 = vmatpush1.bf16.msra.mxu0 %v4828
    %4848 = vmatprep.subr.bf16.mxu0 0
    %4849 = vmatpush1.bf16.msra.mxu0 %v4827
    %4850 = vmatprep.subr.bf16.mxu0 0
    %4851 = vmatpush2.bf16.msra.mxu0 0
    %4852 = vmatprep.subr.bf16.mxu0 0
    %4853 = vmatpush2.bf16.msra.mxu0 0
    %4854 = vmatprep.subr.bf16.mxu0 0
    %4855 = vmatpush2.bf16.msra.mxu0 0
    %4856 = vmatprep.subr.bf16.mxu0 0
    %4857 = vmatpush2.bf16.msra.mxu0 0
    %4858 = vmatprep.subr.bf16.mxu0 0
    %4859 = vmatpush2.bf16.msra.mxu0 0
    %4860 = vmatprep.subr.bf16.mxu0 0
    %4861 = vmatpush2.bf16.msra.mxu0 0
    %4862 = vmatprep.subr.bf16.mxu0 0
    %4863 = vmatpush2.bf16.msra.mxu0 0
    %4864 = vmatprep.subr.bf16.mxu0 0
    %4865 = vmatpush2.bf16.msra.mxu0 0
    %4866 = vmatprep.mubr.bf16.mxu0 0
    %4867 = vmatmul.mubr.bf16.gmra.mxu0 %v4832
    %v4868 = vpop.f32.mrf.mxu0
    %v4869 = vadd.f32 0.0, %v4868
    %v4870 = vpop.f32.mrf.mxu0
    %v4871 = vpop.f32.mrf.mxu0
    %v4872 = vpop.f32.mrf.mxu0
    %4873 = vdwg.mxu0
    %v4874 = vadd.f32 %v4810, %v4869
    %v4875 = vld [vmem:[#allocation2 + $0xc0] sm:$0xf]
    %v4876 = vld [vmem:[#allocation2 + $0xc4] sm:$0xf]
    %v4877 = vld [vmem:[#allocation2 + $0xc8] sm:$0xf]
    %v4878 = vld [vmem:[#allocation2 + $0xcc] sm:$0xf]
    %v4879 = vrot.slane %v4623, 4
    %v4880 = vrot.slane %v4624, 3
    %v4881 = vsel %vm4115, %v4880, %v4879
    %v4882 = vpack.c.b16 %v4881, %v4881
    %v4887 = vunpack.c.l.b16 %v4875
    %v4888 = vunpack.c.l.b16 %v4876
    %v4889 = vunpack.c.l.b16 %v4877
    %v4890 = vunpack.c.l.b16 %v4878
    %v4891 = vpack.c.b16 %v4888, %v4887
    %v4892 = vpack.c.b16 %v4890, %v4889
    %v4896 = vsel %vm230, %v4882, 0
    %4898 = vmatprep.subr.bf16.mxu0 0
    %4899 = vmatpush1.bf16.msra.mxu0 0
    %4900 = vmatprep.subr.bf16.mxu0 0
    %4901 = vmatpush1.bf16.msra.mxu0 0
    %4902 = vmatprep.subr.bf16.mxu0 0
    %4903 = vmatpush1.bf16.msra.mxu0 0
    %4904 = vmatprep.subr.bf16.mxu0 0
    %4905 = vmatpush1.bf16.msra.mxu0 0
    %4906 = vmatprep.subr.bf16.mxu0 0
    %4907 = vmatpush1.bf16.msra.mxu0 0
    %4908 = vmatprep.subr.bf16.mxu0 0
    %4909 = vmatpush1.bf16.msra.mxu0 0
    %4910 = vmatprep.subr.bf16.mxu0 0
    %4911 = vmatpush1.bf16.msra.mxu0 %v4892
    %4912 = vmatprep.subr.bf16.mxu0 0
    %4913 = vmatpush1.bf16.msra.mxu0 %v4891
    %4914 = vmatprep.subr.bf16.mxu0 0
    %4915 = vmatpush2.bf16.msra.mxu0 0
    %4916 = vmatprep.subr.bf16.mxu0 0
    %4917 = vmatpush2.bf16.msra.mxu0 0
    %4918 = vmatprep.subr.bf16.mxu0 0
    %4919 = vmatpush2.bf16.msra.mxu0 0
    %4920 = vmatprep.subr.bf16.mxu0 0
    %4921 = vmatpush2.bf16.msra.mxu0 0
    %4922 = vmatprep.subr.bf16.mxu0 0
    %4923 = vmatpush2.bf16.msra.mxu0 0
    %4924 = vmatprep.subr.bf16.mxu0 0
    %4925 = vmatpush2.bf16.msra.mxu0 0
    %4926 = vmatprep.subr.bf16.mxu0 0
    %4927 = vmatpush2.bf16.msra.mxu0 0
    %4928 = vmatprep.subr.bf16.mxu0 0
    %4929 = vmatpush2.bf16.msra.mxu0 0
    %4930 = vmatprep.mubr.bf16.mxu0 0
    %4931 = vmatmul.mubr.bf16.gmra.mxu0 %v4896
    %v4932 = vpop.f32.mrf.mxu0
    %v4933 = vadd.f32 0.0, %v4932
    %v4934 = vpop.f32.mrf.mxu0
    %v4935 = vpop.f32.mrf.mxu0
    %v4936 = vpop.f32.mrf.mxu0
    %4937 = vdwg.mxu0
    %v4938 = vadd.f32 %v4874, %v4933
    %v4939 = vld [vmem:[#allocation2 + $0xd0] sm:$0xf]
    %v4940 = vld [vmem:[#allocation2 + $0xd4] sm:$0xf]
    %v4941 = vld [vmem:[#allocation2 + $0xd8] sm:$0xf]
    %v4942 = vld [vmem:[#allocation2 + $0xdc] sm:$0xf]
    %v4943 = vrot.slane %v4623, 5
    %v4944 = vrot.slane %v4624, 4
    %v4945 = vsel %vm4115, %v4944, %v4943
    %v4946 = vpack.c.b16 %v4945, %v4945
    %v4951 = vunpack.c.l.b16 %v4939
    %v4952 = vunpack.c.l.b16 %v4940
    %v4953 = vunpack.c.l.b16 %v4941
    %v4954 = vunpack.c.l.b16 %v4942
    %v4955 = vpack.c.b16 %v4952, %v4951
    %v4956 = vpack.c.b16 %v4954, %v4953
    %v4960 = vsel %vm230, %v4946, 0
    %4962 = vmatprep.subr.bf16.mxu0 0
    %4963 = vmatpush1.bf16.msra.mxu0 0
    %4964 = vmatprep.subr.bf16.mxu0 0
    %4965 = vmatpush1.bf16.msra.mxu0 0
    %4966 = vmatprep.subr.bf16.mxu0 0
    %4967 = vmatpush1.bf16.msra.mxu0 0
    %4968 = vmatprep.subr.bf16.mxu0 0
    %4969 = vmatpush1.bf16.msra.mxu0 0
    %4970 = vmatprep.subr.bf16.mxu0 0
    %4971 = vmatpush1.bf16.msra.mxu0 0
    %4972 = vmatprep.subr.bf16.mxu0 0
    %4973 = vmatpush1.bf16.msra.mxu0 0
    %4974 = vmatprep.subr.bf16.mxu0 0
    %4975 = vmatpush1.bf16.msra.mxu0 %v4956
    %4976 = vmatprep.subr.bf16.mxu0 0
    %4977 = vmatpush1.bf16.msra.mxu0 %v4955
    %4978 = vmatprep.subr.bf16.mxu0 0
    %4979 = vmatpush2.bf16.msra.mxu0 0
    %4980 = vmatprep.subr.bf16.mxu0 0
    %4981 = vmatpush2.bf16.msra.mxu0 0
    %4982 = vmatprep.subr.bf16.mxu0 0
    %4983 = vmatpush2.bf16.msra.mxu0 0
    %4984 = vmatprep.subr.bf16.mxu0 0
    %4985 = vmatpush2.bf16.msra.mxu0 0
    %4986 = vmatprep.subr.bf16.mxu0 0
    %4987 = vmatpush2.bf16.msra.mxu0 0
    %4988 = vmatprep.subr.bf16.mxu0 0
    %4989 = vmatpush2.bf16.msra.mxu0 0
    %4990 = vmatprep.subr.bf16.mxu0 0
    %4991 = vmatpush2.bf16.msra.mxu0 0
    %4992 = vmatprep.subr.bf16.mxu0 0
    %4993 = vmatpush2.bf16.msra.mxu0 0
    %4994 = vmatprep.mubr.bf16.mxu0 0
    %4995 = vmatmul.mubr.bf16.gmra.mxu0 %v4960
    %v4996 = vpop.f32.mrf.mxu0
    %v4997 = vadd.f32 0.0, %v4996
    %v4998 = vpop.f32.mrf.mxu0
    %v4999 = vpop.f32.mrf.mxu0
    %v5000 = vpop.f32.mrf.mxu0
    %5001 = vdwg.mxu0
    %v5002 = vadd.f32 %v4938, %v4997
    %v5003 = vld [vmem:[#allocation2 + $0xe0] sm:$0xf]
    %v5004 = vld [vmem:[#allocation2 + $0xe4] sm:$0xf]
    %v5005 = vld [vmem:[#allocation2 + $0xe8] sm:$0xf]
    %v5006 = vld [vmem:[#allocation2 + $0xec] sm:$0xf]
    %v5007 = vrot.slane %v4623, 6
    %v5008 = vrot.slane %v4624, 5
    %v5009 = vsel %vm4115, %v5008, %v5007
    %v5010 = vpack.c.b16 %v5009, %v5009
    %v5015 = vunpack.c.l.b16 %v5003
    %v5016 = vunpack.c.l.b16 %v5004
    %v5017 = vunpack.c.l.b16 %v5005
    %v5018 = vunpack.c.l.b16 %v5006
    %v5019 = vpack.c.b16 %v5016, %v5015
    %v5020 = vpack.c.b16 %v5018, %v5017
    %v5024 = vsel %vm230, %v5010, 0
    %5026 = vmatprep.subr.bf16.mxu0 0
    %5027 = vmatpush1.bf16.msra.mxu0 0
    %5028 = vmatprep.subr.bf16.mxu0 0
    %5029 = vmatpush1.bf16.msra.mxu0 0
    %5030 = vmatprep.subr.bf16.mxu0 0
    %5031 = vmatpush1.bf16.msra.mxu0 0
    %5032 = vmatprep.subr.bf16.mxu0 0
    %5033 = vmatpush1.bf16.msra.mxu0 0
    %5034 = vmatprep.subr.bf16.mxu0 0
    %5035 = vmatpush1.bf16.msra.mxu0 0
    %5036 = vmatprep.subr.bf16.mxu0 0
    %5037 = vmatpush1.bf16.msra.mxu0 0
    %5038 = vmatprep.subr.bf16.mxu0 0
    %5039 = vmatpush1.bf16.msra.mxu0 %v5020
    %5040 = vmatprep.subr.bf16.mxu0 0
    %5041 = vmatpush1.bf16.msra.mxu0 %v5019
    %5042 = vmatprep.subr.bf16.mxu0 0
    %5043 = vmatpush2.bf16.msra.mxu0 0
    %5044 = vmatprep.subr.bf16.mxu0 0
    %5045 = vmatpush2.bf16.msra.mxu0 0
    %5046 = vmatprep.subr.bf16.mxu0 0
    %5047 = vmatpush2.bf16.msra.mxu0 0
    %5048 = vmatprep.subr.bf16.mxu0 0
    %5049 = vmatpush2.bf16.msra.mxu0 0
    %5050 = vmatprep.subr.bf16.mxu0 0
    %5051 = vmatpush2.bf16.msra.mxu0 0
    %5052 = vmatprep.subr.bf16.mxu0 0
    %5053 = vmatpush2.bf16.msra.mxu0 0
    %5054 = vmatprep.subr.bf16.mxu0 0
    %5055 = vmatpush2.bf16.msra.mxu0 0
    %5056 = vmatprep.subr.bf16.mxu0 0
    %5057 = vmatpush2.bf16.msra.mxu0 0
    %5058 = vmatprep.mubr.bf16.mxu0 0
    %5059 = vmatmul.mubr.bf16.gmra.mxu0 %v5024
    %v5060 = vpop.f32.mrf.mxu0
    %v5061 = vadd.f32 0.0, %v5060
    %v5062 = vpop.f32.mrf.mxu0
    %v5063 = vpop.f32.mrf.mxu0
    %v5064 = vpop.f32.mrf.mxu0
    %5065 = vdwg.mxu0
    %v5066 = vadd.f32 %v5002, %v5061
    %v5067 = vld [vmem:[#allocation2 + $0xf0] sm:$0xf]
    %v5068 = vld [vmem:[#allocation2 + $0xf4] sm:$0xf]
    %v5069 = vld [vmem:[#allocation2 + $0xf8] sm:$0xf]
    %v5070 = vld [vmem:[#allocation2 + $0xfc] sm:$0xf]
    %v5071 = vrot.slane %v4623, 7
    %v5072 = vrot.slane %v4624, 6
    %v5073 = vsel %vm4115, %v5072, %v5071
    %v5074 = vpack.c.b16 %v5073, %v5073
    %v5079 = vunpack.c.l.b16 %v5067
    %v5080 = vunpack.c.l.b16 %v5068
    %v5081 = vunpack.c.l.b16 %v5069
    %v5082 = vunpack.c.l.b16 %v5070
    %v5083 = vpack.c.b16 %v5080, %v5079
    %v5084 = vpack.c.b16 %v5082, %v5081
    %v5088 = vsel %vm230, %v5074, 0
    %5090 = vmatprep.subr.bf16.mxu0 0
    %5091 = vmatpush1.bf16.msra.mxu0 0
    %5092 = vmatprep.subr.bf16.mxu0 0
    %5093 = vmatpush1.bf16.msra.mxu0 0
    %5094 = vmatprep.subr.bf16.mxu0 0
    %5095 = vmatpush1.bf16.msra.mxu0 0
    %5096 = vmatprep.subr.bf16.mxu0 0
    %5097 = vmatpush1.bf16.msra.mxu0 0
    %5098 = vmatprep.subr.bf16.mxu0 0
    %5099 = vmatpush1.bf16.msra.mxu0 0
    %5100 = vmatprep.subr.bf16.mxu0 0
    %5101 = vmatpush1.bf16.msra.mxu0 0
    %5102 = vmatprep.subr.bf16.mxu0 0
    %5103 = vmatpush1.bf16.msra.mxu0 %v5084
    %5104 = vmatprep.subr.bf16.mxu0 0
    %5105 = vmatpush1.bf16.msra.mxu0 %v5083
    %5106 = vmatprep.subr.bf16.mxu0 0
    %5107 = vmatpush2.bf16.msra.mxu0 0
    %5108 = vmatprep.subr.bf16.mxu0 0
    %5109 = vmatpush2.bf16.msra.mxu0 0
    %5110 = vmatprep.subr.bf16.mxu0 0
    %5111 = vmatpush2.bf16.msra.mxu0 0
    %5112 = vmatprep.subr.bf16.mxu0 0
    %5113 = vmatpush2.bf16.msra.mxu0 0
    %5114 = vmatprep.subr.bf16.mxu0 0
    %5115 = vmatpush2.bf16.msra.mxu0 0
    %5116 = vmatprep.subr.bf16.mxu0 0
    %5117 = vmatpush2.bf16.msra.mxu0 0
    %5118 = vmatprep.subr.bf16.mxu0 0
    %5119 = vmatpush2.bf16.msra.mxu0 0
    %5120 = vmatprep.subr.bf16.mxu0 0
    %5121 = vmatpush2.bf16.msra.mxu0 0
    %5122 = vmatprep.mubr.bf16.mxu0 0
    %5123 = vmatmul.mubr.bf16.gmra.mxu0 %v5088
    %v5124 = vpop.f32.mrf.mxu0
    %v5125 = vadd.f32 0.0, %v5124
    %v5126 = vpop.f32.mrf.mxu0
    %v5127 = vpop.f32.mrf.mxu0
    %v5128 = vpop.f32.mrf.mxu0
    %5129 = vdwg.mxu0
    %v5130 = vadd.f32 %v5066, %v5125
    %v5131 = vld [vmem:[%s1 + $0x28] sm:$0x1]
    %v5132 = vlaneseq
    %v5133 = vshrl.u32 %v5132, 7
    %v5134 = vsub.s32 0, %v5133
    %v5135 = vrot.slane %v5131, %v5134
    %v5136 = vadd.f32 %v5130, %v5135
    %v5137 = vmul.f32 %v5136, 0.5
    %v5138 = vmul.f32 %v5136, 0.044715
    %v5139 = vmul.f32 %v5138, %v5136
    %v5140 = vmul.f32 %v5139, %v5136
    %v5141 = vadd.f32 %v5136, %v5140
    %v5142 = vmul.f32 %v5141, 0.7978846
    %v5143 = vtanh.pop %v5142
    %v5144 = vadd.f32 %v5143, 1.0
    %v5145 = vmul.f32 %v5137, %v5144
    %v5146 = vpack.c.bf16 %v5145, %v5145
    %v5147 = vld [vmem:[%s7] sm:$0xf]
    %v5148 = vld [vmem:[%s7 + $0x4] sm:$0xf]
    %v5149 = vld [vmem:[%s7 + $0x8] sm:$0xf]
    %v5150 = vld [vmem:[%s7 + $0xc] sm:$0xf]
    %v5151 = vld [vmem:[%s7 + $0x10] sm:$0xf]
    %v5152 = vld [vmem:[%s7 + $0x14] sm:$0xf]
    %v5153 = vld [vmem:[%s7 + $0x18] sm:$0xf]
    %v5154 = vld [vmem:[%s7 + $0x1c] sm:$0xf]
    %v5155 = vld [vmem:[%s7 + $0x20] sm:$0xf]
    %v5156 = vld [vmem:[%s7 + $0x24] sm:$0xf]
    %v5157 = vld [vmem:[%s7 + $0x28] sm:$0xf]
    %v5158 = vld [vmem:[%s7 + $0x2c] sm:$0xf]
    %v5159 = vld [vmem:[%s7 + $0x30] sm:$0xf]
    %v5160 = vld [vmem:[%s7 + $0x34] sm:$0xf]
    %v5161 = vld [vmem:[%s7 + $0x38] sm:$0xf]
    %v5162 = vld [vmem:[%s7 + $0x3c] sm:$0xf]
    %v5163 = vld [vmem:[%s1 + $0x29] sm:$0x1]
    %v5164 = vlaneseq
    %v5165 = vshrl.u32 %v5164, 7
    %v5166 = vsub.s32 0, %v5165
    %v5167 = vrot.slane %v5163, %v5166
    %v5184 = vunpack.c.l.b16 %v5147
    %v5185 = vunpack.c.l.b16 %v5148
    %v5186 = vunpack.c.l.b16 %v5149
    %v5187 = vunpack.c.l.b16 %v5150
    %v5188 = vunpack.c.l.b16 %v5151
    %v5189 = vunpack.c.l.b16 %v5152
    %v5190 = vunpack.c.l.b16 %v5153
    %v5191 = vunpack.c.l.b16 %v5154
    %v5192 = vunpack.c.l.b16 %v5155
    %v5193 = vunpack.c.l.b16 %v5156
    %v5194 = vunpack.c.l.b16 %v5157
    %v5195 = vunpack.c.l.b16 %v5158
    %v5196 = vunpack.c.l.b16 %v5159
    %v5197 = vunpack.c.l.b16 %v5160
    %v5198 = vunpack.c.l.b16 %v5161
    %v5199 = vunpack.c.l.b16 %v5162
    %v5200 = vpack.c.b16 %v5185, %v5184
    %v5201 = vpack.c.b16 %v5187, %v5186
    %v5202 = vpack.c.b16 %v5189, %v5188
    %v5203 = vpack.c.b16 %v5191, %v5190
    %v5204 = vpack.c.b16 %v5193, %v5192
    %v5205 = vpack.c.b16 %v5195, %v5194
    %v5206 = vpack.c.b16 %v5197, %v5196
    %v5207 = vpack.c.b16 %v5199, %v5198
    %5216 = vmatprep.subr.bf16.mxu0 0
    %5217 = vmatpush1.bf16.msra.mxu0 %v5207
    %5218 = vmatprep.subr.bf16.mxu0 0
    %5219 = vmatpush1.bf16.msra.mxu0 %v5206
    %5220 = vmatprep.subr.bf16.mxu0 0
    %5221 = vmatpush1.bf16.msra.mxu0 %v5205
    %5222 = vmatprep.subr.bf16.mxu0 0
    %5223 = vmatpush1.bf16.msra.mxu0 %v5204
    %5224 = vmatprep.subr.bf16.mxu0 0
    %5225 = vmatpush1.bf16.msra.mxu0 %v5203
    %5226 = vmatprep.subr.bf16.mxu0 0
    %5227 = vmatpush1.bf16.msra.mxu0 %v5202
    %5228 = vmatprep.subr.bf16.mxu0 0
    %5229 = vmatpush1.bf16.msra.mxu0 %v5201
    %5230 = vmatprep.subr.bf16.mxu0 0
    %5231 = vmatpush1.bf16.msra.mxu0 %v5200
    %5232 = vmatprep.subr.bf16.mxu0 0
    %5233 = vmatpush2.bf16.msra.mxu0 0
    %5234 = vmatprep.subr.bf16.mxu0 0
    %5235 = vmatpush2.bf16.msra.mxu0 0
    %5236 = vmatprep.subr.bf16.mxu0 0
    %5237 = vmatpush2.bf16.msra.mxu0 0
    %5238 = vmatprep.subr.bf16.mxu0 0
    %5239 = vmatpush2.bf16.msra.mxu0 0
    %5240 = vmatprep.subr.bf16.mxu0 0
    %5241 = vmatpush2.bf16.msra.mxu0 0
    %5242 = vmatprep.subr.bf16.mxu0 0
    %5243 = vmatpush2.bf16.msra.mxu0 0
    %5244 = vmatprep.subr.bf16.mxu0 0
    %5245 = vmatpush2.bf16.msra.mxu0 0
    %5246 = vmatprep.subr.bf16.mxu0 0
    %5247 = vmatpush2.bf16.msra.mxu0 0
    %5248 = vmatprep.mubr.bf16.mxu0 0
    %5249 = vmatmul.mubr.bf16.gmra.mxu0 %v5146
    %v5250 = vpop.f32.mrf.mxu0
    %v5251 = vadd.f32 %v5167, %v5250
    %v5252 = vpop.f32.mrf.mxu0
    %v5253 = vpop.f32.mrf.mxu0
    %v5254 = vpop.f32.mrf.mxu0
    %5255 = vdwg.mxu0
    %v5256 = vmul.f32 %v5251, 0.5
    %v5257 = vmul.f32 %v5251, 0.044715
    %v5258 = vmul.f32 %v5257, %v5251
    %v5259 = vmul.f32 %v5258, %v5251
    %v5260 = vadd.f32 %v5251, %v5259
    %v5261 = vmul.f32 %v5260, 0.7978846
    %v5262 = vtanh.pop %v5261
    %v5263 = vadd.f32 %v5262, 1.0
    %v5264 = vmul.f32 %v5256, %v5263
    %v5265 = vpack.c.bf16 %v5264, %v5264
    %v5266 = vld [vmem:[%s8] sm:$0xf]
    %v5267 = vld [vmem:[%s8 + $0x4] sm:$0xf]
    %v5268 = vld [vmem:[%s8 + $0x8] sm:$0xf]
    %v5269 = vld [vmem:[%s8 + $0xc] sm:$0xf]
    %v5270 = vld [vmem:[%s8 + $0x10] sm:$0xf]
    %v5271 = vld [vmem:[%s8 + $0x14] sm:$0xf]
    %v5272 = vld [vmem:[%s8 + $0x18] sm:$0xf]
    %v5273 = vld [vmem:[%s8 + $0x1c] sm:$0xf]
    %v5274 = vld [vmem:[%s1 + $0x2a] sm:$0x1]
    %v5275 = vlaneseq
    %v5276 = vshrl.u32 %v5275, 7
    %v5277 = vsub.s32 0, %v5276
    %v5278 = vrot.slane %v5274, %v5277
    %v5287 = vunpack.c.l.b16 %v5266
    %v5288 = vunpack.c.l.b16 %v5267
    %v5289 = vunpack.c.l.b16 %v5268
    %v5290 = vunpack.c.l.b16 %v5269
    %v5291 = vunpack.c.l.b16 %v5270
    %v5292 = vunpack.c.l.b16 %v5271
    %v5293 = vunpack.c.l.b16 %v5272
    %v5294 = vunpack.c.l.b16 %v5273
    %v5295 = vpack.c.b16 %v5288, %v5287
    %v5296 = vpack.c.b16 %v5290, %v5289
    %v5297 = vpack.c.b16 %v5292, %v5291
    %v5298 = vpack.c.b16 %v5294, %v5293
    %v5304 = vsel %vm2076, %v5265, 0
    %5306 = vmatprep.subr.bf16.mxu0 0
    %5307 = vmatpush1.bf16.msra.mxu0 0
    %5308 = vmatprep.subr.bf16.mxu0 0
    %5309 = vmatpush1.bf16.msra.mxu0 0
    %5310 = vmatprep.subr.bf16.mxu0 0
    %5311 = vmatpush1.bf16.msra.mxu0 0
    %5312 = vmatprep.subr.bf16.mxu0 0
    %5313 = vmatpush1.bf16.msra.mxu0 0
    %5314 = vmatprep.subr.bf16.mxu0 0
    %5315 = vmatpush1.bf16.msra.mxu0 %v5298
    %5316 = vmatprep.subr.bf16.mxu0 0
    %5317 = vmatpush1.bf16.msra.mxu0 %v5297
    %5318 = vmatprep.subr.bf16.mxu0 0
    %5319 = vmatpush1.bf16.msra.mxu0 %v5296
    %5320 = vmatprep.subr.bf16.mxu0 0
    %5321 = vmatpush1.bf16.msra.mxu0 %v5295
    %5322 = vmatprep.subr.bf16.mxu0 0
    %5323 = vmatpush2.bf16.msra.mxu0 0
    %5324 = vmatprep.subr.bf16.mxu0 0
    %5325 = vmatpush2.bf16.msra.mxu0 0
    %5326 = vmatprep.subr.bf16.mxu0 0
    %5327 = vmatpush2.bf16.msra.mxu0 0
    %5328 = vmatprep.subr.bf16.mxu0 0
    %5329 = vmatpush2.bf16.msra.mxu0 0
    %5330 = vmatprep.subr.bf16.mxu0 0
    %5331 = vmatpush2.bf16.msra.mxu0 0
    %5332 = vmatprep.subr.bf16.mxu0 0
    %5333 = vmatpush2.bf16.msra.mxu0 0
    %5334 = vmatprep.subr.bf16.mxu0 0
    %5335 = vmatpush2.bf16.msra.mxu0 0
    %5336 = vmatprep.subr.bf16.mxu0 0
    %5337 = vmatpush2.bf16.msra.mxu0 0
    %5338 = vmatprep.mubr.bf16.mxu0 0
    %5339 = vmatmul.mubr.bf16.gmra.mxu0 %v5304
    %v5340 = vpop.f32.mrf.mxu0
    %v5341 = vadd.f32 %v5278, %v5340
    %v5342 = vpop.f32.mrf.mxu0
    %v5343 = vpop.f32.mrf.mxu0
    %v5344 = vpop.f32.mrf.mxu0
    %5345 = vdwg.mxu0
    %vm5346 = vcmask 74752
    %5347 = vst.msk [vmem:[#allocation4] sm:$0x3] %vm5346, %v5341
    // Predicated region
    $region72: #{vit_forward.1} parent=1 // pred_check
      _
    $region73: #{vit_forward.1} parent=1 // pred_check_branch
      %5349 = sbr.rel (0) target = $region75
    $region74: #{vit_forward.1} parent=1 // pred_region
      %s5351 = ssub.s32 32, 32
      %5352 = vsyncadd [#allocation5], %s5351
      %s5354 = sshll.u32 [#allocation4], 4
      %s5355 = int_to_ptr.vmem [resolvable:$true] %s5354
      %5357 = dma.vmem_to_hbm [thread:$0]  %s5355, 32, %s10, [#allocation5]
    $region75: #{vit_forward.1} parent=1 // pred_fallthru
      _
    // Predicated region
    $region76: #{vit_forward.1} parent=1 // pred_check
      _
    $region77: #{vit_forward.1} parent=1 // pred_check_branch
      %5359 = sbr.rel (0) target = $region79
    $region78: #{vit_forward.1} parent=1 // pred_region
      %5360 = dma.done [#allocation5], 32
    $region79: #{vit_forward.1} parent=1 // pred_fallthru
      _
    %5361 = vsyncpa [#allocation5], 1
  %5362 = vsyncmov [#allocation3]
  %s5363 = vpop.sfrf %5362
  %p5364 = scmp.eq.s32.totalorder %s5363, 0
  %p5365 = pneg %p5364
  %5367 = shalt.err (%p5365)

</llo_original>
